<compile_context>
chip_gen: v7x
topology: tpu7x:2x2x1
jax: 0.10.0
libtpu: 0.0.40
codegen_flags: <defaults>
</compile_context>

<pallas_src>
import functools

import jax
import jax.numpy as jnp
from jax.experimental import pallas as pl
from jax.experimental.pallas import tpu as pltpu

IMG_SIZE = (16, 16)   # small stand-in for the real (384, 384)


# ----------------------------------------------------------------------------
# One conv(3x3, pad=1) + ReLU + maxpool(2) layer, fully in VMEM.
# ----------------------------------------------------------------------------
def _conv_relu_pool(pad_ref, act_ref, w_ref, b_ref, B, H, W, Cin, Cout):
    """pad_ref: (B, H+2, W+2, Cin) f32 halo scratch (border zero, interior written).
    act_ref: (B*H*W, Cout) f32 activation scratch.
    w_ref: (9*Cin, Cout) bf16, rows ordered (dy, dx, c).  b_ref: (1, Cout) f32.
    Returns pooled activation (B, H//2, W//2, Cout) f32."""
    # im2col: ONE (B*H*W, 9*Cin) patch matrix -- 9 shifted halo views concatenated
    # along the lane axis -- then a single bf16 MXU matmul with K = 9*Cin.
    taps = []
    for dy in range(3):
        for dx in range(3):
            v = pad_ref[:, pl.ds(dy, H), pl.ds(dx, W), :]          # (B, H, W, Cin)
            taps.append(v.reshape(B * H * W, Cin))
    xcol = jnp.concatenate(taps, axis=-1).astype(jnp.bfloat16)     # (B*H*W, 9*Cin)
    acc = jnp.dot(xcol, w_ref[...], preferred_element_type=jnp.float32)
    act_ref[...] = jnp.maximum(acc + b_ref[...], 0.0)              # (B*H*W, Cout) f32

    # 2x2 stride-2 max pool without a sublane-splitting 5-D reshape:
    #   W direction: adjacent x positions are adjacent rows of act_ref, so the
    #     horizontal pair is an even/odd stride-2 sublane read pair.
    #   H direction: split the leading row index (free) and pair-max on the VPU.
    n = B * H * W // 2
    wmax = jnp.maximum(act_ref[pl.ds(0, n, stride=2), :],
                       act_ref[pl.ds(1, n, stride=2), :])          # rows (b, y, x')
    pooled = jnp.max(wmax.reshape(B, H // 2, 2, W // 2, Cout), axis=2)
    return pooled                                                  # (B, H//2, W//2, Cout)


# ----------------------------------------------------------------------------
# Fused kernel: conv1 -> conv2 -> conv3 -> fc1(+ReLU) -> [classifier | attn]
# Whole batch in one grid step; everything between input and the (B, 2) output
# lives in VMEM / vregs.
# ----------------------------------------------------------------------------
def _fused_kernel(x_ref, w1_ref, b1_ref, w2_ref, b2_ref, w3_ref, b3_ref,
                  wfc_ref, bfc_ref, wh_ref, bh_ref, out_ref,
                  pad1_ref, act1_ref, pad2_ref, act2_ref, pad3_ref, act3_ref,
                  *, B, H, W, Cin):
    # Halo scratches are zeroed exactly once per call; only the 1-px border is ever
    # consumed as zeros (interiors are fully overwritten right below).
    pad1_ref[...] = jnp.zeros_like(pad1_ref)
    pad2_ref[...] = jnp.zeros_like(pad2_ref)
    pad3_ref[...] = jnp.zeros_like(pad3_ref)

    # Layer 1 (lane occupancy bounded by Cin=2 -- inherent to the 2-channel input).
    pad1_ref[:, pl.ds(1, H), pl.ds(1, W), :] = x_ref[...]
    a = _conv_relu_pool(pad1_ref, act1_ref, w1_ref, b1_ref, B, H, W, Cin, 32)

    H2, W2 = H // 2, W // 2
    pad2_ref[:, pl.ds(1, H2), pl.ds(1, W2), :] = a
    a = _conv_relu_pool(pad2_ref, act2_ref, w2_ref, b2_ref, B, H2, W2, 32, 64)

    H4, W4 = H // 4, W // 4
    pad3_ref[:, pl.ds(1, H4), pl.ds(1, W4), :] = a
    a = _conv_relu_pool(pad3_ref, act3_ref, w3_ref, b3_ref, B, H4, W4, 64, 128)

    # Flatten per-image features in (y, x, c) order; fc1 rows were pre-permuted to match.
    fmap = (H // 8) * (W // 8)
    feat = a.reshape(B, fmap * 128)
    # TODO(synk): nn.Dropout (fc dropout) is identity in eval mode; training-mode dropout omitted.
    hid = jnp.dot(feat.astype(jnp.bfloat16), wfc_ref[...],
                  preferred_element_type=jnp.float32) + bfc_ref[...]
    hid = jnp.maximum(hid, 0.0)                                    # (B, 128) f32

    # Merged heads: one (128, 2) matmul; col 0 = classifier logit, col 1 = attn weight.
    # TODO(synk): attn_dropout is identity in eval mode.
    out_ref[...] = jnp.dot(hid.astype(jnp.bfloat16), wh_ref[...],
                           preferred_element_type=jnp.float32) + bh_ref[...]


# ----------------------------------------------------------------------------
# Wrapper: layout plumbing (torch state_dict layouts -> kernel layouts) + one
# pallas_call.
# ----------------------------------------------------------------------------
def cnn_backbone_forward(x_nchw, params):
    B, Cin, H, W = x_nchw.shape
    fmap = (H // 8) * (W // 8)

    x = jnp.transpose(x_nchw, (0, 2, 3, 1))                        # NCHW -> NHWC

    def conv_w(w):
        # torch Conv2d weight (Cout, Cin, kH, kW) -> (9*Cin, Cout), rows in (dy, dx, c)
        cout, cin = w.shape[0], w.shape[1]
        return jnp.transpose(w, (2, 3, 1, 0)).reshape(9 * cin, cout).astype(jnp.bfloat16)

    w1 = conv_w(params["conv1_w"]); b1 = params["conv1_b"].reshape(1, 32)
    w2 = conv_w(params["conv2_w"]); b2 = params["conv2_b"].reshape(1, 64)
    w3 = conv_w(params["conv3_w"]); b3 = params["conv3_b"].reshape(1, 128)

    # torch fc1 weight is (out=128, in=128*fmap) with in-index = c*fmap + p (NCHW
    # flatten); kernel feature order is p*128 + c (NHWC flatten) -> permute.
    wfc = (params["fc1_w"].reshape(128, 128, fmap).transpose(2, 1, 0)
           .reshape(fmap * 128, 128).astype(jnp.bfloat16))
    bfc = params["fc1_b"].reshape(1, 128)

    # Merge the two (1, 128) Linear heads into one (128, 2) matmul.
    wh = jnp.concatenate([params["cls_w"].T, params["attn_w"].T], axis=1).astype(jnp.bfloat16)
    bh = jnp.concatenate([params["cls_b"], params["attn_b"]]).reshape(1, 2)

    # Batch is merged into one grid step (best for single-TC v5e/v6e at this size).
    # TODO(synk): for v7x (two TCs) and the real 384x384 size: add a "parallel"
    # batch/spatial grid axis, tile the spatial dims, K-tile the (75 MB bf16) fc1_w
    # over a grid axis with a VMEM accumulator, and single-buffer the weight specs.
    kernel = functools.partial(_fused_kernel, B=B, H=H, W=W, Cin=Cin)
    out = pl.pallas_call(
        kernel,
        out_shape=jax.ShapeDtypeStruct((B, 2), jnp.float32),
        grid=(1,),
        in_specs=[
            pl.BlockSpec((B, H, W, Cin), lambda i: (0, 0, 0, 0)),
            pl.BlockSpec((9 * Cin, 32), lambda i: (0, 0)),
            pl.BlockSpec((1, 32), lambda i: (0, 0)),
            pl.BlockSpec((9 * 32, 64), lambda i: (0, 0)),
            pl.BlockSpec((1, 64), lambda i: (0, 0)),
            pl.BlockSpec((9 * 64, 128), lambda i: (0, 0)),
            pl.BlockSpec((1, 128), lambda i: (0, 0)),
            pl.BlockSpec((fmap * 128, 128), lambda i: (0, 0)),
            pl.BlockSpec((1, 128), lambda i: (0, 0)),
            pl.BlockSpec((128, 2), lambda i: (0, 0)),
            pl.BlockSpec((1, 2), lambda i: (0, 0)),
        ],
        out_specs=pl.BlockSpec((B, 2), lambda i: (0, 0)),
        scratch_shapes=[
            pltpu.VMEM((B, H + 2, W + 2, Cin), jnp.float32),        # pad1 (halo)
            pltpu.VMEM((B * H * W, 32), jnp.float32),               # act1
            pltpu.VMEM((B, H // 2 + 2, W // 2 + 2, 32), jnp.float32),  # pad2
            pltpu.VMEM((B * H * W // 4, 64), jnp.float32),          # act2
            pltpu.VMEM((B, H // 4 + 2, W // 4 + 2, 64), jnp.float32),  # pad3
            pltpu.VMEM((B * H * W // 16, 128), jnp.float32),        # act3
        ],
        compiler_params=pltpu.CompilerParams(
            dimension_semantics=("arbitrary",),
            vmem_limit_bytes=32 * 1024 * 1024,
        ),
    )(x, w1, b1, w2, b2, w3, b3, wfc, bfc, wh, bh)

    return out[:, 0], out[:, 1]                                    # (logit, attn_weight)


# ----------------------------------------------------------------------------
# Deterministic synthetic parameters (PyTorch state_dict layouts).
# ----------------------------------------------------------------------------
def init_params(key, in_channels=2, img_size=IMG_SIZE):
    fmap = (img_size[0] // 8) * (img_size[1] // 8)
    ks = jax.random.split(key, 12)
    n = lambda k, s, scale: scale * jax.random.normal(k, s, jnp.float32)
    return {
        "conv1_w": n(ks[0], (32, in_channels, 3, 3), 0.1),  "conv1_b": n(ks[1], (32,), 0.01),
        "conv2_w": n(ks[2], (64, 32, 3, 3), 0.05),          "conv2_b": n(ks[3], (64,), 0.01),
        "conv3_w": n(ks[4], (128, 64, 3, 3), 0.05),         "conv3_b": n(ks[5], (128,), 0.01),
        "fc1_w": n(ks[6], (128, 128 * fmap), 0.02),         "fc1_b": n(ks[7], (128,), 0.01),
        "cls_w": n(ks[8], (1, 128), 0.05),                  "cls_b": n(ks[9], (1,), 0.01),
        "attn_w": n(ks[10], (1, 128), 0.05),                "attn_b": n(ks[11], (1,), 0.01),
    }


if __name__ == "__main__":
    key = jax.random.PRNGKey(0)
    k_x, k_p = jax.random.split(key)
    x = jax.random.normal(k_x, (2, 2, IMG_SIZE[0], IMG_SIZE[1]), jnp.float32)  # NCHW
    params = init_params(k_p)

    logit, attn = jax.jit(cnn_backbone_forward)(x, params)
    jax.block_until_ready((logit, attn))

    assert logit.shape == (2,) and attn.shape == (2,)
    assert logit.dtype == jnp.float32 and attn.dtype == jnp.float32
    print("KERNEL_OK")
</pallas_src>

<mosaic_0001>
module attributes {stable_mosaic.version = 11 : i64} {
  func.func @_fused_kernel(%arg0: i32, %arg1: memref<2x16x16x2xf32, #tpu.memory_space<vmem>>, %arg2: memref<18x32xbf16, #tpu.memory_space<vmem>>, %arg3: memref<1x32xf32, #tpu.memory_space<vmem>>, %arg4: memref<288x64xbf16, #tpu.memory_space<vmem>>, %arg5: memref<1x64xf32, #tpu.memory_space<vmem>>, %arg6: memref<576x128xbf16, #tpu.memory_space<vmem>>, %arg7: memref<1x128xf32, #tpu.memory_space<vmem>>, %arg8: memref<512x128xbf16, #tpu.memory_space<vmem>>, %arg9: memref<1x128xf32, #tpu.memory_space<vmem>>, %arg10: memref<128x2xbf16, #tpu.memory_space<vmem>>, %arg11: memref<1x2xf32, #tpu.memory_space<vmem>>, %arg12: memref<2x2xf32, #tpu.memory_space<vmem>>, %arg13: memref<2x18x18x2xf32, #tpu.memory_space<vmem>>, %arg14: memref<512x32xf32, #tpu.memory_space<vmem>>, %arg15: memref<2x10x10x32xf32, #tpu.memory_space<vmem>>, %arg16: memref<128x64xf32, #tpu.memory_space<vmem>>, %arg17: memref<2x6x6x64xf32, #tpu.memory_space<vmem>>, %arg18: memref<32x128xf32, #tpu.memory_space<vmem>>) attributes {dimension_semantics = [#tpu.dimension_semantics<arbitrary>], iteration_bounds = array<i64: 1>, scalar_prefetch = 0 : i64, scratch_operands = 6 : i64, tpu.core_type = #tpu.core_type<tc>, window_params = [{pipeline_mode = #tpu.pipeline_mode<synchronous>, transform_indices = @transform_0, window_bounds = array<i64: 2, 16, 16, 2>}, {pipeline_mode = #tpu.pipeline_mode<synchronous>, transform_indices = @transform_1, window_bounds = array<i64: 18, 32>}, {pipeline_mode = #tpu.pipeline_mode<synchronous>, transform_indices = @transform_2, window_bounds = array<i64: 1, 32>}, {pipeline_mode = #tpu.pipeline_mode<synchronous>, transform_indices = @transform_3, window_bounds = array<i64: 288, 64>}, {pipeline_mode = #tpu.pipeline_mode<synchronous>, transform_indices = @transform_4, window_bounds = array<i64: 1, 64>}, {pipeline_mode = #tpu.pipeline_mode<synchronous>, transform_indices = @transform_5, window_bounds = array<i64: 576, 128>}, {pipeline_mode = #tpu.pipeline_mode<synchronous>, transform_indices = @transform_6, window_bounds = array<i64: 1, 128>}, {pipeline_mode = #tpu.pipeline_mode<synchronous>, transform_indices = @transform_7, window_bounds = array<i64: 512, 128>}, {pipeline_mode = #tpu.pipeline_mode<synchronous>, transform_indices = @transform_8, window_bounds = array<i64: 1, 128>}, {pipeline_mode = #tpu.pipeline_mode<synchronous>, transform_indices = @transform_9, window_bounds = array<i64: 128, 2>}, {pipeline_mode = #tpu.pipeline_mode<synchronous>, transform_indices = @transform_10, window_bounds = array<i64: 1, 2>}, {pipeline_mode = #tpu.pipeline_mode<synchronous>, transform_indices = @transform_11, window_bounds = array<i64: 2, 2>}]} {
    %cst = arith.constant 0.000000e+00 : f32
    %0 = vector.broadcast %cst : f32 to vector<2x18x18x2xf32>
    %c0 = arith.constant 0 : index
    %c0_0 = arith.constant 0 : index
    %c0_1 = arith.constant 0 : index
    %c0_2 = arith.constant 0 : index
    %1 = vector.load %arg13[%c0, %c0_0, %c0_1, %c0_2] : memref<2x18x18x2xf32, #tpu.memory_space<vmem>>, vector<2x18x18x2xf32>
    tpu.vector_store %arg13[%c0, %c0_0, %c0_1, %c0_2], %0 {strides = array<i32>} : memref<2x18x18x2xf32, #tpu.memory_space<vmem>>, vector<2x18x18x2xf32>,
    %cst_3 = arith.constant 0.000000e+00 : f32
    %2 = vector.broadcast %cst_3 : f32 to vector<2x10x10x32xf32>
    %c0_4 = arith.constant 0 : index
    %c0_5 = arith.constant 0 : index
    %c0_6 = arith.constant 0 : index
    %c0_7 = arith.constant 0 : index
    %3 = vector.load %arg15[%c0_4, %c0_5, %c0_6, %c0_7] : memref<2x10x10x32xf32, #tpu.memory_space<vmem>>, vector<2x10x10x32xf32>
    tpu.vector_store %arg15[%c0_4, %c0_5, %c0_6, %c0_7], %2 {strides = array<i32>} : memref<2x10x10x32xf32, #tpu.memory_space<vmem>>, vector<2x10x10x32xf32>,
    %cst_8 = arith.constant 0.000000e+00 : f32
    %4 = vector.broadcast %cst_8 : f32 to vector<2x6x6x64xf32>
    %c0_9 = arith.constant 0 : index
    %c0_10 = arith.constant 0 : index
    %c0_11 = arith.constant 0 : index
    %c0_12 = arith.constant 0 : index
    %5 = vector.load %arg17[%c0_9, %c0_10, %c0_11, %c0_12] : memref<2x6x6x64xf32, #tpu.memory_space<vmem>>, vector<2x6x6x64xf32>
    tpu.vector_store %arg17[%c0_9, %c0_10, %c0_11, %c0_12], %4 {strides = array<i32>} : memref<2x6x6x64xf32, #tpu.memory_space<vmem>>, vector<2x6x6x64xf32>,
    %c0_13 = arith.constant 0 : index
    %c0_14 = arith.constant 0 : index
    %c0_15 = arith.constant 0 : index
    %c0_16 = arith.constant 0 : index
    %6 = vector.load %arg1[%c0_13, %c0_14, %c0_15, %c0_16] : memref<2x16x16x2xf32, #tpu.memory_space<vmem>>, vector<2x16x16x2xf32>
    %c0_17 = arith.constant 0 : index
    %c1 = arith.constant 1 : index
    %c1_18 = arith.constant 1 : index
    %c0_19 = arith.constant 0 : index
    %7 = vector.load %arg13[%c0_17, %c1, %c1_18, %c0_19] : memref<2x18x18x2xf32, #tpu.memory_space<vmem>>, vector<2x16x16x2xf32>
    tpu.vector_store %arg13[%c0_17, %c1, %c1_18, %c0_19], %6 {strides = array<i32>} : memref<2x18x18x2xf32, #tpu.memory_space<vmem>>, vector<2x16x16x2xf32>,
    %c0_20 = arith.constant 0 : index
    %c0_21 = arith.constant 0 : index
    %c0_22 = arith.constant 0 : index
    %c0_23 = arith.constant 0 : index
    %8 = vector.load %arg13[%c0_20, %c0_21, %c0_22, %c0_23] : memref<2x18x18x2xf32, #tpu.memory_space<vmem>>, vector<2x16x16x2xf32>
    %9 = vector.shape_cast %8 : vector<2x16x16x2xf32> to vector<512x2xf32>
    %c0_24 = arith.constant 0 : index
    %c0_25 = arith.constant 0 : index
    %c1_26 = arith.constant 1 : index
    %c0_27 = arith.constant 0 : index
    %10 = vector.load %arg13[%c0_24, %c0_25, %c1_26, %c0_27] : memref<2x18x18x2xf32, #tpu.memory_space<vmem>>, vector<2x16x16x2xf32>
    %11 = vector.shape_cast %10 : vector<2x16x16x2xf32> to vector<512x2xf32>
    %c0_28 = arith.constant 0 : index
    %c0_29 = arith.constant 0 : index
    %c2 = arith.constant 2 : index
    %c0_30 = arith.constant 0 : index
    %12 = vector.load %arg13[%c0_28, %c0_29, %c2, %c0_30] : memref<2x18x18x2xf32, #tpu.memory_space<vmem>>, vector<2x16x16x2xf32>
    %13 = vector.shape_cast %12 : vector<2x16x16x2xf32> to vector<512x2xf32>
    %c0_31 = arith.constant 0 : index
    %c1_32 = arith.constant 1 : index
    %c0_33 = arith.constant 0 : index
    %c0_34 = arith.constant 0 : index
    %14 = vector.load %arg13[%c0_31, %c1_32, %c0_33, %c0_34] : memref<2x18x18x2xf32, #tpu.memory_space<vmem>>, vector<2x16x16x2xf32>
    %15 = vector.shape_cast %14 : vector<2x16x16x2xf32> to vector<512x2xf32>
    %c0_35 = arith.constant 0 : index
    %c1_36 = arith.constant 1 : index
    %c1_37 = arith.constant 1 : index
    %c0_38 = arith.constant 0 : index
    %16 = vector.load %arg13[%c0_35, %c1_36, %c1_37, %c0_38] : memref<2x18x18x2xf32, #tpu.memory_space<vmem>>, vector<2x16x16x2xf32>
    %17 = vector.shape_cast %16 : vector<2x16x16x2xf32> to vector<512x2xf32>
    %c0_39 = arith.constant 0 : index
    %c1_40 = arith.constant 1 : index
    %c2_41 = arith.constant 2 : index
    %c0_42 = arith.constant 0 : index
    %18 = vector.load %arg13[%c0_39, %c1_40, %c2_41, %c0_42] : memref<2x18x18x2xf32, #tpu.memory_space<vmem>>, vector<2x16x16x2xf32>
    %19 = vector.shape_cast %18 : vector<2x16x16x2xf32> to vector<512x2xf32>
    %c0_43 = arith.constant 0 : index
    %c2_44 = arith.constant 2 : index
    %c0_45 = arith.constant 0 : index
    %c0_46 = arith.constant 0 : index
    %20 = vector.load %arg13[%c0_43, %c2_44, %c0_45, %c0_46] : memref<2x18x18x2xf32, #tpu.memory_space<vmem>>, vector<2x16x16x2xf32>
    %21 = vector.shape_cast %20 : vector<2x16x16x2xf32> to vector<512x2xf32>
    %c0_47 = arith.constant 0 : index
    %c2_48 = arith.constant 2 : index
    %c1_49 = arith.constant 1 : index
    %c0_50 = arith.constant 0 : index
    %22 = vector.load %arg13[%c0_47, %c2_48, %c1_49, %c0_50] : memref<2x18x18x2xf32, #tpu.memory_space<vmem>>, vector<2x16x16x2xf32>
    %23 = vector.shape_cast %22 : vector<2x16x16x2xf32> to vector<512x2xf32>
    %c0_51 = arith.constant 0 : index
    %c2_52 = arith.constant 2 : index
    %c2_53 = arith.constant 2 : index
    %c0_54 = arith.constant 0 : index
    %24 = vector.load %arg13[%c0_51, %c2_52, %c2_53, %c0_54] : memref<2x18x18x2xf32, #tpu.memory_space<vmem>>, vector<2x16x16x2xf32>
    %25 = vector.shape_cast %24 : vector<2x16x16x2xf32> to vector<512x2xf32>
    %26 = tpu.concatenate %9, %11, %13, %15, %17, %19, %21, %23, %25 in 1 : vector<512x2xf32>, vector<512x2xf32>, vector<512x2xf32>, vector<512x2xf32>, vector<512x2xf32>, vector<512x2xf32>, vector<512x2xf32>, vector<512x2xf32>, vector<512x2xf32> -> vector<512x18xf32>
    %27 = arith.truncf %26 : vector<512x18xf32> to vector<512x18xbf16>
    %c0_55 = arith.constant 0 : index
    %c0_56 = arith.constant 0 : index
    %28 = vector.load %arg2[%c0_55, %c0_56] : memref<18x32xbf16, #tpu.memory_space<vmem>>, vector<18x32xbf16>
    %cst_57 = arith.constant dense<0.000000e+00> : vector<512x32xf32>
    %29 = tpu.matmul %27, %28, %cst_57 {dimension_numbers = #tpu.dot_dimension_numbers<[1], [0], [0], [1], [0, 0, 1, 1], [], []>} : vector<512x18xbf16>, vector<18x32xbf16>, vector<512x32xf32> -> vector<512x32xf32>
    %c0_58 = arith.constant 0 : index
    %c0_59 = arith.constant 0 : index
    %30 = vector.load %arg3[%c0_58, %c0_59] : memref<1x32xf32, #tpu.memory_space<vmem>>, vector<1x32xf32>
    %31 = vector.broadcast %30 : vector<1x32xf32> to vector<512x32xf32>
    %32 = arith.addf %29, %31 : vector<512x32xf32>
    %cst_60 = arith.constant 0.000000e+00 : f32
    %33 = vector.broadcast %cst_60 : f32 to vector<512x32xf32>
    %34 = arith.maximumf %32, %33 : vector<512x32xf32>
    %c0_61 = arith.constant 0 : index
    %c0_62 = arith.constant 0 : index
    %35 = vector.load %arg14[%c0_61, %c0_62] : memref<512x32xf32, #tpu.memory_space<vmem>>, vector<512x32xf32>
    tpu.vector_store %arg14[%c0_61, %c0_62], %34 {strides = array<i32>} : memref<512x32xf32, #tpu.memory_space<vmem>>, vector<512x32xf32>,
    %c0_63 = arith.constant 0 : index
    %c0_64 = arith.constant 0 : index
    %36 = tpu.strided_load %arg14[%c0_63, %c0_64] {strides = array<i32: 2, 1>} : memref<512x32xf32, #tpu.memory_space<vmem>>, vector<256x32xf32>
    %c1_65 = arith.constant 1 : index
    %c0_66 = arith.constant 0 : index
    %37 = tpu.strided_load %arg14[%c1_65, %c0_66] {strides = array<i32: 2, 1>} : memref<512x32xf32, #tpu.memory_space<vmem>>, vector<256x32xf32>
    %38 = arith.maximumf %36, %37 : vector<256x32xf32>
    %39 = vector.shape_cast %38 : vector<256x32xf32> to vector<2x8x2x8x32xf32>
    %cst_67 = arith.constant dense<0xFF800000> : vector<2x8x8x32xf32>
    %40 = vector.multi_reduction <maximumf>, %39, %cst_67 [2] : vector<2x8x2x8x32xf32> to vector<2x8x8x32xf32>
    %c0_68 = arith.constant 0 : index
    %c1_69 = arith.constant 1 : index
    %c1_70 = arith.constant 1 : index
    %c0_71 = arith.constant 0 : index
    %41 = vector.load %arg15[%c0_68, %c1_69, %c1_70, %c0_71] : memref<2x10x10x32xf32, #tpu.memory_space<vmem>>, vector<2x8x8x32xf32>
    tpu.vector_store %arg15[%c0_68, %c1_69, %c1_70, %c0_71], %40 {strides = array<i32>} : memref<2x10x10x32xf32, #tpu.memory_space<vmem>>, vector<2x8x8x32xf32>,
    %c0_72 = arith.constant 0 : index
    %c0_73 = arith.constant 0 : index
    %c0_74 = arith.constant 0 : index
    %c0_75 = arith.constant 0 : index
    %42 = vector.load %arg15[%c0_72, %c0_73, %c0_74, %c0_75] : memref<2x10x10x32xf32, #tpu.memory_space<vmem>>, vector<2x8x8x32xf32>
    %43 = vector.shape_cast %42 : vector<2x8x8x32xf32> to vector<128x32xf32>
    %c0_76 = arith.constant 0 : index
    %c0_77 = arith.constant 0 : index
    %c1_78 = arith.constant 1 : index
    %c0_79 = arith.constant 0 : index
    %44 = vector.load %arg15[%c0_76, %c0_77, %c1_78, %c0_79] : memref<2x10x10x32xf32, #tpu.memory_space<vmem>>, vector<2x8x8x32xf32>
    %45 = vector.shape_cast %44 : vector<2x8x8x32xf32> to vector<128x32xf32>
    %c0_80 = arith.constant 0 : index
    %c0_81 = arith.constant 0 : index
    %c2_82 = arith.constant 2 : index
    %c0_83 = arith.constant 0 : index
    %46 = vector.load %arg15[%c0_80, %c0_81, %c2_82, %c0_83] : memref<2x10x10x32xf32, #tpu.memory_space<vmem>>, vector<2x8x8x32xf32>
    %47 = vector.shape_cast %46 : vector<2x8x8x32xf32> to vector<128x32xf32>
    %c0_84 = arith.constant 0 : index
    %c1_85 = arith.constant 1 : index
    %c0_86 = arith.constant 0 : index
    %c0_87 = arith.constant 0 : index
    %48 = vector.load %arg15[%c0_84, %c1_85, %c0_86, %c0_87] : memref<2x10x10x32xf32, #tpu.memory_space<vmem>>, vector<2x8x8x32xf32>
    %49 = vector.shape_cast %48 : vector<2x8x8x32xf32> to vector<128x32xf32>
    %c0_88 = arith.constant 0 : index
    %c1_89 = arith.constant 1 : index
    %c1_90 = arith.constant 1 : index
    %c0_91 = arith.constant 0 : index
    %50 = vector.load %arg15[%c0_88, %c1_89, %c1_90, %c0_91] : memref<2x10x10x32xf32, #tpu.memory_space<vmem>>, vector<2x8x8x32xf32>
    %51 = vector.shape_cast %50 : vector<2x8x8x32xf32> to vector<128x32xf32>
    %c0_92 = arith.constant 0 : index
    %c1_93 = arith.constant 1 : index
    %c2_94 = arith.constant 2 : index
    %c0_95 = arith.constant 0 : index
    %52 = vector.load %arg15[%c0_92, %c1_93, %c2_94, %c0_95] : memref<2x10x10x32xf32, #tpu.memory_space<vmem>>, vector<2x8x8x32xf32>
    %53 = vector.shape_cast %52 : vector<2x8x8x32xf32> to vector<128x32xf32>
    %c0_96 = arith.constant 0 : index
    %c2_97 = arith.constant 2 : index
    %c0_98 = arith.constant 0 : index
    %c0_99 = arith.constant 0 : index
    %54 = vector.load %arg15[%c0_96, %c2_97, %c0_98, %c0_99] : memref<2x10x10x32xf32, #tpu.memory_space<vmem>>, vector<2x8x8x32xf32>
    %55 = vector.shape_cast %54 : vector<2x8x8x32xf32> to vector<128x32xf32>
    %c0_100 = arith.constant 0 : index
    %c2_101 = arith.constant 2 : index
    %c1_102 = arith.constant 1 : index
    %c0_103 = arith.constant 0 : index
    %56 = vector.load %arg15[%c0_100, %c2_101, %c1_102, %c0_103] : memref<2x10x10x32xf32, #tpu.memory_space<vmem>>, vector<2x8x8x32xf32>
    %57 = vector.shape_cast %56 : vector<2x8x8x32xf32> to vector<128x32xf32>
    %c0_104 = arith.constant 0 : index
    %c2_105 = arith.constant 2 : index
    %c2_106 = arith.constant 2 : index
    %c0_107 = arith.constant 0 : index
    %58 = vector.load %arg15[%c0_104, %c2_105, %c2_106, %c0_107] : memref<2x10x10x32xf32, #tpu.memory_space<vmem>>, vector<2x8x8x32xf32>
    %59 = vector.shape_cast %58 : vector<2x8x8x32xf32> to vector<128x32xf32>
    %60 = tpu.concatenate %43, %45, %47, %49, %51, %53, %55, %57, %59 in 1 : vector<128x32xf32>, vector<128x32xf32>, vector<128x32xf32>, vector<128x32xf32>, vector<128x32xf32>, vector<128x32xf32>, vector<128x32xf32>, vector<128x32xf32>, vector<128x32xf32> -> vector<128x288xf32>
    %61 = arith.truncf %60 : vector<128x288xf32> to vector<128x288xbf16>
    %c0_108 = arith.constant 0 : index
    %c0_109 = arith.constant 0 : index
    %62 = vector.load %arg4[%c0_108, %c0_109] : memref<288x64xbf16, #tpu.memory_space<vmem>>, vector<288x64xbf16>
    %cst_110 = arith.constant dense<0.000000e+00> : vector<128x64xf32>
    %63 = tpu.matmul %61, %62, %cst_110 {dimension_numbers = #tpu.dot_dimension_numbers<[1], [0], [0], [1], [0, 0, 1, 1], [], []>} : vector<128x288xbf16>, vector<288x64xbf16>, vector<128x64xf32> -> vector<128x64xf32>
    %c0_111 = arith.constant 0 : index
    %c0_112 = arith.constant 0 : index
    %64 = vector.load %arg5[%c0_111, %c0_112] : memref<1x64xf32, #tpu.memory_space<vmem>>, vector<1x64xf32>
    %65 = vector.broadcast %64 : vector<1x64xf32> to vector<128x64xf32>
    %66 = arith.addf %63, %65 : vector<128x64xf32>
    %cst_113 = arith.constant 0.000000e+00 : f32
    %67 = vector.broadcast %cst_113 : f32 to vector<128x64xf32>
    %68 = arith.maximumf %66, %67 : vector<128x64xf32>
    %c0_114 = arith.constant 0 : index
    %c0_115 = arith.constant 0 : index
    %69 = vector.load %arg16[%c0_114, %c0_115] : memref<128x64xf32, #tpu.memory_space<vmem>>, vector<128x64xf32>
    tpu.vector_store %arg16[%c0_114, %c0_115], %68 {strides = array<i32>} : memref<128x64xf32, #tpu.memory_space<vmem>>, vector<128x64xf32>,
    %c0_116 = arith.constant 0 : index
    %c0_117 = arith.constant 0 : index
    %70 = tpu.strided_load %arg16[%c0_116, %c0_117] {strides = array<i32: 2, 1>} : memref<128x64xf32, #tpu.memory_space<vmem>>, vector<64x64xf32>
    %c1_118 = arith.constant 1 : index
    %c0_119 = arith.constant 0 : index
    %71 = tpu.strided_load %arg16[%c1_118, %c0_119] {strides = array<i32: 2, 1>} : memref<128x64xf32, #tpu.memory_space<vmem>>, vector<64x64xf32>
    %72 = arith.maximumf %70, %71 : vector<64x64xf32>
    %73 = vector.shape_cast %72 : vector<64x64xf32> to vector<2x4x2x4x64xf32>
    %cst_120 = arith.constant dense<0xFF800000> : vector<2x4x4x64xf32>
    %74 = vector.multi_reduction <maximumf>, %73, %cst_120 [2] : vector<2x4x2x4x64xf32> to vector<2x4x4x64xf32>
    %c0_121 = arith.constant 0 : index
    %c1_122 = arith.constant 1 : index
    %c1_123 = arith.constant 1 : index
    %c0_124 = arith.constant 0 : index
    %75 = vector.load %arg17[%c0_121, %c1_122, %c1_123, %c0_124] : memref<2x6x6x64xf32, #tpu.memory_space<vmem>>, vector<2x4x4x64xf32>
    tpu.vector_store %arg17[%c0_121, %c1_122, %c1_123, %c0_124], %74 {strides = array<i32>} : memref<2x6x6x64xf32, #tpu.memory_space<vmem>>, vector<2x4x4x64xf32>,
    %c0_125 = arith.constant 0 : index
    %c0_126 = arith.constant 0 : index
    %c0_127 = arith.constant 0 : index
    %c0_128 = arith.constant 0 : index
    %76 = vector.load %arg17[%c0_125, %c0_126, %c0_127, %c0_128] : memref<2x6x6x64xf32, #tpu.memory_space<vmem>>, vector<2x4x4x64xf32>
    %77 = vector.shape_cast %76 : vector<2x4x4x64xf32> to vector<32x64xf32>
    %c0_129 = arith.constant 0 : index
    %c0_130 = arith.constant 0 : index
    %c1_131 = arith.constant 1 : index
    %c0_132 = arith.constant 0 : index
    %78 = vector.load %arg17[%c0_129, %c0_130, %c1_131, %c0_132] : memref<2x6x6x64xf32, #tpu.memory_space<vmem>>, vector<2x4x4x64xf32>
    %79 = vector.shape_cast %78 : vector<2x4x4x64xf32> to vector<32x64xf32>
    %c0_133 = arith.constant 0 : index
    %c0_134 = arith.constant 0 : index
    %c2_135 = arith.constant 2 : index
    %c0_136 = arith.constant 0 : index
    %80 = vector.load %arg17[%c0_133, %c0_134, %c2_135, %c0_136] : memref<2x6x6x64xf32, #tpu.memory_space<vmem>>, vector<2x4x4x64xf32>
    %81 = vector.shape_cast %80 : vector<2x4x4x64xf32> to vector<32x64xf32>
    %c0_137 = arith.constant 0 : index
    %c1_138 = arith.constant 1 : index
    %c0_139 = arith.constant 0 : index
    %c0_140 = arith.constant 0 : index
    %82 = vector.load %arg17[%c0_137, %c1_138, %c0_139, %c0_140] : memref<2x6x6x64xf32, #tpu.memory_space<vmem>>, vector<2x4x4x64xf32>
    %83 = vector.shape_cast %82 : vector<2x4x4x64xf32> to vector<32x64xf32>
    %c0_141 = arith.constant 0 : index
    %c1_142 = arith.constant 1 : index
    %c1_143 = arith.constant 1 : index
    %c0_144 = arith.constant 0 : index
    %84 = vector.load %arg17[%c0_141, %c1_142, %c1_143, %c0_144] : memref<2x6x6x64xf32, #tpu.memory_space<vmem>>, vector<2x4x4x64xf32>
    %85 = vector.shape_cast %84 : vector<2x4x4x64xf32> to vector<32x64xf32>
    %c0_145 = arith.constant 0 : index
    %c1_146 = arith.constant 1 : index
    %c2_147 = arith.constant 2 : index
    %c0_148 = arith.constant 0 : index
    %86 = vector.load %arg17[%c0_145, %c1_146, %c2_147, %c0_148] : memref<2x6x6x64xf32, #tpu.memory_space<vmem>>, vector<2x4x4x64xf32>
    %87 = vector.shape_cast %86 : vector<2x4x4x64xf32> to vector<32x64xf32>
    %c0_149 = arith.constant 0 : index
    %c2_150 = arith.constant 2 : index
    %c0_151 = arith.constant 0 : index
    %c0_152 = arith.constant 0 : index
    %88 = vector.load %arg17[%c0_149, %c2_150, %c0_151, %c0_152] : memref<2x6x6x64xf32, #tpu.memory_space<vmem>>, vector<2x4x4x64xf32>
    %89 = vector.shape_cast %88 : vector<2x4x4x64xf32> to vector<32x64xf32>
    %c0_153 = arith.constant 0 : index
    %c2_154 = arith.constant 2 : index
    %c1_155 = arith.constant 1 : index
    %c0_156 = arith.constant 0 : index
    %90 = vector.load %arg17[%c0_153, %c2_154, %c1_155, %c0_156] : memref<2x6x6x64xf32, #tpu.memory_space<vmem>>, vector<2x4x4x64xf32>
    %91 = vector.shape_cast %90 : vector<2x4x4x64xf32> to vector<32x64xf32>
    %c0_157 = arith.constant 0 : index
    %c2_158 = arith.constant 2 : index
    %c2_159 = arith.constant 2 : index
    %c0_160 = arith.constant 0 : index
    %92 = vector.load %arg17[%c0_157, %c2_158, %c2_159, %c0_160] : memref<2x6x6x64xf32, #tpu.memory_space<vmem>>, vector<2x4x4x64xf32>
    %93 = vector.shape_cast %92 : vector<2x4x4x64xf32> to vector<32x64xf32>
    %94 = tpu.concatenate %77, %79, %81, %83, %85, %87, %89, %91, %93 in 1 : vector<32x64xf32>, vector<32x64xf32>, vector<32x64xf32>, vector<32x64xf32>, vector<32x64xf32>, vector<32x64xf32>, vector<32x64xf32>, vector<32x64xf32>, vector<32x64xf32> -> vector<32x576xf32>
    %95 = arith.truncf %94 : vector<32x576xf32> to vector<32x576xbf16>
    %c0_161 = arith.constant 0 : index
    %c0_162 = arith.constant 0 : index
    %96 = vector.load %arg6[%c0_161, %c0_162] : memref<576x128xbf16, #tpu.memory_space<vmem>>, vector<576x128xbf16>
    %cst_163 = arith.constant dense<0.000000e+00> : vector<32x128xf32>
    %97 = tpu.matmul %95, %96, %cst_163 {dimension_numbers = #tpu.dot_dimension_numbers<[1], [0], [0], [1], [0, 0, 1, 1], [], []>} : vector<32x576xbf16>, vector<576x128xbf16>, vector<32x128xf32> -> vector<32x128xf32>
    %c0_164 = arith.constant 0 : index
    %c0_165 = arith.constant 0 : index
    %98 = vector.load %arg7[%c0_164, %c0_165] : memref<1x128xf32, #tpu.memory_space<vmem>>, vector<1x128xf32>
    %99 = vector.broadcast %98 : vector<1x128xf32> to vector<32x128xf32>
    %100 = arith.addf %97, %99 : vector<32x128xf32>
    %cst_166 = arith.constant 0.000000e+00 : f32
    %101 = vector.broadcast %cst_166 : f32 to vector<32x128xf32>
    %102 = arith.maximumf %100, %101 : vector<32x128xf32>
    %c0_167 = arith.constant 0 : index
    %c0_168 = arith.constant 0 : index
    %103 = vector.load %arg18[%c0_167, %c0_168] : memref<32x128xf32, #tpu.memory_space<vmem>>, vector<32x128xf32>
    tpu.vector_store %arg18[%c0_167, %c0_168], %102 {strides = array<i32>} : memref<32x128xf32, #tpu.memory_space<vmem>>, vector<32x128xf32>,
    %c0_169 = arith.constant 0 : index
    %c0_170 = arith.constant 0 : index
    %104 = tpu.strided_load %arg18[%c0_169, %c0_170] {strides = array<i32: 2, 1>} : memref<32x128xf32, #tpu.memory_space<vmem>>, vector<16x128xf32>
    %c1_171 = arith.constant 1 : index
    %c0_172 = arith.constant 0 : index
    %105 = tpu.strided_load %arg18[%c1_171, %c0_172] {strides = array<i32: 2, 1>} : memref<32x128xf32, #tpu.memory_space<vmem>>, vector<16x128xf32>
    %106 = arith.maximumf %104, %105 : vector<16x128xf32>
    %107 = vector.shape_cast %106 : vector<16x128xf32> to vector<2x2x2x2x128xf32>
    %cst_173 = arith.constant dense<0xFF800000> : vector<2x2x2x128xf32>
    %108 = vector.multi_reduction <maximumf>, %107, %cst_173 [2] : vector<2x2x2x2x128xf32> to vector<2x2x2x128xf32>
    %109 = vector.shape_cast %108 : vector<2x2x2x128xf32> to vector<2x512xf32>
    %110 = arith.truncf %109 : vector<2x512xf32> to vector<2x512xbf16>
    %c0_174 = arith.constant 0 : index
    %c0_175 = arith.constant 0 : index
    %111 = vector.load %arg8[%c0_174, %c0_175] : memref<512x128xbf16, #tpu.memory_space<vmem>>, vector<512x128xbf16>
    %cst_176 = arith.constant dense<0.000000e+00> : vector<2x128xf32>
    %112 = tpu.matmul %110, %111, %cst_176 {dimension_numbers = #tpu.dot_dimension_numbers<[1], [0], [0], [1], [0, 0, 1, 1], [], []>} : vector<2x512xbf16>, vector<512x128xbf16>, vector<2x128xf32> -> vector<2x128xf32>
    %c0_177 = arith.constant 0 : index
    %c0_178 = arith.constant 0 : index
    %113 = vector.load %arg9[%c0_177, %c0_178] : memref<1x128xf32, #tpu.memory_space<vmem>>, vector<1x128xf32>
    %114 = vector.broadcast %113 : vector<1x128xf32> to vector<2x128xf32>
    %115 = arith.addf %112, %114 : vector<2x128xf32>
    %cst_179 = arith.constant 0.000000e+00 : f32
    %116 = vector.broadcast %cst_179 : f32 to vector<2x128xf32>
    %117 = arith.maximumf %115, %116 : vector<2x128xf32>
    %118 = arith.truncf %117 : vector<2x128xf32> to vector<2x128xbf16>
    %c0_180 = arith.constant 0 : index
    %c0_181 = arith.constant 0 : index
    %119 = vector.load %arg10[%c0_180, %c0_181] : memref<128x2xbf16, #tpu.memory_space<vmem>>, vector<128x2xbf16>
    %cst_182 = arith.constant dense<0.000000e+00> : vector<2x2xf32>
    %120 = tpu.matmul %118, %119, %cst_182 {dimension_numbers = #tpu.dot_dimension_numbers<[1], [0], [0], [1], [0, 0, 1, 1], [], []>} : vector<2x128xbf16>, vector<128x2xbf16>, vector<2x2xf32> -> vector<2x2xf32>
    %c0_183 = arith.constant 0 : index
    %c0_184 = arith.constant 0 : index
    %121 = vector.load %arg11[%c0_183, %c0_184] : memref<1x2xf32, #tpu.memory_space<vmem>>, vector<1x2xf32>
    %122 = vector.broadcast %121 : vector<1x2xf32> to vector<2x2xf32>
    %123 = arith.addf %120, %122 : vector<2x2xf32>
    %c0_185 = arith.constant 0 : index
    %c0_186 = arith.constant 0 : index
    %124 = vector.load %arg12[%c0_185, %c0_186] : memref<2x2xf32, #tpu.memory_space<vmem>>, vector<2x2xf32>
    tpu.vector_store %arg12[%c0_185, %c0_186], %123 {strides = array<i32>} : memref<2x2xf32, #tpu.memory_space<vmem>>, vector<2x2xf32>,
    return
  }
  func.func @transform_0(%arg0: i32) -> (i32, i32, i32, i32) {
    %c0_i32 = arith.constant 0 : i32
    %c0_i32_0 = arith.constant 0 : i32
    %c0_i32_1 = arith.constant 0 : i32
    %c0_i32_2 = arith.constant 0 : i32
    %c0_i32_3 = arith.constant 0 : i32
    return %c0_i32, %c0_i32_0, %c0_i32_1, %c0_i32_2 : i32, i32, i32, i32
  }
  func.func @transform_1(%arg0: i32) -> (i32, i32) {
    %c0_i32 = arith.constant 0 : i32
    %c0_i32_0 = arith.constant 0 : i32
    %c0_i32_1 = arith.constant 0 : i32
    return %c0_i32, %c0_i32_0 : i32, i32
  }
  func.func @transform_2(%arg0: i32) -> (i32, i32) {
    %c0_i32 = arith.constant 0 : i32
    %c0_i32_0 = arith.constant 0 : i32
    %c0_i32_1 = arith.constant 0 : i32
    return %c0_i32, %c0_i32_0 : i32, i32
  }
  func.func @transform_3(%arg0: i32) -> (i32, i32) {
    %c0_i32 = arith.constant 0 : i32
    %c0_i32_0 = arith.constant 0 : i32
    %c0_i32_1 = arith.constant 0 : i32
    return %c0_i32, %c0_i32_0 : i32, i32
  }
  func.func @transform_4(%arg0: i32) -> (i32, i32) {
    %c0_i32 = arith.constant 0 : i32
    %c0_i32_0 = arith.constant 0 : i32
    %c0_i32_1 = arith.constant 0 : i32
    return %c0_i32, %c0_i32_0 : i32, i32
  }
  func.func @transform_5(%arg0: i32) -> (i32, i32) {
    %c0_i32 = arith.constant 0 : i32
    %c0_i32_0 = arith.constant 0 : i32
    %c0_i32_1 = arith.constant 0 : i32
    return %c0_i32, %c0_i32_0 : i32, i32
  }
  func.func @transform_6(%arg0: i32) -> (i32, i32) {
    %c0_i32 = arith.constant 0 : i32
    %c0_i32_0 = arith.constant 0 : i32
    %c0_i32_1 = arith.constant 0 : i32
    return %c0_i32, %c0_i32_0 : i32, i32
  }
  func.func @transform_7(%arg0: i32) -> (i32, i32) {
    %c0_i32 = arith.constant 0 : i32
    %c0_i32_0 = arith.constant 0 : i32
    %c0_i32_1 = arith.constant 0 : i32
    return %c0_i32, %c0_i32_0 : i32, i32
  }
  func.func @transform_8(%arg0: i32) -> (i32, i32) {
    %c0_i32 = arith.constant 0 : i32
    %c0_i32_0 = arith.constant 0 : i32
    %c0_i32_1 = arith.constant 0 : i32
    return %c0_i32, %c0_i32_0 : i32, i32
  }
  func.func @transform_9(%arg0: i32) -> (i32, i32) {
    %c0_i32 = arith.constant 0 : i32
    %c0_i32_0 = arith.constant 0 : i32
    %c0_i32_1 = arith.constant 0 : i32
    return %c0_i32, %c0_i32_0 : i32, i32
  }
  func.func @transform_10(%arg0: i32) -> (i32, i32) {
    %c0_i32 = arith.constant 0 : i32
    %c0_i32_0 = arith.constant 0 : i32
    %c0_i32_1 = arith.constant 0 : i32
    return %c0_i32, %c0_i32_0 : i32, i32
  }
  func.func @transform_11(%arg0: i32) -> (i32, i32) {
    %c0_i32 = arith.constant 0 : i32
    %c0_i32_0 = arith.constant 0 : i32
    %c0_i32_1 = arith.constant 0 : i32
    return %c0_i32, %c0_i32_0 : i32, i32
  }
}

</mosaic_0001>

<llo_original>
// kernel: cnn_backbone_forward.1
$region0: #{cnn_backbone_forward.1}
  #allocation0 [shape = 'u32[]', space=smem, size = 0x4, offset = 0x4, fixed_abs, tag = 'smem constant byte address 0x4 - core index']
  #allocation1 [shape = 'u32[144,128]{1,0:T(1,128)}', space=vmem, size = 0x12000, scoped, tag = 'internal scratch']
  #allocation2 [shape = 'f32[2,18,18,2]{3,2,1,0:T(8,128)}', space=vmem, size = 0x6c000, scoped, tag = 'scratch operand']
  #allocation3 [shape = 'f32[512,32]{1,0:T(8,128)}', space=vmem, size = 0x40000, scoped, tag = 'scratch operand']
  #allocation4 [shape = 'f32[2,10,10,32]{3,2,1,0:T(8,128)}', space=vmem, size = 0x28000, scoped, tag = 'scratch operand']
  #allocation5 [shape = 'f32[128,64]{1,0:T(8,128)}', space=vmem, size = 0x10000, scoped, tag = 'scratch operand']
  #allocation6 [shape = 'f32[2,6,6,64]{3,2,1,0:T(8,128)}', space=vmem, size = 0xc000, scoped, tag = 'scratch operand']
  #allocation7 [shape = 'f32[32,128]{1,0:T(8,128)}', space=vmem, size = 0x4000, scoped, tag = 'scratch operand']
  %s0 = inlined_call_operand.vmem [shape: f32[2,16,16,2], index: 0, kind: input, shape index: {}]
  %s1 = inlined_call_operand.vmem [shape: bf16[18,32], index: 1, kind: input, shape index: {}]
  %s2 = inlined_call_operand.vmem [shape: f32[1,32], index: 2, kind: input, shape index: {}]
  %s3 = inlined_call_operand.vmem [shape: bf16[288,64], index: 3, kind: input, shape index: {}]
  %s4 = inlined_call_operand.vmem [shape: f32[1,64], index: 4, kind: input, shape index: {}]
  %s5 = inlined_call_operand.vmem [shape: bf16[576,128], index: 5, kind: input, shape index: {}]
  %s6 = inlined_call_operand.vmem [shape: f32[1,128], index: 6, kind: input, shape index: {}]
  %s7 = inlined_call_operand.vmem [shape: bf16[512,128], index: 7, kind: input, shape index: {}]
  %s8 = inlined_call_operand.vmem [shape: f32[1,128], index: 8, kind: input, shape index: {}]
  %s9 = inlined_call_operand.vmem [shape: bf16[128,2], index: 9, kind: input, shape index: {}]
  %s10 = inlined_call_operand.vmem [shape: f32[1,2], index: 10, kind: input, shape index: {}]
  %s11 = inlined_call_operand.vmem [shape: f32[2,2], index: 11, kind: output, shape index: {}]
  %s12 = sld [smem:[#allocation0]]
  $region54: #{cnn_backbone_forward.1} parent=0
    _
  %s14 = ssub.s32 1, %s12
  %s15 = scalar_select 0, %s14, %s12
  // Predicated region
  $region2: #{cnn_backbone_forward.1} parent=0 // pred_check
    _
  $region3: #{cnn_backbone_forward.1} parent=0 // pred_check_branch
    %17 = sbr.rel (0) target = $region5
  $region4: #{cnn_backbone_forward.1} parent=0 // pred_region
    _
  $region5: #{cnn_backbone_forward.1} parent=0 // pred_fallthru
    _
  // Predicated region
  $region6: #{cnn_backbone_forward.1} parent=0 // pred_check
    _
  $region7: #{cnn_backbone_forward.1} parent=0 // pred_check_branch
    %19 = sbr.rel (0) target = $region9
  $region8: #{cnn_backbone_forward.1} parent=0 // pred_region
    _
  $region9: #{cnn_backbone_forward.1} parent=0 // pred_fallthru
    _
  // Predicated region
  $region10: #{cnn_backbone_forward.1} parent=0 // pred_check
    _
  $region11: #{cnn_backbone_forward.1} parent=0 // pred_check_branch
    %21 = sbr.rel (0) target = $region13
  $region12: #{cnn_backbone_forward.1} parent=0 // pred_region
    _
  $region13: #{cnn_backbone_forward.1} parent=0 // pred_fallthru
    _
  // Predicated region
  $region14: #{cnn_backbone_forward.1} parent=0 // pred_check
    _
  $region15: #{cnn_backbone_forward.1} parent=0 // pred_check_branch
    %23 = sbr.rel (0) target = $region17
  $region16: #{cnn_backbone_forward.1} parent=0 // pred_region
    _
  $region17: #{cnn_backbone_forward.1} parent=0 // pred_fallthru
    _
  // Predicated region
  $region18: #{cnn_backbone_forward.1} parent=0 // pred_check
    _
  $region19: #{cnn_backbone_forward.1} parent=0 // pred_check_branch
    %25 = sbr.rel (0) target = $region21
  $region20: #{cnn_backbone_forward.1} parent=0 // pred_region
    _
  $region21: #{cnn_backbone_forward.1} parent=0 // pred_fallthru
    _
  // Predicated region
  $region22: #{cnn_backbone_forward.1} parent=0 // pred_check
    _
  $region23: #{cnn_backbone_forward.1} parent=0 // pred_check_branch
    %27 = sbr.rel (0) target = $region25
  $region24: #{cnn_backbone_forward.1} parent=0 // pred_region
    _
  $region25: #{cnn_backbone_forward.1} parent=0 // pred_fallthru
    _
  // Predicated region
  $region26: #{cnn_backbone_forward.1} parent=0 // pred_check
    _
  $region27: #{cnn_backbone_forward.1} parent=0 // pred_check_branch
    %29 = sbr.rel (0) target = $region29
  $region28: #{cnn_backbone_forward.1} parent=0 // pred_region
    _
  $region29: #{cnn_backbone_forward.1} parent=0 // pred_fallthru
    _
  // Predicated region
  $region30: #{cnn_backbone_forward.1} parent=0 // pred_check
    _
  $region31: #{cnn_backbone_forward.1} parent=0 // pred_check_branch
    %31 = sbr.rel (0) target = $region33
  $region32: #{cnn_backbone_forward.1} parent=0 // pred_region
    _
  $region33: #{cnn_backbone_forward.1} parent=0 // pred_fallthru
    _
  // Predicated region
  $region34: #{cnn_backbone_forward.1} parent=0 // pred_check
    _
  $region35: #{cnn_backbone_forward.1} parent=0 // pred_check_branch
    %33 = sbr.rel (0) target = $region37
  $region36: #{cnn_backbone_forward.1} parent=0 // pred_region
    _
  $region37: #{cnn_backbone_forward.1} parent=0 // pred_fallthru
    _
  // Predicated region
  $region38: #{cnn_backbone_forward.1} parent=0 // pred_check
    _
  $region39: #{cnn_backbone_forward.1} parent=0 // pred_check_branch
    %35 = sbr.rel (0) target = $region41
  $region40: #{cnn_backbone_forward.1} parent=0 // pred_region
    _
  $region41: #{cnn_backbone_forward.1} parent=0 // pred_fallthru
    _
  // Predicated region
  $region42: #{cnn_backbone_forward.1} parent=0 // pred_check
    _
  $region43: #{cnn_backbone_forward.1} parent=0 // pred_check_branch
    %37 = sbr.rel (0) target = $region45
  $region44: #{cnn_backbone_forward.1} parent=0 // pred_region
    _
  $region45: #{cnn_backbone_forward.1} parent=0 // pred_fallthru
    _
  %vm39 = vcmask 15360
  %40 = vst.msk [vmem:[#allocation2] sm:$0xff] %vm39, 0.0
  %41 = vst.msk [vmem:[#allocation2 + $0x8] sm:$0xff] %vm39, 0.0
  %vm42 = vcmask 9216
  %43 = vst.msk [vmem:[#allocation2 + $0x10] sm:$0x3] %vm42, 0.0
  %44 = vst.msk [vmem:[#allocation2 + $0x18] sm:$0xff] %vm39, 0.0
  %45 = vst.msk [vmem:[#allocation2 + $0x20] sm:$0xff] %vm39, 0.0
  %46 = vst.msk [vmem:[#allocation2 + $0x28] sm:$0x3] %vm42, 0.0
  %47 = vst.msk [vmem:[#allocation2 + $0x30] sm:$0xff] %vm39, 0.0
  %48 = vst.msk [vmem:[#allocation2 + $0x38] sm:$0xff] %vm39, 0.0
  %49 = vst.msk [vmem:[#allocation2 + $0x40] sm:$0x3] %vm42, 0.0
  %50 = vst.msk [vmem:[#allocation2 + $0x48] sm:$0xff] %vm39, 0.0
  %51 = vst.msk [vmem:[#allocation2 + $0x50] sm:$0xff] %vm39, 0.0
  %52 = vst.msk [vmem:[#allocation2 + $0x58] sm:$0x3] %vm42, 0.0
  %53 = vst.msk [vmem:[#allocation2 + $0x60] sm:$0xff] %vm39, 0.0
  %54 = vst.msk [vmem:[#allocation2 + $0x68] sm:$0xff] %vm39, 0.0
  %55 = vst.msk [vmem:[#allocation2 + $0x70] sm:$0x3] %vm42, 0.0
  %56 = vst.msk [vmem:[#allocation2 + $0x78] sm:$0xff] %vm39, 0.0
  %57 = vst.msk [vmem:[#allocation2 + $0x80] sm:$0xff] %vm39, 0.0
  %58 = vst.msk [vmem:[#allocation2 + $0x88] sm:$0x3] %vm42, 0.0
  %59 = vst.msk [vmem:[#allocation2 + $0x90] sm:$0xff] %vm39, 0.0
  %60 = vst.msk [vmem:[#allocation2 + $0x98] sm:$0xff] %vm39, 0.0
  %61 = vst.msk [vmem:[#allocation2 + $0xa0] sm:$0x3] %vm42, 0.0
  %62 = vst.msk [vmem:[#allocation2 + $0xa8] sm:$0xff] %vm39, 0.0
  %63 = vst.msk [vmem:[#allocation2 + $0xb0] sm:$0xff] %vm39, 0.0
  %64 = vst.msk [vmem:[#allocation2 + $0xb8] sm:$0x3] %vm42, 0.0
  %65 = vst.msk [vmem:[#allocation2 + $0xc0] sm:$0xff] %vm39, 0.0
  %66 = vst.msk [vmem:[#allocation2 + $0xc8] sm:$0xff] %vm39, 0.0
  %67 = vst.msk [vmem:[#allocation2 + $0xd0] sm:$0x3] %vm42, 0.0
  %68 = vst.msk [vmem:[#allocation2 + $0xd8] sm:$0xff] %vm39, 0.0
  %69 = vst.msk [vmem:[#allocation2 + $0xe0] sm:$0xff] %vm39, 0.0
  %70 = vst.msk [vmem:[#allocation2 + $0xe8] sm:$0x3] %vm42, 0.0
  %71 = vst.msk [vmem:[#allocation2 + $0xf0] sm:$0xff] %vm39, 0.0
  %72 = vst.msk [vmem:[#allocation2 + $0xf8] sm:$0xff] %vm39, 0.0
  %73 = vst.msk [vmem:[#allocation2 + $0x100] sm:$0x3] %vm42, 0.0
  %74 = vst.msk [vmem:[#allocation2 + $0x108] sm:$0xff] %vm39, 0.0
  %75 = vst.msk [vmem:[#allocation2 + $0x110] sm:$0xff] %vm39, 0.0
  %76 = vst.msk [vmem:[#allocation2 + $0x118] sm:$0x3] %vm42, 0.0
  %77 = vst.msk [vmem:[#allocation2 + $0x120] sm:$0xff] %vm39, 0.0
  %78 = vst.msk [vmem:[#allocation2 + $0x128] sm:$0xff] %vm39, 0.0
  %79 = vst.msk [vmem:[#allocation2 + $0x130] sm:$0x3] %vm42, 0.0
  %80 = vst.msk [vmem:[#allocation2 + $0x138] sm:$0xff] %vm39, 0.0
  %81 = vst.msk [vmem:[#allocation2 + $0x140] sm:$0xff] %vm39, 0.0
  %82 = vst.msk [vmem:[#allocation2 + $0x148] sm:$0x3] %vm42, 0.0
  %83 = vst.msk [vmem:[#allocation2 + $0x150] sm:$0xff] %vm39, 0.0
  %84 = vst.msk [vmem:[#allocation2 + $0x158] sm:$0xff] %vm39, 0.0
  %85 = vst.msk [vmem:[#allocation2 + $0x160] sm:$0x3] %vm42, 0.0
  %86 = vst.msk [vmem:[#allocation2 + $0x168] sm:$0xff] %vm39, 0.0
  %87 = vst.msk [vmem:[#allocation2 + $0x170] sm:$0xff] %vm39, 0.0
  %88 = vst.msk [vmem:[#allocation2 + $0x178] sm:$0x3] %vm42, 0.0
  %89 = vst.msk [vmem:[#allocation2 + $0x180] sm:$0xff] %vm39, 0.0
  %90 = vst.msk [vmem:[#allocation2 + $0x188] sm:$0xff] %vm39, 0.0
  %91 = vst.msk [vmem:[#allocation2 + $0x190] sm:$0x3] %vm42, 0.0
  %92 = vst.msk [vmem:[#allocation2 + $0x198] sm:$0xff] %vm39, 0.0
  %93 = vst.msk [vmem:[#allocation2 + $0x1a0] sm:$0xff] %vm39, 0.0
  %94 = vst.msk [vmem:[#allocation2 + $0x1a8] sm:$0x3] %vm42, 0.0
  %95 = vst.msk [vmem:[#allocation2 + $0x1b0] sm:$0xff] %vm39, 0.0
  %96 = vst.msk [vmem:[#allocation2 + $0x1b8] sm:$0xff] %vm39, 0.0
  %97 = vst.msk [vmem:[#allocation2 + $0x1c0] sm:$0x3] %vm42, 0.0
  %98 = vst.msk [vmem:[#allocation2 + $0x1c8] sm:$0xff] %vm39, 0.0
  %99 = vst.msk [vmem:[#allocation2 + $0x1d0] sm:$0xff] %vm39, 0.0
  %100 = vst.msk [vmem:[#allocation2 + $0x1d8] sm:$0x3] %vm42, 0.0
  %101 = vst.msk [vmem:[#allocation2 + $0x1e0] sm:$0xff] %vm39, 0.0
  %102 = vst.msk [vmem:[#allocation2 + $0x1e8] sm:$0xff] %vm39, 0.0
  %103 = vst.msk [vmem:[#allocation2 + $0x1f0] sm:$0x3] %vm42, 0.0
  %104 = vst.msk [vmem:[#allocation2 + $0x1f8] sm:$0xff] %vm39, 0.0
  %105 = vst.msk [vmem:[#allocation2 + $0x200] sm:$0xff] %vm39, 0.0
  %106 = vst.msk [vmem:[#allocation2 + $0x208] sm:$0x3] %vm42, 0.0
  %107 = vst.msk [vmem:[#allocation2 + $0x210] sm:$0xff] %vm39, 0.0
  %108 = vst.msk [vmem:[#allocation2 + $0x218] sm:$0xff] %vm39, 0.0
  %109 = vst.msk [vmem:[#allocation2 + $0x220] sm:$0x3] %vm42, 0.0
  %110 = vst.msk [vmem:[#allocation2 + $0x228] sm:$0xff] %vm39, 0.0
  %111 = vst.msk [vmem:[#allocation2 + $0x230] sm:$0xff] %vm39, 0.0
  %112 = vst.msk [vmem:[#allocation2 + $0x238] sm:$0x3] %vm42, 0.0
  %113 = vst.msk [vmem:[#allocation2 + $0x240] sm:$0xff] %vm39, 0.0
  %114 = vst.msk [vmem:[#allocation2 + $0x248] sm:$0xff] %vm39, 0.0
  %115 = vst.msk [vmem:[#allocation2 + $0x250] sm:$0x3] %vm42, 0.0
  %116 = vst.msk [vmem:[#allocation2 + $0x258] sm:$0xff] %vm39, 0.0
  %117 = vst.msk [vmem:[#allocation2 + $0x260] sm:$0xff] %vm39, 0.0
  %118 = vst.msk [vmem:[#allocation2 + $0x268] sm:$0x3] %vm42, 0.0
  %119 = vst.msk [vmem:[#allocation2 + $0x270] sm:$0xff] %vm39, 0.0
  %120 = vst.msk [vmem:[#allocation2 + $0x278] sm:$0xff] %vm39, 0.0
  %121 = vst.msk [vmem:[#allocation2 + $0x280] sm:$0x3] %vm42, 0.0
  %122 = vst.msk [vmem:[#allocation2 + $0x288] sm:$0xff] %vm39, 0.0
  %123 = vst.msk [vmem:[#allocation2 + $0x290] sm:$0xff] %vm39, 0.0
  %124 = vst.msk [vmem:[#allocation2 + $0x298] sm:$0x3] %vm42, 0.0
  %125 = vst.msk [vmem:[#allocation2 + $0x2a0] sm:$0xff] %vm39, 0.0
  %126 = vst.msk [vmem:[#allocation2 + $0x2a8] sm:$0xff] %vm39, 0.0
  %127 = vst.msk [vmem:[#allocation2 + $0x2b0] sm:$0x3] %vm42, 0.0
  %128 = vst.msk [vmem:[#allocation2 + $0x2b8] sm:$0xff] %vm39, 0.0
  %129 = vst.msk [vmem:[#allocation2 + $0x2c0] sm:$0xff] %vm39, 0.0
  %130 = vst.msk [vmem:[#allocation2 + $0x2c8] sm:$0x3] %vm42, 0.0
  %131 = vst.msk [vmem:[#allocation2 + $0x2d0] sm:$0xff] %vm39, 0.0
  %132 = vst.msk [vmem:[#allocation2 + $0x2d8] sm:$0xff] %vm39, 0.0
  %133 = vst.msk [vmem:[#allocation2 + $0x2e0] sm:$0x3] %vm42, 0.0
  %134 = vst.msk [vmem:[#allocation2 + $0x2e8] sm:$0xff] %vm39, 0.0
  %135 = vst.msk [vmem:[#allocation2 + $0x2f0] sm:$0xff] %vm39, 0.0
  %136 = vst.msk [vmem:[#allocation2 + $0x2f8] sm:$0x3] %vm42, 0.0
  %137 = vst.msk [vmem:[#allocation2 + $0x300] sm:$0xff] %vm39, 0.0
  %138 = vst.msk [vmem:[#allocation2 + $0x308] sm:$0xff] %vm39, 0.0
  %139 = vst.msk [vmem:[#allocation2 + $0x310] sm:$0x3] %vm42, 0.0
  %140 = vst.msk [vmem:[#allocation2 + $0x318] sm:$0xff] %vm39, 0.0
  %141 = vst.msk [vmem:[#allocation2 + $0x320] sm:$0xff] %vm39, 0.0
  %142 = vst.msk [vmem:[#allocation2 + $0x328] sm:$0x3] %vm42, 0.0
  %143 = vst.msk [vmem:[#allocation2 + $0x330] sm:$0xff] %vm39, 0.0
  %144 = vst.msk [vmem:[#allocation2 + $0x338] sm:$0xff] %vm39, 0.0
  %145 = vst.msk [vmem:[#allocation2 + $0x340] sm:$0x3] %vm42, 0.0
  %146 = vst.msk [vmem:[#allocation2 + $0x348] sm:$0xff] %vm39, 0.0
  %147 = vst.msk [vmem:[#allocation2 + $0x350] sm:$0xff] %vm39, 0.0
  %148 = vst.msk [vmem:[#allocation2 + $0x358] sm:$0x3] %vm42, 0.0
  %vm149 = vcmask 261120
  %150 = vst.msk [vmem:[#allocation4] sm:$0xff] %vm149, 0.0
  %vm151 = vcmask 254976
  %152 = vst.msk [vmem:[#allocation4 + $0x8] sm:$0x3] %vm151, 0.0
  %153 = vst.msk [vmem:[#allocation4 + $0x10] sm:$0xff] %vm149, 0.0
  %154 = vst.msk [vmem:[#allocation4 + $0x18] sm:$0x3] %vm151, 0.0
  %155 = vst.msk [vmem:[#allocation4 + $0x20] sm:$0xff] %vm149, 0.0
  %156 = vst.msk [vmem:[#allocation4 + $0x28] sm:$0x3] %vm151, 0.0
  %157 = vst.msk [vmem:[#allocation4 + $0x30] sm:$0xff] %vm149, 0.0
  %158 = vst.msk [vmem:[#allocation4 + $0x38] sm:$0x3] %vm151, 0.0
  %159 = vst.msk [vmem:[#allocation4 + $0x40] sm:$0xff] %vm149, 0.0
  %160 = vst.msk [vmem:[#allocation4 + $0x48] sm:$0x3] %vm151, 0.0
  %161 = vst.msk [vmem:[#allocation4 + $0x50] sm:$0xff] %vm149, 0.0
  %162 = vst.msk [vmem:[#allocation4 + $0x58] sm:$0x3] %vm151, 0.0
  %163 = vst.msk [vmem:[#allocation4 + $0x60] sm:$0xff] %vm149, 0.0
  %164 = vst.msk [vmem:[#allocation4 + $0x68] sm:$0x3] %vm151, 0.0
  %165 = vst.msk [vmem:[#allocation4 + $0x70] sm:$0xff] %vm149, 0.0
  %166 = vst.msk [vmem:[#allocation4 + $0x78] sm:$0x3] %vm151, 0.0
  %167 = vst.msk [vmem:[#allocation4 + $0x80] sm:$0xff] %vm149, 0.0
  %168 = vst.msk [vmem:[#allocation4 + $0x88] sm:$0x3] %vm151, 0.0
  %169 = vst.msk [vmem:[#allocation4 + $0x90] sm:$0xff] %vm149, 0.0
  %170 = vst.msk [vmem:[#allocation4 + $0x98] sm:$0x3] %vm151, 0.0
  %171 = vst.msk [vmem:[#allocation4 + $0xa0] sm:$0xff] %vm149, 0.0
  %172 = vst.msk [vmem:[#allocation4 + $0xa8] sm:$0x3] %vm151, 0.0
  %173 = vst.msk [vmem:[#allocation4 + $0xb0] sm:$0xff] %vm149, 0.0
  %174 = vst.msk [vmem:[#allocation4 + $0xb8] sm:$0x3] %vm151, 0.0
  %175 = vst.msk [vmem:[#allocation4 + $0xc0] sm:$0xff] %vm149, 0.0
  %176 = vst.msk [vmem:[#allocation4 + $0xc8] sm:$0x3] %vm151, 0.0
  %177 = vst.msk [vmem:[#allocation4 + $0xd0] sm:$0xff] %vm149, 0.0
  %178 = vst.msk [vmem:[#allocation4 + $0xd8] sm:$0x3] %vm151, 0.0
  %179 = vst.msk [vmem:[#allocation4 + $0xe0] sm:$0xff] %vm149, 0.0
  %180 = vst.msk [vmem:[#allocation4 + $0xe8] sm:$0x3] %vm151, 0.0
  %181 = vst.msk [vmem:[#allocation4 + $0xf0] sm:$0xff] %vm149, 0.0
  %182 = vst.msk [vmem:[#allocation4 + $0xf8] sm:$0x3] %vm151, 0.0
  %183 = vst.msk [vmem:[#allocation4 + $0x100] sm:$0xff] %vm149, 0.0
  %184 = vst.msk [vmem:[#allocation4 + $0x108] sm:$0x3] %vm151, 0.0
  %185 = vst.msk [vmem:[#allocation4 + $0x110] sm:$0xff] %vm149, 0.0
  %186 = vst.msk [vmem:[#allocation4 + $0x118] sm:$0x3] %vm151, 0.0
  %187 = vst.msk [vmem:[#allocation4 + $0x120] sm:$0xff] %vm149, 0.0
  %188 = vst.msk [vmem:[#allocation4 + $0x128] sm:$0x3] %vm151, 0.0
  %189 = vst.msk [vmem:[#allocation4 + $0x130] sm:$0xff] %vm149, 0.0
  %190 = vst.msk [vmem:[#allocation4 + $0x138] sm:$0x3] %vm151, 0.0
  %vm191 = vcmask 521216
  %192 = vst.msk [vmem:[#allocation6] sm:$0x3f] %vm191, 0.0
  %193 = vst.msk [vmem:[#allocation6 + $0x8] sm:$0x3f] %vm191, 0.0
  %194 = vst.msk [vmem:[#allocation6 + $0x10] sm:$0x3f] %vm191, 0.0
  %195 = vst.msk [vmem:[#allocation6 + $0x18] sm:$0x3f] %vm191, 0.0
  %196 = vst.msk [vmem:[#allocation6 + $0x20] sm:$0x3f] %vm191, 0.0
  %197 = vst.msk [vmem:[#allocation6 + $0x28] sm:$0x3f] %vm191, 0.0
  %198 = vst.msk [vmem:[#allocation6 + $0x30] sm:$0x3f] %vm191, 0.0
  %199 = vst.msk [vmem:[#allocation6 + $0x38] sm:$0x3f] %vm191, 0.0
  %200 = vst.msk [vmem:[#allocation6 + $0x40] sm:$0x3f] %vm191, 0.0
  %201 = vst.msk [vmem:[#allocation6 + $0x48] sm:$0x3f] %vm191, 0.0
  %202 = vst.msk [vmem:[#allocation6 + $0x50] sm:$0x3f] %vm191, 0.0
  %203 = vst.msk [vmem:[#allocation6 + $0x58] sm:$0x3f] %vm191, 0.0
  %v204 = vld [vmem:[%s0] sm:$0xff]
  %v205 = vld [vmem:[%s0 + $0x8] sm:$0xff]
  %v206 = vld [vmem:[%s0 + $0x10] sm:$0xff]
  %v207 = vld [vmem:[%s0 + $0x18] sm:$0xff]
  %v208 = vld [vmem:[%s0 + $0x20] sm:$0xff]
  %v209 = vld [vmem:[%s0 + $0x28] sm:$0xff]
  %v210 = vld [vmem:[%s0 + $0x30] sm:$0xff]
  %v211 = vld [vmem:[%s0 + $0x38] sm:$0xff]
  %v212 = vld [vmem:[%s0 + $0x40] sm:$0xff]
  %v213 = vld [vmem:[%s0 + $0x48] sm:$0xff]
  %v214 = vld [vmem:[%s0 + $0x50] sm:$0xff]
  %v215 = vld [vmem:[%s0 + $0x58] sm:$0xff]
  %v216 = vld [vmem:[%s0 + $0x60] sm:$0xff]
  %v217 = vld [vmem:[%s0 + $0x68] sm:$0xff]
  %v218 = vld [vmem:[%s0 + $0x70] sm:$0xff]
  %v219 = vld [vmem:[%s0 + $0x78] sm:$0xff]
  %v220 = vld [vmem:[%s0 + $0x80] sm:$0xff]
  %v221 = vld [vmem:[%s0 + $0x88] sm:$0xff]
  %v222 = vld [vmem:[%s0 + $0x90] sm:$0xff]
  %v223 = vld [vmem:[%s0 + $0x98] sm:$0xff]
  %v224 = vld [vmem:[%s0 + $0xa0] sm:$0xff]
  %v225 = vld [vmem:[%s0 + $0xa8] sm:$0xff]
  %v226 = vld [vmem:[%s0 + $0xb0] sm:$0xff]
  %v227 = vld [vmem:[%s0 + $0xb8] sm:$0xff]
  %v228 = vld [vmem:[%s0 + $0xc0] sm:$0xff]
  %v229 = vld [vmem:[%s0 + $0xc8] sm:$0xff]
  %v230 = vld [vmem:[%s0 + $0xd0] sm:$0xff]
  %v231 = vld [vmem:[%s0 + $0xd8] sm:$0xff]
  %v232 = vld [vmem:[%s0 + $0xe0] sm:$0xff]
  %v233 = vld [vmem:[%s0 + $0xe8] sm:$0xff]
  %v234 = vld [vmem:[%s0 + $0xf0] sm:$0xff]
  %v235 = vld [vmem:[%s0 + $0xf8] sm:$0xff]
  %v236 = vld [vmem:[%s0 + $0x100] sm:$0xff]
  %v237 = vld [vmem:[%s0 + $0x108] sm:$0xff]
  %v238 = vld [vmem:[%s0 + $0x110] sm:$0xff]
  %v239 = vld [vmem:[%s0 + $0x118] sm:$0xff]
  %v240 = vld [vmem:[%s0 + $0x120] sm:$0xff]
  %v241 = vld [vmem:[%s0 + $0x128] sm:$0xff]
  %v242 = vld [vmem:[%s0 + $0x130] sm:$0xff]
  %v243 = vld [vmem:[%s0 + $0x138] sm:$0xff]
  %v244 = vld [vmem:[%s0 + $0x140] sm:$0xff]
  %v245 = vld [vmem:[%s0 + $0x148] sm:$0xff]
  %v246 = vld [vmem:[%s0 + $0x150] sm:$0xff]
  %v247 = vld [vmem:[%s0 + $0x158] sm:$0xff]
  %v248 = vld [vmem:[%s0 + $0x160] sm:$0xff]
  %v249 = vld [vmem:[%s0 + $0x168] sm:$0xff]
  %v250 = vld [vmem:[%s0 + $0x170] sm:$0xff]
  %v251 = vld [vmem:[%s0 + $0x178] sm:$0xff]
  %v252 = vld [vmem:[%s0 + $0x180] sm:$0xff]
  %v253 = vld [vmem:[%s0 + $0x188] sm:$0xff]
  %v254 = vld [vmem:[%s0 + $0x190] sm:$0xff]
  %v255 = vld [vmem:[%s0 + $0x198] sm:$0xff]
  %v256 = vld [vmem:[%s0 + $0x1a0] sm:$0xff]
  %v257 = vld [vmem:[%s0 + $0x1a8] sm:$0xff]
  %v258 = vld [vmem:[%s0 + $0x1b0] sm:$0xff]
  %v259 = vld [vmem:[%s0 + $0x1b8] sm:$0xff]
  %v260 = vld [vmem:[%s0 + $0x1c0] sm:$0xff]
  %v261 = vld [vmem:[%s0 + $0x1c8] sm:$0xff]
  %v262 = vld [vmem:[%s0 + $0x1d0] sm:$0xff]
  %v263 = vld [vmem:[%s0 + $0x1d8] sm:$0xff]
  %v264 = vld [vmem:[%s0 + $0x1e0] sm:$0xff]
  %v265 = vld [vmem:[%s0 + $0x1e8] sm:$0xff]
  %v266 = vld [vmem:[%s0 + $0x1f0] sm:$0xff]
  %v267 = vld [vmem:[%s0 + $0x1f8] sm:$0xff]
  %s268 = scalar_lea.vmem [#allocation2], 24
  %269 = vst.msk [vmem:[%s268 + $0x1] sm:$0xff] %vm39, %v204
  %270 = vst.msk [vmem:[%s268 + $0x9] sm:$0xff] %vm39, %v205
  %271 = vst.msk [vmem:[%s268 + $0x19] sm:$0xff] %vm39, %v206
  %272 = vst.msk [vmem:[%s268 + $0x21] sm:$0xff] %vm39, %v207
  %273 = vst.msk [vmem:[%s268 + $0x31] sm:$0xff] %vm39, %v208
  %274 = vst.msk [vmem:[%s268 + $0x39] sm:$0xff] %vm39, %v209
  %275 = vst.msk [vmem:[%s268 + $0x49] sm:$0xff] %vm39, %v210
  %276 = vst.msk [vmem:[%s268 + $0x51] sm:$0xff] %vm39, %v211
  %277 = vst.msk [vmem:[%s268 + $0x61] sm:$0xff] %vm39, %v212
  %278 = vst.msk [vmem:[%s268 + $0x69] sm:$0xff] %vm39, %v213
  %279 = vst.msk [vmem:[%s268 + $0x79] sm:$0xff] %vm39, %v214
  %280 = vst.msk [vmem:[%s268 + $0x81] sm:$0xff] %vm39, %v215
  %281 = vst.msk [vmem:[%s268 + $0x91] sm:$0xff] %vm39, %v216
  %282 = vst.msk [vmem:[%s268 + $0x99] sm:$0xff] %vm39, %v217
  %283 = vst.msk [vmem:[%s268 + $0xa9] sm:$0xff] %vm39, %v218
  %284 = vst.msk [vmem:[%s268 + $0xb1] sm:$0xff] %vm39, %v219
  %285 = vst.msk [vmem:[%s268 + $0xc1] sm:$0xff] %vm39, %v220
  %286 = vst.msk [vmem:[%s268 + $0xc9] sm:$0xff] %vm39, %v221
  %287 = vst.msk [vmem:[%s268 + $0xd9] sm:$0xff] %vm39, %v222
  %288 = vst.msk [vmem:[%s268 + $0xe1] sm:$0xff] %vm39, %v223
  %289 = vst.msk [vmem:[%s268 + $0xf1] sm:$0xff] %vm39, %v224
  %290 = vst.msk [vmem:[%s268 + $0xf9] sm:$0xff] %vm39, %v225
  %291 = vst.msk [vmem:[%s268 + $0x109] sm:$0xff] %vm39, %v226
  %292 = vst.msk [vmem:[%s268 + $0x111] sm:$0xff] %vm39, %v227
  %293 = vst.msk [vmem:[%s268 + $0x121] sm:$0xff] %vm39, %v228
  %294 = vst.msk [vmem:[%s268 + $0x129] sm:$0xff] %vm39, %v229
  %295 = vst.msk [vmem:[%s268 + $0x139] sm:$0xff] %vm39, %v230
  %296 = vst.msk [vmem:[%s268 + $0x141] sm:$0xff] %vm39, %v231
  %297 = vst.msk [vmem:[%s268 + $0x151] sm:$0xff] %vm39, %v232
  %298 = vst.msk [vmem:[%s268 + $0x159] sm:$0xff] %vm39, %v233
  %299 = vst.msk [vmem:[%s268 + $0x169] sm:$0xff] %vm39, %v234
  %300 = vst.msk [vmem:[%s268 + $0x171] sm:$0xff] %vm39, %v235
  %301 = vst.msk [vmem:[%s268 + $0x1b1] sm:$0xff] %vm39, %v236
  %302 = vst.msk [vmem:[%s268 + $0x1b9] sm:$0xff] %vm39, %v237
  %303 = vst.msk [vmem:[%s268 + $0x1c9] sm:$0xff] %vm39, %v238
  %304 = vst.msk [vmem:[%s268 + $0x1d1] sm:$0xff] %vm39, %v239
  %305 = vst.msk [vmem:[%s268 + $0x1e1] sm:$0xff] %vm39, %v240
  %306 = vst.msk [vmem:[%s268 + $0x1e9] sm:$0xff] %vm39, %v241
  %307 = vst.msk [vmem:[%s268 + $0x1f9] sm:$0xff] %vm39, %v242
  %308 = vst.msk [vmem:[%s268 + $0x201] sm:$0xff] %vm39, %v243
  %309 = vst.msk [vmem:[%s268 + $0x211] sm:$0xff] %vm39, %v244
  %310 = vst.msk [vmem:[%s268 + $0x219] sm:$0xff] %vm39, %v245
  %311 = vst.msk [vmem:[%s268 + $0x229] sm:$0xff] %vm39, %v246
  %312 = vst.msk [vmem:[%s268 + $0x231] sm:$0xff] %vm39, %v247
  %313 = vst.msk [vmem:[%s268 + $0x241] sm:$0xff] %vm39, %v248
  %314 = vst.msk [vmem:[%s268 + $0x249] sm:$0xff] %vm39, %v249
  %315 = vst.msk [vmem:[%s268 + $0x259] sm:$0xff] %vm39, %v250
  %316 = vst.msk [vmem:[%s268 + $0x261] sm:$0xff] %vm39, %v251
  %317 = vst.msk [vmem:[%s268 + $0x271] sm:$0xff] %vm39, %v252
  %318 = vst.msk [vmem:[%s268 + $0x279] sm:$0xff] %vm39, %v253
  %319 = vst.msk [vmem:[%s268 + $0x289] sm:$0xff] %vm39, %v254
  %320 = vst.msk [vmem:[%s268 + $0x291] sm:$0xff] %vm39, %v255
  %321 = vst.msk [vmem:[%s268 + $0x2a1] sm:$0xff] %vm39, %v256
  %322 = vst.msk [vmem:[%s268 + $0x2a9] sm:$0xff] %vm39, %v257
  %323 = vst.msk [vmem:[%s268 + $0x2b9] sm:$0xff] %vm39, %v258
  %324 = vst.msk [vmem:[%s268 + $0x2c1] sm:$0xff] %vm39, %v259
  %325 = vst.msk [vmem:[%s268 + $0x2d1] sm:$0xff] %vm39, %v260
  %326 = vst.msk [vmem:[%s268 + $0x2d9] sm:$0xff] %vm39, %v261
  %327 = vst.msk [vmem:[%s268 + $0x2e9] sm:$0xff] %vm39, %v262
  %328 = vst.msk [vmem:[%s268 + $0x2f1] sm:$0xff] %vm39, %v263
  %329 = vst.msk [vmem:[%s268 + $0x301] sm:$0xff] %vm39, %v264
  %330 = vst.msk [vmem:[%s268 + $0x309] sm:$0xff] %vm39, %v265
  %331 = vst.msk [vmem:[%s268 + $0x319] sm:$0xff] %vm39, %v266
  %332 = vst.msk [vmem:[%s268 + $0x321] sm:$0xff] %vm39, %v267
  %v333 = vld [vmem:[#allocation2] sm:$0xff]
  %v334 = vld [vmem:[#allocation2 + $0x8] sm:$0xff]
  %v335 = vld [vmem:[#allocation2 + $0x18] sm:$0xff]
  %v336 = vld [vmem:[#allocation2 + $0x20] sm:$0xff]
  %v337 = vld [vmem:[#allocation2 + $0x30] sm:$0xff]
  %v338 = vld [vmem:[#allocation2 + $0x38] sm:$0xff]
  %v339 = vld [vmem:[#allocation2 + $0x48] sm:$0xff]
  %v340 = vld [vmem:[#allocation2 + $0x50] sm:$0xff]
  %v341 = vld [vmem:[#allocation2 + $0x60] sm:$0xff]
  %v342 = vld [vmem:[#allocation2 + $0x68] sm:$0xff]
  %v343 = vld [vmem:[#allocation2 + $0x78] sm:$0xff]
  %v344 = vld [vmem:[#allocation2 + $0x80] sm:$0xff]
  %v345 = vld [vmem:[#allocation2 + $0x90] sm:$0xff]
  %v346 = vld [vmem:[#allocation2 + $0x98] sm:$0xff]
  %v347 = vld [vmem:[#allocation2 + $0xa8] sm:$0xff]
  %v348 = vld [vmem:[#allocation2 + $0xb0] sm:$0xff]
  %v349 = vld [vmem:[#allocation2 + $0xc0] sm:$0xff]
  %v350 = vld [vmem:[#allocation2 + $0xc8] sm:$0xff]
  %v351 = vld [vmem:[#allocation2 + $0xd8] sm:$0xff]
  %v352 = vld [vmem:[#allocation2 + $0xe0] sm:$0xff]
  %v353 = vld [vmem:[#allocation2 + $0xf0] sm:$0xff]
  %v354 = vld [vmem:[#allocation2 + $0xf8] sm:$0xff]
  %v355 = vld [vmem:[#allocation2 + $0x108] sm:$0xff]
  %v356 = vld [vmem:[#allocation2 + $0x110] sm:$0xff]
  %v357 = vld [vmem:[#allocation2 + $0x120] sm:$0xff]
  %v358 = vld [vmem:[#allocation2 + $0x128] sm:$0xff]
  %v359 = vld [vmem:[#allocation2 + $0x138] sm:$0xff]
  %v360 = vld [vmem:[#allocation2 + $0x140] sm:$0xff]
  %v361 = vld [vmem:[#allocation2 + $0x150] sm:$0xff]
  %v362 = vld [vmem:[#allocation2 + $0x158] sm:$0xff]
  %v363 = vld [vmem:[#allocation2 + $0x168] sm:$0xff]
  %v364 = vld [vmem:[#allocation2 + $0x170] sm:$0xff]
  %v365 = vld [vmem:[#allocation2 + $0x1b0] sm:$0xff]
  %v366 = vld [vmem:[#allocation2 + $0x1b8] sm:$0xff]
  %v367 = vld [vmem:[#allocation2 + $0x1c8] sm:$0xff]
  %v368 = vld [vmem:[#allocation2 + $0x1d0] sm:$0xff]
  %v369 = vld [vmem:[#allocation2 + $0x1e0] sm:$0xff]
  %v370 = vld [vmem:[#allocation2 + $0x1e8] sm:$0xff]
  %v371 = vld [vmem:[#allocation2 + $0x1f8] sm:$0xff]
  %v372 = vld [vmem:[#allocation2 + $0x200] sm:$0xff]
  %v373 = vld [vmem:[#allocation2 + $0x210] sm:$0xff]
  %v374 = vld [vmem:[#allocation2 + $0x218] sm:$0xff]
  %v375 = vld [vmem:[#allocation2 + $0x228] sm:$0xff]
  %v376 = vld [vmem:[#allocation2 + $0x230] sm:$0xff]
  %v377 = vld [vmem:[#allocation2 + $0x240] sm:$0xff]
  %v378 = vld [vmem:[#allocation2 + $0x248] sm:$0xff]
  %v379 = vld [vmem:[#allocation2 + $0x258] sm:$0xff]
  %v380 = vld [vmem:[#allocation2 + $0x260] sm:$0xff]
  %v381 = vld [vmem:[#allocation2 + $0x270] sm:$0xff]
  %v382 = vld [vmem:[#allocation2 + $0x278] sm:$0xff]
  %v383 = vld [vmem:[#allocation2 + $0x288] sm:$0xff]
  %v384 = vld [vmem:[#allocation2 + $0x290] sm:$0xff]
  %v385 = vld [vmem:[#allocation2 + $0x2a0] sm:$0xff]
  %v386 = vld [vmem:[#allocation2 + $0x2a8] sm:$0xff]
  %v387 = vld [vmem:[#allocation2 + $0x2b8] sm:$0xff]
  %v388 = vld [vmem:[#allocation2 + $0x2c0] sm:$0xff]
  %v389 = vld [vmem:[#allocation2 + $0x2d0] sm:$0xff]
  %v390 = vld [vmem:[#allocation2 + $0x2d8] sm:$0xff]
  %v391 = vld [vmem:[#allocation2 + $0x2e8] sm:$0xff]
  %v392 = vld [vmem:[#allocation2 + $0x2f0] sm:$0xff]
  %v393 = vld [vmem:[#allocation2 + $0x300] sm:$0xff]
  %v394 = vld [vmem:[#allocation2 + $0x308] sm:$0xff]
  %v395 = vld [vmem:[#allocation2 + $0x318] sm:$0xff]
  %v396 = vld [vmem:[#allocation2 + $0x320] sm:$0xff]
  %v397 = vld [vmem:[#allocation2 + $0x1] sm:$0xff]
  %v398 = vld [vmem:[#allocation2 + $0x9] sm:$0xff]
  %v399 = vld [vmem:[#allocation2 + $0x19] sm:$0xff]
  %v400 = vld [vmem:[#allocation2 + $0x21] sm:$0xff]
  %v401 = vld [vmem:[#allocation2 + $0x31] sm:$0xff]
  %v402 = vld [vmem:[#allocation2 + $0x39] sm:$0xff]
  %v403 = vld [vmem:[#allocation2 + $0x49] sm:$0xff]
  %v404 = vld [vmem:[#allocation2 + $0x51] sm:$0xff]
  %v405 = vld [vmem:[#allocation2 + $0x61] sm:$0xff]
  %v406 = vld [vmem:[#allocation2 + $0x69] sm:$0xff]
  %v407 = vld [vmem:[#allocation2 + $0x79] sm:$0xff]
  %v408 = vld [vmem:[#allocation2 + $0x81] sm:$0xff]
  %v409 = vld [vmem:[#allocation2 + $0x91] sm:$0xff]
  %v410 = vld [vmem:[#allocation2 + $0x99] sm:$0xff]
  %v411 = vld [vmem:[#allocation2 + $0xa9] sm:$0xff]
  %v412 = vld [vmem:[#allocation2 + $0xb1] sm:$0xff]
  %v413 = vld [vmem:[#allocation2 + $0xc1] sm:$0xff]
  %v414 = vld [vmem:[#allocation2 + $0xc9] sm:$0xff]
  %v415 = vld [vmem:[#allocation2 + $0xd9] sm:$0xff]
  %v416 = vld [vmem:[#allocation2 + $0xe1] sm:$0xff]
  %v417 = vld [vmem:[#allocation2 + $0xf1] sm:$0xff]
  %v418 = vld [vmem:[#allocation2 + $0xf9] sm:$0xff]
  %v419 = vld [vmem:[#allocation2 + $0x109] sm:$0xff]
  %v420 = vld [vmem:[#allocation2 + $0x111] sm:$0xff]
  %v421 = vld [vmem:[#allocation2 + $0x121] sm:$0xff]
  %v422 = vld [vmem:[#allocation2 + $0x129] sm:$0xff]
  %v423 = vld [vmem:[#allocation2 + $0x139] sm:$0xff]
  %v424 = vld [vmem:[#allocation2 + $0x141] sm:$0xff]
  %v425 = vld [vmem:[#allocation2 + $0x151] sm:$0xff]
  %v426 = vld [vmem:[#allocation2 + $0x159] sm:$0xff]
  %v427 = vld [vmem:[#allocation2 + $0x169] sm:$0xff]
  %v428 = vld [vmem:[#allocation2 + $0x171] sm:$0xff]
  %v429 = vld [vmem:[#allocation2 + $0x1b1] sm:$0xff]
  %v430 = vld [vmem:[#allocation2 + $0x1b9] sm:$0xff]
  %v431 = vld [vmem:[#allocation2 + $0x1c9] sm:$0xff]
  %v432 = vld [vmem:[#allocation2 + $0x1d1] sm:$0xff]
  %v433 = vld [vmem:[#allocation2 + $0x1e1] sm:$0xff]
  %v434 = vld [vmem:[#allocation2 + $0x1e9] sm:$0xff]
  %v435 = vld [vmem:[#allocation2 + $0x1f9] sm:$0xff]
  %v436 = vld [vmem:[#allocation2 + $0x201] sm:$0xff]
  %v437 = vld [vmem:[#allocation2 + $0x211] sm:$0xff]
  %v438 = vld [vmem:[#allocation2 + $0x219] sm:$0xff]
  %v439 = vld [vmem:[#allocation2 + $0x229] sm:$0xff]
  %v440 = vld [vmem:[#allocation2 + $0x231] sm:$0xff]
  %v441 = vld [vmem:[#allocation2 + $0x241] sm:$0xff]
  %v442 = vld [vmem:[#allocation2 + $0x249] sm:$0xff]
  %v443 = vld [vmem:[#allocation2 + $0x259] sm:$0xff]
  %v444 = vld [vmem:[#allocation2 + $0x261] sm:$0xff]
  %v445 = vld [vmem:[#allocation2 + $0x271] sm:$0xff]
  %v446 = vld [vmem:[#allocation2 + $0x279] sm:$0xff]
  %v447 = vld [vmem:[#allocation2 + $0x289] sm:$0xff]
  %v448 = vld [vmem:[#allocation2 + $0x291] sm:$0xff]
  %v449 = vld [vmem:[#allocation2 + $0x2a1] sm:$0xff]
  %v450 = vld [vmem:[#allocation2 + $0x2a9] sm:$0xff]
  %v451 = vld [vmem:[#allocation2 + $0x2b9] sm:$0xff]
  %v452 = vld [vmem:[#allocation2 + $0x2c1] sm:$0xff]
  %v453 = vld [vmem:[#allocation2 + $0x2d1] sm:$0xff]
  %v454 = vld [vmem:[#allocation2 + $0x2d9] sm:$0xff]
  %v455 = vld [vmem:[#allocation2 + $0x2e9] sm:$0xff]
  %v456 = vld [vmem:[#allocation2 + $0x2f1] sm:$0xff]
  %v457 = vld [vmem:[#allocation2 + $0x301] sm:$0xff]
  %v458 = vld [vmem:[#allocation2 + $0x309] sm:$0xff]
  %v459 = vld [vmem:[#allocation2 + $0x319] sm:$0xff]
  %v460 = vld [vmem:[#allocation2 + $0x321] sm:$0xff]
  %v461 = vld [vmem:[#allocation2 + $0x2] sm:$0xff]
  %v462 = vld [vmem:[#allocation2 + $0xa] sm:$0xff]
  %v463 = vld [vmem:[#allocation2 + $0x1a] sm:$0xff]
  %v464 = vld [vmem:[#allocation2 + $0x22] sm:$0xff]
  %v465 = vld [vmem:[#allocation2 + $0x32] sm:$0xff]
  %v466 = vld [vmem:[#allocation2 + $0x3a] sm:$0xff]
  %v467 = vld [vmem:[#allocation2 + $0x4a] sm:$0xff]
  %v468 = vld [vmem:[#allocation2 + $0x52] sm:$0xff]
  %v469 = vld [vmem:[#allocation2 + $0x62] sm:$0xff]
  %v470 = vld [vmem:[#allocation2 + $0x6a] sm:$0xff]
  %v471 = vld [vmem:[#allocation2 + $0x7a] sm:$0xff]
  %v472 = vld [vmem:[#allocation2 + $0x82] sm:$0xff]
  %v473 = vld [vmem:[#allocation2 + $0x92] sm:$0xff]
  %v474 = vld [vmem:[#allocation2 + $0x9a] sm:$0xff]
  %v475 = vld [vmem:[#allocation2 + $0xaa] sm:$0xff]
  %v476 = vld [vmem:[#allocation2 + $0xb2] sm:$0xff]
  %v477 = vld [vmem:[#allocation2 + $0xc2] sm:$0xff]
  %v478 = vld [vmem:[#allocation2 + $0xca] sm:$0xff]
  %v479 = vld [vmem:[#allocation2 + $0xda] sm:$0xff]
  %v480 = vld [vmem:[#allocation2 + $0xe2] sm:$0xff]
  %v481 = vld [vmem:[#allocation2 + $0xf2] sm:$0xff]
  %v482 = vld [vmem:[#allocation2 + $0xfa] sm:$0xff]
  %v483 = vld [vmem:[#allocation2 + $0x10a] sm:$0xff]
  %v484 = vld [vmem:[#allocation2 + $0x112] sm:$0xff]
  %v485 = vld [vmem:[#allocation2 + $0x122] sm:$0xff]
  %v486 = vld [vmem:[#allocation2 + $0x12a] sm:$0xff]
  %v487 = vld [vmem:[#allocation2 + $0x13a] sm:$0xff]
  %v488 = vld [vmem:[#allocation2 + $0x142] sm:$0xff]
  %v489 = vld [vmem:[#allocation2 + $0x152] sm:$0xff]
  %v490 = vld [vmem:[#allocation2 + $0x15a] sm:$0xff]
  %v491 = vld [vmem:[#allocation2 + $0x16a] sm:$0xff]
  %v492 = vld [vmem:[#allocation2 + $0x172] sm:$0xff]
  %v493 = vld [vmem:[#allocation2 + $0x1b2] sm:$0xff]
  %v494 = vld [vmem:[#allocation2 + $0x1ba] sm:$0xff]
  %v495 = vld [vmem:[#allocation2 + $0x1ca] sm:$0xff]
  %v496 = vld [vmem:[#allocation2 + $0x1d2] sm:$0xff]
  %v497 = vld [vmem:[#allocation2 + $0x1e2] sm:$0xff]
  %v498 = vld [vmem:[#allocation2 + $0x1ea] sm:$0xff]
  %v499 = vld [vmem:[#allocation2 + $0x1fa] sm:$0xff]
  %v500 = vld [vmem:[#allocation2 + $0x202] sm:$0xff]
  %v501 = vld [vmem:[#allocation2 + $0x212] sm:$0xff]
  %v502 = vld [vmem:[#allocation2 + $0x21a] sm:$0xff]
  %v503 = vld [vmem:[#allocation2 + $0x22a] sm:$0xff]
  %v504 = vld [vmem:[#allocation2 + $0x232] sm:$0xff]
  %v505 = vld [vmem:[#allocation2 + $0x242] sm:$0xff]
  %v506 = vld [vmem:[#allocation2 + $0x24a] sm:$0xff]
  %v507 = vld [vmem:[#allocation2 + $0x25a] sm:$0xff]
  %v508 = vld [vmem:[#allocation2 + $0x262] sm:$0xff]
  %v509 = vld [vmem:[#allocation2 + $0x272] sm:$0xff]
  %v510 = vld [vmem:[#allocation2 + $0x27a] sm:$0xff]
  %v511 = vld [vmem:[#allocation2 + $0x28a] sm:$0xff]
  %v512 = vld [vmem:[#allocation2 + $0x292] sm:$0xff]
  %v513 = vld [vmem:[#allocation2 + $0x2a2] sm:$0xff]
  %v514 = vld [vmem:[#allocation2 + $0x2aa] sm:$0xff]
  %v515 = vld [vmem:[#allocation2 + $0x2ba] sm:$0xff]
  %v516 = vld [vmem:[#allocation2 + $0x2c2] sm:$0xff]
  %v517 = vld [vmem:[#allocation2 + $0x2d2] sm:$0xff]
  %v518 = vld [vmem:[#allocation2 + $0x2da] sm:$0xff]
  %v519 = vld [vmem:[#allocation2 + $0x2ea] sm:$0xff]
  %v520 = vld [vmem:[#allocation2 + $0x2f2] sm:$0xff]
  %v521 = vld [vmem:[#allocation2 + $0x302] sm:$0xff]
  %v522 = vld [vmem:[#allocation2 + $0x30a] sm:$0xff]
  %v523 = vld [vmem:[#allocation2 + $0x31a] sm:$0xff]
  %v524 = vld [vmem:[#allocation2 + $0x322] sm:$0xff]
  %v525 = vld [vmem:[%s268] sm:$0xff]
  %v526 = vld [vmem:[%s268 + $0x8] sm:$0xff]
  %v527 = vld [vmem:[%s268 + $0x18] sm:$0xff]
  %v528 = vld [vmem:[%s268 + $0x20] sm:$0xff]
  %v529 = vld [vmem:[%s268 + $0x30] sm:$0xff]
  %v530 = vld [vmem:[%s268 + $0x38] sm:$0xff]
  %v531 = vld [vmem:[%s268 + $0x48] sm:$0xff]
  %v532 = vld [vmem:[%s268 + $0x50] sm:$0xff]
  %v533 = vld [vmem:[%s268 + $0x60] sm:$0xff]
  %v534 = vld [vmem:[%s268 + $0x68] sm:$0xff]
  %v535 = vld [vmem:[%s268 + $0x78] sm:$0xff]
  %v536 = vld [vmem:[%s268 + $0x80] sm:$0xff]
  %v537 = vld [vmem:[%s268 + $0x90] sm:$0xff]
  %v538 = vld [vmem:[%s268 + $0x98] sm:$0xff]
  %v539 = vld [vmem:[%s268 + $0xa8] sm:$0xff]
  %v540 = vld [vmem:[%s268 + $0xb0] sm:$0xff]
  %v541 = vld [vmem:[%s268 + $0xc0] sm:$0xff]
  %v542 = vld [vmem:[%s268 + $0xc8] sm:$0xff]
  %v543 = vld [vmem:[%s268 + $0xd8] sm:$0xff]
  %v544 = vld [vmem:[%s268 + $0xe0] sm:$0xff]
  %v545 = vld [vmem:[%s268 + $0xf0] sm:$0xff]
  %v546 = vld [vmem:[%s268 + $0xf8] sm:$0xff]
  %v547 = vld [vmem:[%s268 + $0x108] sm:$0xff]
  %v548 = vld [vmem:[%s268 + $0x110] sm:$0xff]
  %v549 = vld [vmem:[%s268 + $0x120] sm:$0xff]
  %v550 = vld [vmem:[%s268 + $0x128] sm:$0xff]
  %v551 = vld [vmem:[%s268 + $0x138] sm:$0xff]
  %v552 = vld [vmem:[%s268 + $0x140] sm:$0xff]
  %v553 = vld [vmem:[%s268 + $0x150] sm:$0xff]
  %v554 = vld [vmem:[%s268 + $0x158] sm:$0xff]
  %v555 = vld [vmem:[%s268 + $0x168] sm:$0xff]
  %v556 = vld [vmem:[%s268 + $0x170] sm:$0xff]
  %v557 = vld [vmem:[%s268 + $0x1b0] sm:$0xff]
  %v558 = vld [vmem:[%s268 + $0x1b8] sm:$0xff]
  %v559 = vld [vmem:[%s268 + $0x1c8] sm:$0xff]
  %v560 = vld [vmem:[%s268 + $0x1d0] sm:$0xff]
  %v561 = vld [vmem:[%s268 + $0x1e0] sm:$0xff]
  %v562 = vld [vmem:[%s268 + $0x1e8] sm:$0xff]
  %v563 = vld [vmem:[%s268 + $0x1f8] sm:$0xff]
  %v564 = vld [vmem:[%s268 + $0x200] sm:$0xff]
  %v565 = vld [vmem:[%s268 + $0x210] sm:$0xff]
  %v566 = vld [vmem:[%s268 + $0x218] sm:$0xff]
  %v567 = vld [vmem:[%s268 + $0x228] sm:$0xff]
  %v568 = vld [vmem:[%s268 + $0x230] sm:$0xff]
  %v569 = vld [vmem:[%s268 + $0x240] sm:$0xff]
  %v570 = vld [vmem:[%s268 + $0x248] sm:$0xff]
  %v571 = vld [vmem:[%s268 + $0x258] sm:$0xff]
  %v572 = vld [vmem:[%s268 + $0x260] sm:$0xff]
  %v573 = vld [vmem:[%s268 + $0x270] sm:$0xff]
  %v574 = vld [vmem:[%s268 + $0x278] sm:$0xff]
  %v575 = vld [vmem:[%s268 + $0x288] sm:$0xff]
  %v576 = vld [vmem:[%s268 + $0x290] sm:$0xff]
  %v577 = vld [vmem:[%s268 + $0x2a0] sm:$0xff]
  %v578 = vld [vmem:[%s268 + $0x2a8] sm:$0xff]
  %v579 = vld [vmem:[%s268 + $0x2b8] sm:$0xff]
  %v580 = vld [vmem:[%s268 + $0x2c0] sm:$0xff]
  %v581 = vld [vmem:[%s268 + $0x2d0] sm:$0xff]
  %v582 = vld [vmem:[%s268 + $0x2d8] sm:$0xff]
  %v583 = vld [vmem:[%s268 + $0x2e8] sm:$0xff]
  %v584 = vld [vmem:[%s268 + $0x2f0] sm:$0xff]
  %v585 = vld [vmem:[%s268 + $0x300] sm:$0xff]
  %v586 = vld [vmem:[%s268 + $0x308] sm:$0xff]
  %v587 = vld [vmem:[%s268 + $0x318] sm:$0xff]
  %v588 = vld [vmem:[%s268 + $0x320] sm:$0xff]
  %v589 = vld [vmem:[%s268 + $0x1] sm:$0xff]
  %v590 = vld [vmem:[%s268 + $0x9] sm:$0xff]
  %v591 = vld [vmem:[%s268 + $0x19] sm:$0xff]
  %v592 = vld [vmem:[%s268 + $0x21] sm:$0xff]
  %v593 = vld [vmem:[%s268 + $0x31] sm:$0xff]
  %v594 = vld [vmem:[%s268 + $0x39] sm:$0xff]
  %v595 = vld [vmem:[%s268 + $0x49] sm:$0xff]
  %v596 = vld [vmem:[%s268 + $0x51] sm:$0xff]
  %v597 = vld [vmem:[%s268 + $0x61] sm:$0xff]
  %v598 = vld [vmem:[%s268 + $0x69] sm:$0xff]
  %v599 = vld [vmem:[%s268 + $0x79] sm:$0xff]
  %v600 = vld [vmem:[%s268 + $0x81] sm:$0xff]
  %v601 = vld [vmem:[%s268 + $0x91] sm:$0xff]
  %v602 = vld [vmem:[%s268 + $0x99] sm:$0xff]
  %v603 = vld [vmem:[%s268 + $0xa9] sm:$0xff]
  %v604 = vld [vmem:[%s268 + $0xb1] sm:$0xff]
  %v605 = vld [vmem:[%s268 + $0xc1] sm:$0xff]
  %v606 = vld [vmem:[%s268 + $0xc9] sm:$0xff]
  %v607 = vld [vmem:[%s268 + $0xd9] sm:$0xff]
  %v608 = vld [vmem:[%s268 + $0xe1] sm:$0xff]
  %v609 = vld [vmem:[%s268 + $0xf1] sm:$0xff]
  %v610 = vld [vmem:[%s268 + $0xf9] sm:$0xff]
  %v611 = vld [vmem:[%s268 + $0x109] sm:$0xff]
  %v612 = vld [vmem:[%s268 + $0x111] sm:$0xff]
  %v613 = vld [vmem:[%s268 + $0x121] sm:$0xff]
  %v614 = vld [vmem:[%s268 + $0x129] sm:$0xff]
  %v615 = vld [vmem:[%s268 + $0x139] sm:$0xff]
  %v616 = vld [vmem:[%s268 + $0x141] sm:$0xff]
  %v617 = vld [vmem:[%s268 + $0x151] sm:$0xff]
  %v618 = vld [vmem:[%s268 + $0x159] sm:$0xff]
  %v619 = vld [vmem:[%s268 + $0x169] sm:$0xff]
  %v620 = vld [vmem:[%s268 + $0x171] sm:$0xff]
  %v621 = vld [vmem:[%s268 + $0x1b1] sm:$0xff]
  %v622 = vld [vmem:[%s268 + $0x1b9] sm:$0xff]
  %v623 = vld [vmem:[%s268 + $0x1c9] sm:$0xff]
  %v624 = vld [vmem:[%s268 + $0x1d1] sm:$0xff]
  %v625 = vld [vmem:[%s268 + $0x1e1] sm:$0xff]
  %v626 = vld [vmem:[%s268 + $0x1e9] sm:$0xff]
  %v627 = vld [vmem:[%s268 + $0x1f9] sm:$0xff]
  %v628 = vld [vmem:[%s268 + $0x201] sm:$0xff]
  %v629 = vld [vmem:[%s268 + $0x211] sm:$0xff]
  %v630 = vld [vmem:[%s268 + $0x219] sm:$0xff]
  %v631 = vld [vmem:[%s268 + $0x229] sm:$0xff]
  %v632 = vld [vmem:[%s268 + $0x231] sm:$0xff]
  %v633 = vld [vmem:[%s268 + $0x241] sm:$0xff]
  %v634 = vld [vmem:[%s268 + $0x249] sm:$0xff]
  %v635 = vld [vmem:[%s268 + $0x259] sm:$0xff]
  %v636 = vld [vmem:[%s268 + $0x261] sm:$0xff]
  %v637 = vld [vmem:[%s268 + $0x271] sm:$0xff]
  %v638 = vld [vmem:[%s268 + $0x279] sm:$0xff]
  %v639 = vld [vmem:[%s268 + $0x289] sm:$0xff]
  %v640 = vld [vmem:[%s268 + $0x291] sm:$0xff]
  %v641 = vld [vmem:[%s268 + $0x2a1] sm:$0xff]
  %v642 = vld [vmem:[%s268 + $0x2a9] sm:$0xff]
  %v643 = vld [vmem:[%s268 + $0x2b9] sm:$0xff]
  %v644 = vld [vmem:[%s268 + $0x2c1] sm:$0xff]
  %v645 = vld [vmem:[%s268 + $0x2d1] sm:$0xff]
  %v646 = vld [vmem:[%s268 + $0x2d9] sm:$0xff]
  %v647 = vld [vmem:[%s268 + $0x2e9] sm:$0xff]
  %v648 = vld [vmem:[%s268 + $0x2f1] sm:$0xff]
  %v649 = vld [vmem:[%s268 + $0x301] sm:$0xff]
  %v650 = vld [vmem:[%s268 + $0x309] sm:$0xff]
  %v651 = vld [vmem:[%s268 + $0x319] sm:$0xff]
  %v652 = vld [vmem:[%s268 + $0x321] sm:$0xff]
  %v653 = vld [vmem:[%s268 + $0x2] sm:$0xff]
  %v654 = vld [vmem:[%s268 + $0xa] sm:$0xff]
  %v655 = vld [vmem:[%s268 + $0x1a] sm:$0xff]
  %v656 = vld [vmem:[%s268 + $0x22] sm:$0xff]
  %v657 = vld [vmem:[%s268 + $0x32] sm:$0xff]
  %v658 = vld [vmem:[%s268 + $0x3a] sm:$0xff]
  %v659 = vld [vmem:[%s268 + $0x4a] sm:$0xff]
  %v660 = vld [vmem:[%s268 + $0x52] sm:$0xff]
  %v661 = vld [vmem:[%s268 + $0x62] sm:$0xff]
  %v662 = vld [vmem:[%s268 + $0x6a] sm:$0xff]
  %v663 = vld [vmem:[%s268 + $0x7a] sm:$0xff]
  %v664 = vld [vmem:[%s268 + $0x82] sm:$0xff]
  %v665 = vld [vmem:[%s268 + $0x92] sm:$0xff]
  %v666 = vld [vmem:[%s268 + $0x9a] sm:$0xff]
  %v667 = vld [vmem:[%s268 + $0xaa] sm:$0xff]
  %v668 = vld [vmem:[%s268 + $0xb2] sm:$0xff]
  %v669 = vld [vmem:[%s268 + $0xc2] sm:$0xff]
  %v670 = vld [vmem:[%s268 + $0xca] sm:$0xff]
  %v671 = vld [vmem:[%s268 + $0xda] sm:$0xff]
  %v672 = vld [vmem:[%s268 + $0xe2] sm:$0xff]
  %v673 = vld [vmem:[%s268 + $0xf2] sm:$0xff]
  %v674 = vld [vmem:[%s268 + $0xfa] sm:$0xff]
  %v675 = vld [vmem:[%s268 + $0x10a] sm:$0xff]
  %v676 = vld [vmem:[%s268 + $0x112] sm:$0xff]
  %v677 = vld [vmem:[%s268 + $0x122] sm:$0xff]
  %v678 = vld [vmem:[%s268 + $0x12a] sm:$0xff]
  %v679 = vld [vmem:[%s268 + $0x13a] sm:$0xff]
  %v680 = vld [vmem:[%s268 + $0x142] sm:$0xff]
  %v681 = vld [vmem:[%s268 + $0x152] sm:$0xff]
  %v682 = vld [vmem:[%s268 + $0x15a] sm:$0xff]
  %v683 = vld [vmem:[%s268 + $0x16a] sm:$0xff]
  %v684 = vld [vmem:[%s268 + $0x172] sm:$0xff]
  %v685 = vld [vmem:[%s268 + $0x1b2] sm:$0xff]
  %v686 = vld [vmem:[%s268 + $0x1ba] sm:$0xff]
  %v687 = vld [vmem:[%s268 + $0x1ca] sm:$0xff]
  %v688 = vld [vmem:[%s268 + $0x1d2] sm:$0xff]
  %v689 = vld [vmem:[%s268 + $0x1e2] sm:$0xff]
  %v690 = vld [vmem:[%s268 + $0x1ea] sm:$0xff]
  %v691 = vld [vmem:[%s268 + $0x1fa] sm:$0xff]
  %v692 = vld [vmem:[%s268 + $0x202] sm:$0xff]
  %v693 = vld [vmem:[%s268 + $0x212] sm:$0xff]
  %v694 = vld [vmem:[%s268 + $0x21a] sm:$0xff]
  %v695 = vld [vmem:[%s268 + $0x22a] sm:$0xff]
  %v696 = vld [vmem:[%s268 + $0x232] sm:$0xff]
  %v697 = vld [vmem:[%s268 + $0x242] sm:$0xff]
  %v698 = vld [vmem:[%s268 + $0x24a] sm:$0xff]
  %v699 = vld [vmem:[%s268 + $0x25a] sm:$0xff]
  %v700 = vld [vmem:[%s268 + $0x262] sm:$0xff]
  %v701 = vld [vmem:[%s268 + $0x272] sm:$0xff]
  %v702 = vld [vmem:[%s268 + $0x27a] sm:$0xff]
  %v703 = vld [vmem:[%s268 + $0x28a] sm:$0xff]
  %v704 = vld [vmem:[%s268 + $0x292] sm:$0xff]
  %v705 = vld [vmem:[%s268 + $0x2a2] sm:$0xff]
  %v706 = vld [vmem:[%s268 + $0x2aa] sm:$0xff]
  %v707 = vld [vmem:[%s268 + $0x2ba] sm:$0xff]
  %v708 = vld [vmem:[%s268 + $0x2c2] sm:$0xff]
  %v709 = vld [vmem:[%s268 + $0x2d2] sm:$0xff]
  %v710 = vld [vmem:[%s268 + $0x2da] sm:$0xff]
  %v711 = vld [vmem:[%s268 + $0x2ea] sm:$0xff]
  %v712 = vld [vmem:[%s268 + $0x2f2] sm:$0xff]
  %v713 = vld [vmem:[%s268 + $0x302] sm:$0xff]
  %v714 = vld [vmem:[%s268 + $0x30a] sm:$0xff]
  %v715 = vld [vmem:[%s268 + $0x31a] sm:$0xff]
  %v716 = vld [vmem:[%s268 + $0x322] sm:$0xff]
  %s717 = scalar_lea.vmem [#allocation2], 48
  %v718 = vld [vmem:[%s717] sm:$0xff]
  %v719 = vld [vmem:[%s717 + $0x8] sm:$0xff]
  %v720 = vld [vmem:[%s717 + $0x18] sm:$0xff]
  %v721 = vld [vmem:[%s717 + $0x20] sm:$0xff]
  %v722 = vld [vmem:[%s717 + $0x30] sm:$0xff]
  %v723 = vld [vmem:[%s717 + $0x38] sm:$0xff]
  %v724 = vld [vmem:[%s717 + $0x48] sm:$0xff]
  %v725 = vld [vmem:[%s717 + $0x50] sm:$0xff]
  %v726 = vld [vmem:[%s717 + $0x60] sm:$0xff]
  %v727 = vld [vmem:[%s717 + $0x68] sm:$0xff]
  %v728 = vld [vmem:[%s717 + $0x78] sm:$0xff]
  %v729 = vld [vmem:[%s717 + $0x80] sm:$0xff]
  %v730 = vld [vmem:[%s717 + $0x90] sm:$0xff]
  %v731 = vld [vmem:[%s717 + $0x98] sm:$0xff]
  %v732 = vld [vmem:[%s717 + $0xa8] sm:$0xff]
  %v733 = vld [vmem:[%s717 + $0xb0] sm:$0xff]
  %v734 = vld [vmem:[%s717 + $0xc0] sm:$0xff]
  %v735 = vld [vmem:[%s717 + $0xc8] sm:$0xff]
  %v736 = vld [vmem:[%s717 + $0xd8] sm:$0xff]
  %v737 = vld [vmem:[%s717 + $0xe0] sm:$0xff]
  %v738 = vld [vmem:[%s717 + $0xf0] sm:$0xff]
  %v739 = vld [vmem:[%s717 + $0xf8] sm:$0xff]
  %v740 = vld [vmem:[%s717 + $0x108] sm:$0xff]
  %v741 = vld [vmem:[%s717 + $0x110] sm:$0xff]
  %v742 = vld [vmem:[%s717 + $0x120] sm:$0xff]
  %v743 = vld [vmem:[%s717 + $0x128] sm:$0xff]
  %v744 = vld [vmem:[%s717 + $0x138] sm:$0xff]
  %v745 = vld [vmem:[%s717 + $0x140] sm:$0xff]
  %v746 = vld [vmem:[%s717 + $0x150] sm:$0xff]
  %v747 = vld [vmem:[%s717 + $0x158] sm:$0xff]
  %v748 = vld [vmem:[%s717 + $0x168] sm:$0xff]
  %v749 = vld [vmem:[%s717 + $0x170] sm:$0xff]
  %v750 = vld [vmem:[%s717 + $0x1b0] sm:$0xff]
  %v751 = vld [vmem:[%s717 + $0x1b8] sm:$0xff]
  %v752 = vld [vmem:[%s717 + $0x1c8] sm:$0xff]
  %v753 = vld [vmem:[%s717 + $0x1d0] sm:$0xff]
  %v754 = vld [vmem:[%s717 + $0x1e0] sm:$0xff]
  %v755 = vld [vmem:[%s717 + $0x1e8] sm:$0xff]
  %v756 = vld [vmem:[%s717 + $0x1f8] sm:$0xff]
  %v757 = vld [vmem:[%s717 + $0x200] sm:$0xff]
  %v758 = vld [vmem:[%s717 + $0x210] sm:$0xff]
  %v759 = vld [vmem:[%s717 + $0x218] sm:$0xff]
  %v760 = vld [vmem:[%s717 + $0x228] sm:$0xff]
  %v761 = vld [vmem:[%s717 + $0x230] sm:$0xff]
  %v762 = vld [vmem:[%s717 + $0x240] sm:$0xff]
  %v763 = vld [vmem:[%s717 + $0x248] sm:$0xff]
  %v764 = vld [vmem:[%s717 + $0x258] sm:$0xff]
  %v765 = vld [vmem:[%s717 + $0x260] sm:$0xff]
  %v766 = vld [vmem:[%s717 + $0x270] sm:$0xff]
  %v767 = vld [vmem:[%s717 + $0x278] sm:$0xff]
  %v768 = vld [vmem:[%s717 + $0x288] sm:$0xff]
  %v769 = vld [vmem:[%s717 + $0x290] sm:$0xff]
  %v770 = vld [vmem:[%s717 + $0x2a0] sm:$0xff]
  %v771 = vld [vmem:[%s717 + $0x2a8] sm:$0xff]
  %v772 = vld [vmem:[%s717 + $0x2b8] sm:$0xff]
  %v773 = vld [vmem:[%s717 + $0x2c0] sm:$0xff]
  %v774 = vld [vmem:[%s717 + $0x2d0] sm:$0xff]
  %v775 = vld [vmem:[%s717 + $0x2d8] sm:$0xff]
  %v776 = vld [vmem:[%s717 + $0x2e8] sm:$0xff]
  %v777 = vld [vmem:[%s717 + $0x2f0] sm:$0xff]
  %v778 = vld [vmem:[%s717 + $0x300] sm:$0xff]
  %v779 = vld [vmem:[%s717 + $0x308] sm:$0xff]
  %v780 = vld [vmem:[%s717 + $0x318] sm:$0xff]
  %v781 = vld [vmem:[%s717 + $0x320] sm:$0xff]
  %v782 = vld [vmem:[%s717 + $0x1] sm:$0xff]
  %v783 = vld [vmem:[%s717 + $0x9] sm:$0xff]
  %v784 = vld [vmem:[%s717 + $0x19] sm:$0xff]
  %v785 = vld [vmem:[%s717 + $0x21] sm:$0xff]
  %v786 = vld [vmem:[%s717 + $0x31] sm:$0xff]
  %v787 = vld [vmem:[%s717 + $0x39] sm:$0xff]
  %v788 = vld [vmem:[%s717 + $0x49] sm:$0xff]
  %v789 = vld [vmem:[%s717 + $0x51] sm:$0xff]
  %v790 = vld [vmem:[%s717 + $0x61] sm:$0xff]
  %v791 = vld [vmem:[%s717 + $0x69] sm:$0xff]
  %v792 = vld [vmem:[%s717 + $0x79] sm:$0xff]
  %v793 = vld [vmem:[%s717 + $0x81] sm:$0xff]
  %v794 = vld [vmem:[%s717 + $0x91] sm:$0xff]
  %v795 = vld [vmem:[%s717 + $0x99] sm:$0xff]
  %v796 = vld [vmem:[%s717 + $0xa9] sm:$0xff]
  %v797 = vld [vmem:[%s717 + $0xb1] sm:$0xff]
  %v798 = vld [vmem:[%s717 + $0xc1] sm:$0xff]
  %v799 = vld [vmem:[%s717 + $0xc9] sm:$0xff]
  %v800 = vld [vmem:[%s717 + $0xd9] sm:$0xff]
  %v801 = vld [vmem:[%s717 + $0xe1] sm:$0xff]
  %v802 = vld [vmem:[%s717 + $0xf1] sm:$0xff]
  %v803 = vld [vmem:[%s717 + $0xf9] sm:$0xff]
  %v804 = vld [vmem:[%s717 + $0x109] sm:$0xff]
  %v805 = vld [vmem:[%s717 + $0x111] sm:$0xff]
  %v806 = vld [vmem:[%s717 + $0x121] sm:$0xff]
  %v807 = vld [vmem:[%s717 + $0x129] sm:$0xff]
  %v808 = vld [vmem:[%s717 + $0x139] sm:$0xff]
  %v809 = vld [vmem:[%s717 + $0x141] sm:$0xff]
  %v810 = vld [vmem:[%s717 + $0x151] sm:$0xff]
  %v811 = vld [vmem:[%s717 + $0x159] sm:$0xff]
  %v812 = vld [vmem:[%s717 + $0x169] sm:$0xff]
  %v813 = vld [vmem:[%s717 + $0x171] sm:$0xff]
  %v814 = vld [vmem:[%s717 + $0x1b1] sm:$0xff]
  %v815 = vld [vmem:[%s717 + $0x1b9] sm:$0xff]
  %v816 = vld [vmem:[%s717 + $0x1c9] sm:$0xff]
  %v817 = vld [vmem:[%s717 + $0x1d1] sm:$0xff]
  %v818 = vld [vmem:[%s717 + $0x1e1] sm:$0xff]
  %v819 = vld [vmem:[%s717 + $0x1e9] sm:$0xff]
  %v820 = vld [vmem:[%s717 + $0x1f9] sm:$0xff]
  %v821 = vld [vmem:[%s717 + $0x201] sm:$0xff]
  %v822 = vld [vmem:[%s717 + $0x211] sm:$0xff]
  %v823 = vld [vmem:[%s717 + $0x219] sm:$0xff]
  %v824 = vld [vmem:[%s717 + $0x229] sm:$0xff]
  %v825 = vld [vmem:[%s717 + $0x231] sm:$0xff]
  %v826 = vld [vmem:[%s717 + $0x241] sm:$0xff]
  %v827 = vld [vmem:[%s717 + $0x249] sm:$0xff]
  %v828 = vld [vmem:[%s717 + $0x259] sm:$0xff]
  %v829 = vld [vmem:[%s717 + $0x261] sm:$0xff]
  %v830 = vld [vmem:[%s717 + $0x271] sm:$0xff]
  %v831 = vld [vmem:[%s717 + $0x279] sm:$0xff]
  %v832 = vld [vmem:[%s717 + $0x289] sm:$0xff]
  %v833 = vld [vmem:[%s717 + $0x291] sm:$0xff]
  %v834 = vld [vmem:[%s717 + $0x2a1] sm:$0xff]
  %v835 = vld [vmem:[%s717 + $0x2a9] sm:$0xff]
  %v836 = vld [vmem:[%s717 + $0x2b9] sm:$0xff]
  %v837 = vld [vmem:[%s717 + $0x2c1] sm:$0xff]
  %v838 = vld [vmem:[%s717 + $0x2d1] sm:$0xff]
  %v839 = vld [vmem:[%s717 + $0x2d9] sm:$0xff]
  %v840 = vld [vmem:[%s717 + $0x2e9] sm:$0xff]
  %v841 = vld [vmem:[%s717 + $0x2f1] sm:$0xff]
  %v842 = vld [vmem:[%s717 + $0x301] sm:$0xff]
  %v843 = vld [vmem:[%s717 + $0x309] sm:$0xff]
  %v844 = vld [vmem:[%s717 + $0x319] sm:$0xff]
  %v845 = vld [vmem:[%s717 + $0x321] sm:$0xff]
  %v846 = vld [vmem:[%s717 + $0x2] sm:$0xff]
  %v847 = vld [vmem:[%s717 + $0xa] sm:$0xff]
  %v848 = vld [vmem:[%s717 + $0x1a] sm:$0xff]
  %v849 = vld [vmem:[%s717 + $0x22] sm:$0xff]
  %v850 = vld [vmem:[%s717 + $0x32] sm:$0xff]
  %v851 = vld [vmem:[%s717 + $0x3a] sm:$0xff]
  %v852 = vld [vmem:[%s717 + $0x4a] sm:$0xff]
  %v853 = vld [vmem:[%s717 + $0x52] sm:$0xff]
  %v854 = vld [vmem:[%s717 + $0x62] sm:$0xff]
  %v855 = vld [vmem:[%s717 + $0x6a] sm:$0xff]
  %v856 = vld [vmem:[%s717 + $0x7a] sm:$0xff]
  %v857 = vld [vmem:[%s717 + $0x82] sm:$0xff]
  %v858 = vld [vmem:[%s717 + $0x92] sm:$0xff]
  %v859 = vld [vmem:[%s717 + $0x9a] sm:$0xff]
  %v860 = vld [vmem:[%s717 + $0xaa] sm:$0xff]
  %v861 = vld [vmem:[%s717 + $0xb2] sm:$0xff]
  %v862 = vld [vmem:[%s717 + $0xc2] sm:$0xff]
  %v863 = vld [vmem:[%s717 + $0xca] sm:$0xff]
  %v864 = vld [vmem:[%s717 + $0xda] sm:$0xff]
  %v865 = vld [vmem:[%s717 + $0xe2] sm:$0xff]
  %v866 = vld [vmem:[%s717 + $0xf2] sm:$0xff]
  %v867 = vld [vmem:[%s717 + $0xfa] sm:$0xff]
  %v868 = vld [vmem:[%s717 + $0x10a] sm:$0xff]
  %v869 = vld [vmem:[%s717 + $0x112] sm:$0xff]
  %v870 = vld [vmem:[%s717 + $0x122] sm:$0xff]
  %v871 = vld [vmem:[%s717 + $0x12a] sm:$0xff]
  %v872 = vld [vmem:[%s717 + $0x13a] sm:$0xff]
  %v873 = vld [vmem:[%s717 + $0x142] sm:$0xff]
  %v874 = vld [vmem:[%s717 + $0x152] sm:$0xff]
  %v875 = vld [vmem:[%s717 + $0x15a] sm:$0xff]
  %v876 = vld [vmem:[%s717 + $0x16a] sm:$0xff]
  %v877 = vld [vmem:[%s717 + $0x172] sm:$0xff]
  %v878 = vld [vmem:[%s717 + $0x1b2] sm:$0xff]
  %v879 = vld [vmem:[%s717 + $0x1ba] sm:$0xff]
  %v880 = vld [vmem:[%s717 + $0x1ca] sm:$0xff]
  %v881 = vld [vmem:[%s717 + $0x1d2] sm:$0xff]
  %v882 = vld [vmem:[%s717 + $0x1e2] sm:$0xff]
  %v883 = vld [vmem:[%s717 + $0x1ea] sm:$0xff]
  %v884 = vld [vmem:[%s717 + $0x1fa] sm:$0xff]
  %v885 = vld [vmem:[%s717 + $0x202] sm:$0xff]
  %v886 = vld [vmem:[%s717 + $0x212] sm:$0xff]
  %v887 = vld [vmem:[%s717 + $0x21a] sm:$0xff]
  %v888 = vld [vmem:[%s717 + $0x22a] sm:$0xff]
  %v889 = vld [vmem:[%s717 + $0x232] sm:$0xff]
  %v890 = vld [vmem:[%s717 + $0x242] sm:$0xff]
  %v891 = vld [vmem:[%s717 + $0x24a] sm:$0xff]
  %v892 = vld [vmem:[%s717 + $0x25a] sm:$0xff]
  %v893 = vld [vmem:[%s717 + $0x262] sm:$0xff]
  %v894 = vld [vmem:[%s717 + $0x272] sm:$0xff]
  %v895 = vld [vmem:[%s717 + $0x27a] sm:$0xff]
  %v896 = vld [vmem:[%s717 + $0x28a] sm:$0xff]
  %v897 = vld [vmem:[%s717 + $0x292] sm:$0xff]
  %v898 = vld [vmem:[%s717 + $0x2a2] sm:$0xff]
  %v899 = vld [vmem:[%s717 + $0x2aa] sm:$0xff]
  %v900 = vld [vmem:[%s717 + $0x2ba] sm:$0xff]
  %v901 = vld [vmem:[%s717 + $0x2c2] sm:$0xff]
  %v902 = vld [vmem:[%s717 + $0x2d2] sm:$0xff]
  %v903 = vld [vmem:[%s717 + $0x2da] sm:$0xff]
  %v904 = vld [vmem:[%s717 + $0x2ea] sm:$0xff]
  %v905 = vld [vmem:[%s717 + $0x2f2] sm:$0xff]
  %v906 = vld [vmem:[%s717 + $0x302] sm:$0xff]
  %v907 = vld [vmem:[%s717 + $0x30a] sm:$0xff]
  %v908 = vld [vmem:[%s717 + $0x31a] sm:$0xff]
  %v909 = vld [vmem:[%s717 + $0x322] sm:$0xff]
  %974 = vrot.lane.b32.xlu0 %v397, 2
  %v975 = vpop.permute.xlu0 %974
  %976 = vrot.lane.b32.xlu0 %v398, 2
  %v977 = vpop.permute.xlu0 %976
  %978 = vrot.lane.b32.xlu0 %v399, 2
  %v979 = vpop.permute.xlu0 %978
  %980 = vrot.lane.b32.xlu0 %v400, 2
  %v981 = vpop.permute.xlu0 %980
  %982 = vrot.lane.b32.xlu0 %v401, 2
  %v983 = vpop.permute.xlu0 %982
  %984 = vrot.lane.b32.xlu0 %v402, 2
  %v985 = vpop.permute.xlu0 %984
  %986 = vrot.lane.b32.xlu0 %v403, 2
  %v987 = vpop.permute.xlu0 %986
  %988 = vrot.lane.b32.xlu0 %v404, 2
  %v989 = vpop.permute.xlu0 %988
  %990 = vrot.lane.b32.xlu0 %v405, 2
  %v991 = vpop.permute.xlu0 %990
  %992 = vrot.lane.b32.xlu0 %v406, 2
  %v993 = vpop.permute.xlu0 %992
  %994 = vrot.lane.b32.xlu0 %v407, 2
  %v995 = vpop.permute.xlu0 %994
  %996 = vrot.lane.b32.xlu0 %v408, 2
  %v997 = vpop.permute.xlu0 %996
  %998 = vrot.lane.b32.xlu0 %v409, 2
  %v999 = vpop.permute.xlu0 %998
  %1000 = vrot.lane.b32.xlu0 %v410, 2
  %v1001 = vpop.permute.xlu0 %1000
  %1002 = vrot.lane.b32.xlu0 %v411, 2
  %v1003 = vpop.permute.xlu0 %1002
  %1004 = vrot.lane.b32.xlu0 %v412, 2
  %v1005 = vpop.permute.xlu0 %1004
  %1006 = vrot.lane.b32.xlu0 %v413, 2
  %v1007 = vpop.permute.xlu0 %1006
  %1008 = vrot.lane.b32.xlu0 %v414, 2
  %v1009 = vpop.permute.xlu0 %1008
  %1010 = vrot.lane.b32.xlu0 %v415, 2
  %v1011 = vpop.permute.xlu0 %1010
  %1012 = vrot.lane.b32.xlu0 %v416, 2
  %v1013 = vpop.permute.xlu0 %1012
  %1014 = vrot.lane.b32.xlu0 %v417, 2
  %v1015 = vpop.permute.xlu0 %1014
  %1016 = vrot.lane.b32.xlu0 %v418, 2
  %v1017 = vpop.permute.xlu0 %1016
  %1018 = vrot.lane.b32.xlu0 %v419, 2
  %v1019 = vpop.permute.xlu0 %1018
  %1020 = vrot.lane.b32.xlu0 %v420, 2
  %v1021 = vpop.permute.xlu0 %1020
  %1022 = vrot.lane.b32.xlu0 %v421, 2
  %v1023 = vpop.permute.xlu0 %1022
  %1024 = vrot.lane.b32.xlu0 %v422, 2
  %v1025 = vpop.permute.xlu0 %1024
  %1026 = vrot.lane.b32.xlu0 %v423, 2
  %v1027 = vpop.permute.xlu0 %1026
  %1028 = vrot.lane.b32.xlu0 %v424, 2
  %v1029 = vpop.permute.xlu0 %1028
  %1030 = vrot.lane.b32.xlu0 %v425, 2
  %v1031 = vpop.permute.xlu0 %1030
  %1032 = vrot.lane.b32.xlu0 %v426, 2
  %v1033 = vpop.permute.xlu0 %1032
  %1034 = vrot.lane.b32.xlu0 %v427, 2
  %v1035 = vpop.permute.xlu0 %1034
  %1036 = vrot.lane.b32.xlu0 %v428, 2
  %v1037 = vpop.permute.xlu0 %1036
  %1038 = vrot.lane.b32.xlu0 %v429, 2
  %v1039 = vpop.permute.xlu0 %1038
  %1040 = vrot.lane.b32.xlu0 %v430, 2
  %v1041 = vpop.permute.xlu0 %1040
  %1042 = vrot.lane.b32.xlu0 %v431, 2
  %v1043 = vpop.permute.xlu0 %1042
  %1044 = vrot.lane.b32.xlu0 %v432, 2
  %v1045 = vpop.permute.xlu0 %1044
  %1046 = vrot.lane.b32.xlu0 %v433, 2
  %v1047 = vpop.permute.xlu0 %1046
  %1048 = vrot.lane.b32.xlu0 %v434, 2
  %v1049 = vpop.permute.xlu0 %1048
  %1050 = vrot.lane.b32.xlu0 %v435, 2
  %v1051 = vpop.permute.xlu0 %1050
  %1052 = vrot.lane.b32.xlu0 %v436, 2
  %v1053 = vpop.permute.xlu0 %1052
  %1054 = vrot.lane.b32.xlu0 %v437, 2
  %v1055 = vpop.permute.xlu0 %1054
  %1056 = vrot.lane.b32.xlu0 %v438, 2
  %v1057 = vpop.permute.xlu0 %1056
  %1058 = vrot.lane.b32.xlu0 %v439, 2
  %v1059 = vpop.permute.xlu0 %1058
  %1060 = vrot.lane.b32.xlu0 %v440, 2
  %v1061 = vpop.permute.xlu0 %1060
  %1062 = vrot.lane.b32.xlu0 %v441, 2
  %v1063 = vpop.permute.xlu0 %1062
  %1064 = vrot.lane.b32.xlu0 %v442, 2
  %v1065 = vpop.permute.xlu0 %1064
  %1066 = vrot.lane.b32.xlu0 %v443, 2
  %v1067 = vpop.permute.xlu0 %1066
  %1068 = vrot.lane.b32.xlu0 %v444, 2
  %v1069 = vpop.permute.xlu0 %1068
  %1070 = vrot.lane.b32.xlu0 %v445, 2
  %v1071 = vpop.permute.xlu0 %1070
  %1072 = vrot.lane.b32.xlu0 %v446, 2
  %v1073 = vpop.permute.xlu0 %1072
  %1074 = vrot.lane.b32.xlu0 %v447, 2
  %v1075 = vpop.permute.xlu0 %1074
  %1076 = vrot.lane.b32.xlu0 %v448, 2
  %v1077 = vpop.permute.xlu0 %1076
  %1078 = vrot.lane.b32.xlu0 %v449, 2
  %v1079 = vpop.permute.xlu0 %1078
  %1080 = vrot.lane.b32.xlu0 %v450, 2
  %v1081 = vpop.permute.xlu0 %1080
  %1082 = vrot.lane.b32.xlu0 %v451, 2
  %v1083 = vpop.permute.xlu0 %1082
  %1084 = vrot.lane.b32.xlu0 %v452, 2
  %v1085 = vpop.permute.xlu0 %1084
  %1086 = vrot.lane.b32.xlu0 %v453, 2
  %v1087 = vpop.permute.xlu0 %1086
  %1088 = vrot.lane.b32.xlu0 %v454, 2
  %v1089 = vpop.permute.xlu0 %1088
  %1090 = vrot.lane.b32.xlu0 %v455, 2
  %v1091 = vpop.permute.xlu0 %1090
  %1092 = vrot.lane.b32.xlu0 %v456, 2
  %v1093 = vpop.permute.xlu0 %1092
  %1094 = vrot.lane.b32.xlu0 %v457, 2
  %v1095 = vpop.permute.xlu0 %1094
  %1096 = vrot.lane.b32.xlu0 %v458, 2
  %v1097 = vpop.permute.xlu0 %1096
  %1098 = vrot.lane.b32.xlu0 %v459, 2
  %v1099 = vpop.permute.xlu0 %1098
  %1100 = vrot.lane.b32.xlu0 %v460, 2
  %v1101 = vpop.permute.xlu0 %1100
  %1230 = vrot.lane.b32.xlu0 %v461, 4
  %v1231 = vpop.permute.xlu0 %1230
  %1232 = vrot.lane.b32.xlu0 %v462, 4
  %v1233 = vpop.permute.xlu0 %1232
  %1234 = vrot.lane.b32.xlu0 %v463, 4
  %v1235 = vpop.permute.xlu0 %1234
  %1236 = vrot.lane.b32.xlu0 %v464, 4
  %v1237 = vpop.permute.xlu0 %1236
  %1238 = vrot.lane.b32.xlu0 %v465, 4
  %v1239 = vpop.permute.xlu0 %1238
  %1240 = vrot.lane.b32.xlu0 %v466, 4
  %v1241 = vpop.permute.xlu0 %1240
  %1242 = vrot.lane.b32.xlu0 %v467, 4
  %v1243 = vpop.permute.xlu0 %1242
  %1244 = vrot.lane.b32.xlu0 %v468, 4
  %v1245 = vpop.permute.xlu0 %1244
  %1246 = vrot.lane.b32.xlu0 %v469, 4
  %v1247 = vpop.permute.xlu0 %1246
  %1248 = vrot.lane.b32.xlu0 %v470, 4
  %v1249 = vpop.permute.xlu0 %1248
  %1250 = vrot.lane.b32.xlu0 %v471, 4
  %v1251 = vpop.permute.xlu0 %1250
  %1252 = vrot.lane.b32.xlu0 %v472, 4
  %v1253 = vpop.permute.xlu0 %1252
  %1254 = vrot.lane.b32.xlu0 %v473, 4
  %v1255 = vpop.permute.xlu0 %1254
  %1256 = vrot.lane.b32.xlu0 %v474, 4
  %v1257 = vpop.permute.xlu0 %1256
  %1258 = vrot.lane.b32.xlu0 %v475, 4
  %v1259 = vpop.permute.xlu0 %1258
  %1260 = vrot.lane.b32.xlu0 %v476, 4
  %v1261 = vpop.permute.xlu0 %1260
  %1262 = vrot.lane.b32.xlu0 %v477, 4
  %v1263 = vpop.permute.xlu0 %1262
  %1264 = vrot.lane.b32.xlu0 %v478, 4
  %v1265 = vpop.permute.xlu0 %1264
  %1266 = vrot.lane.b32.xlu0 %v479, 4
  %v1267 = vpop.permute.xlu0 %1266
  %1268 = vrot.lane.b32.xlu0 %v480, 4
  %v1269 = vpop.permute.xlu0 %1268
  %1270 = vrot.lane.b32.xlu0 %v481, 4
  %v1271 = vpop.permute.xlu0 %1270
  %1272 = vrot.lane.b32.xlu0 %v482, 4
  %v1273 = vpop.permute.xlu0 %1272
  %1274 = vrot.lane.b32.xlu0 %v483, 4
  %v1275 = vpop.permute.xlu0 %1274
  %1276 = vrot.lane.b32.xlu0 %v484, 4
  %v1277 = vpop.permute.xlu0 %1276
  %1278 = vrot.lane.b32.xlu0 %v485, 4
  %v1279 = vpop.permute.xlu0 %1278
  %1280 = vrot.lane.b32.xlu0 %v486, 4
  %v1281 = vpop.permute.xlu0 %1280
  %1282 = vrot.lane.b32.xlu0 %v487, 4
  %v1283 = vpop.permute.xlu0 %1282
  %1284 = vrot.lane.b32.xlu0 %v488, 4
  %v1285 = vpop.permute.xlu0 %1284
  %1286 = vrot.lane.b32.xlu0 %v489, 4
  %v1287 = vpop.permute.xlu0 %1286
  %1288 = vrot.lane.b32.xlu0 %v490, 4
  %v1289 = vpop.permute.xlu0 %1288
  %1290 = vrot.lane.b32.xlu0 %v491, 4
  %v1291 = vpop.permute.xlu0 %1290
  %1292 = vrot.lane.b32.xlu0 %v492, 4
  %v1293 = vpop.permute.xlu0 %1292
  %1294 = vrot.lane.b32.xlu0 %v493, 4
  %v1295 = vpop.permute.xlu0 %1294
  %1296 = vrot.lane.b32.xlu0 %v494, 4
  %v1297 = vpop.permute.xlu0 %1296
  %1298 = vrot.lane.b32.xlu0 %v495, 4
  %v1299 = vpop.permute.xlu0 %1298
  %1300 = vrot.lane.b32.xlu0 %v496, 4
  %v1301 = vpop.permute.xlu0 %1300
  %1302 = vrot.lane.b32.xlu0 %v497, 4
  %v1303 = vpop.permute.xlu0 %1302
  %1304 = vrot.lane.b32.xlu0 %v498, 4
  %v1305 = vpop.permute.xlu0 %1304
  %1306 = vrot.lane.b32.xlu0 %v499, 4
  %v1307 = vpop.permute.xlu0 %1306
  %1308 = vrot.lane.b32.xlu0 %v500, 4
  %v1309 = vpop.permute.xlu0 %1308
  %1310 = vrot.lane.b32.xlu0 %v501, 4
  %v1311 = vpop.permute.xlu0 %1310
  %1312 = vrot.lane.b32.xlu0 %v502, 4
  %v1313 = vpop.permute.xlu0 %1312
  %1314 = vrot.lane.b32.xlu0 %v503, 4
  %v1315 = vpop.permute.xlu0 %1314
  %1316 = vrot.lane.b32.xlu0 %v504, 4
  %v1317 = vpop.permute.xlu0 %1316
  %1318 = vrot.lane.b32.xlu0 %v505, 4
  %v1319 = vpop.permute.xlu0 %1318
  %1320 = vrot.lane.b32.xlu0 %v506, 4
  %v1321 = vpop.permute.xlu0 %1320
  %1322 = vrot.lane.b32.xlu0 %v507, 4
  %v1323 = vpop.permute.xlu0 %1322
  %1324 = vrot.lane.b32.xlu0 %v508, 4
  %v1325 = vpop.permute.xlu0 %1324
  %1326 = vrot.lane.b32.xlu0 %v509, 4
  %v1327 = vpop.permute.xlu0 %1326
  %1328 = vrot.lane.b32.xlu0 %v510, 4
  %v1329 = vpop.permute.xlu0 %1328
  %1330 = vrot.lane.b32.xlu0 %v511, 4
  %v1331 = vpop.permute.xlu0 %1330
  %1332 = vrot.lane.b32.xlu0 %v512, 4
  %v1333 = vpop.permute.xlu0 %1332
  %1334 = vrot.lane.b32.xlu0 %v513, 4
  %v1335 = vpop.permute.xlu0 %1334
  %1336 = vrot.lane.b32.xlu0 %v514, 4
  %v1337 = vpop.permute.xlu0 %1336
  %1338 = vrot.lane.b32.xlu0 %v515, 4
  %v1339 = vpop.permute.xlu0 %1338
  %1340 = vrot.lane.b32.xlu0 %v516, 4
  %v1341 = vpop.permute.xlu0 %1340
  %1342 = vrot.lane.b32.xlu0 %v517, 4
  %v1343 = vpop.permute.xlu0 %1342
  %1344 = vrot.lane.b32.xlu0 %v518, 4
  %v1345 = vpop.permute.xlu0 %1344
  %1346 = vrot.lane.b32.xlu0 %v519, 4
  %v1347 = vpop.permute.xlu0 %1346
  %1348 = vrot.lane.b32.xlu0 %v520, 4
  %v1349 = vpop.permute.xlu0 %1348
  %1350 = vrot.lane.b32.xlu0 %v521, 4
  %v1351 = vpop.permute.xlu0 %1350
  %1352 = vrot.lane.b32.xlu0 %v522, 4
  %v1353 = vpop.permute.xlu0 %1352
  %1354 = vrot.lane.b32.xlu0 %v523, 4
  %v1355 = vpop.permute.xlu0 %1354
  %1356 = vrot.lane.b32.xlu0 %v524, 4
  %v1357 = vpop.permute.xlu0 %1356
  %1486 = vrot.lane.b32.xlu0 %v525, 6
  %v1487 = vpop.permute.xlu0 %1486
  %1488 = vrot.lane.b32.xlu0 %v526, 6
  %v1489 = vpop.permute.xlu0 %1488
  %1490 = vrot.lane.b32.xlu0 %v527, 6
  %v1491 = vpop.permute.xlu0 %1490
  %1492 = vrot.lane.b32.xlu0 %v528, 6
  %v1493 = vpop.permute.xlu0 %1492
  %1494 = vrot.lane.b32.xlu0 %v529, 6
  %v1495 = vpop.permute.xlu0 %1494
  %1496 = vrot.lane.b32.xlu0 %v530, 6
  %v1497 = vpop.permute.xlu0 %1496
  %1498 = vrot.lane.b32.xlu0 %v531, 6
  %v1499 = vpop.permute.xlu0 %1498
  %1500 = vrot.lane.b32.xlu0 %v532, 6
  %v1501 = vpop.permute.xlu0 %1500
  %1502 = vrot.lane.b32.xlu0 %v533, 6
  %v1503 = vpop.permute.xlu0 %1502
  %1504 = vrot.lane.b32.xlu0 %v534, 6
  %v1505 = vpop.permute.xlu0 %1504
  %1506 = vrot.lane.b32.xlu0 %v535, 6
  %v1507 = vpop.permute.xlu0 %1506
  %1508 = vrot.lane.b32.xlu0 %v536, 6
  %v1509 = vpop.permute.xlu0 %1508
  %1510 = vrot.lane.b32.xlu0 %v537, 6
  %v1511 = vpop.permute.xlu0 %1510
  %1512 = vrot.lane.b32.xlu0 %v538, 6
  %v1513 = vpop.permute.xlu0 %1512
  %1514 = vrot.lane.b32.xlu0 %v539, 6
  %v1515 = vpop.permute.xlu0 %1514
  %1516 = vrot.lane.b32.xlu0 %v540, 6
  %v1517 = vpop.permute.xlu0 %1516
  %1518 = vrot.lane.b32.xlu0 %v541, 6
  %v1519 = vpop.permute.xlu0 %1518
  %1520 = vrot.lane.b32.xlu0 %v542, 6
  %v1521 = vpop.permute.xlu0 %1520
  %1522 = vrot.lane.b32.xlu0 %v543, 6
  %v1523 = vpop.permute.xlu0 %1522
  %1524 = vrot.lane.b32.xlu0 %v544, 6
  %v1525 = vpop.permute.xlu0 %1524
  %1526 = vrot.lane.b32.xlu0 %v545, 6
  %v1527 = vpop.permute.xlu0 %1526
  %1528 = vrot.lane.b32.xlu0 %v546, 6
  %v1529 = vpop.permute.xlu0 %1528
  %1530 = vrot.lane.b32.xlu0 %v547, 6
  %v1531 = vpop.permute.xlu0 %1530
  %1532 = vrot.lane.b32.xlu0 %v548, 6
  %v1533 = vpop.permute.xlu0 %1532
  %1534 = vrot.lane.b32.xlu0 %v549, 6
  %v1535 = vpop.permute.xlu0 %1534
  %1536 = vrot.lane.b32.xlu0 %v550, 6
  %v1537 = vpop.permute.xlu0 %1536
  %1538 = vrot.lane.b32.xlu0 %v551, 6
  %v1539 = vpop.permute.xlu0 %1538
  %1540 = vrot.lane.b32.xlu0 %v552, 6
  %v1541 = vpop.permute.xlu0 %1540
  %1542 = vrot.lane.b32.xlu0 %v553, 6
  %v1543 = vpop.permute.xlu0 %1542
  %1544 = vrot.lane.b32.xlu0 %v554, 6
  %v1545 = vpop.permute.xlu0 %1544
  %1546 = vrot.lane.b32.xlu0 %v555, 6
  %v1547 = vpop.permute.xlu0 %1546
  %1548 = vrot.lane.b32.xlu0 %v556, 6
  %v1549 = vpop.permute.xlu0 %1548
  %1550 = vrot.lane.b32.xlu0 %v557, 6
  %v1551 = vpop.permute.xlu0 %1550
  %1552 = vrot.lane.b32.xlu0 %v558, 6
  %v1553 = vpop.permute.xlu0 %1552
  %1554 = vrot.lane.b32.xlu0 %v559, 6
  %v1555 = vpop.permute.xlu0 %1554
  %1556 = vrot.lane.b32.xlu0 %v560, 6
  %v1557 = vpop.permute.xlu0 %1556
  %1558 = vrot.lane.b32.xlu0 %v561, 6
  %v1559 = vpop.permute.xlu0 %1558
  %1560 = vrot.lane.b32.xlu0 %v562, 6
  %v1561 = vpop.permute.xlu0 %1560
  %1562 = vrot.lane.b32.xlu0 %v563, 6
  %v1563 = vpop.permute.xlu0 %1562
  %1564 = vrot.lane.b32.xlu0 %v564, 6
  %v1565 = vpop.permute.xlu0 %1564
  %1566 = vrot.lane.b32.xlu0 %v565, 6
  %v1567 = vpop.permute.xlu0 %1566
  %1568 = vrot.lane.b32.xlu0 %v566, 6
  %v1569 = vpop.permute.xlu0 %1568
  %1570 = vrot.lane.b32.xlu0 %v567, 6
  %v1571 = vpop.permute.xlu0 %1570
  %1572 = vrot.lane.b32.xlu0 %v568, 6
  %v1573 = vpop.permute.xlu0 %1572
  %1574 = vrot.lane.b32.xlu0 %v569, 6
  %v1575 = vpop.permute.xlu0 %1574
  %1576 = vrot.lane.b32.xlu0 %v570, 6
  %v1577 = vpop.permute.xlu0 %1576
  %1578 = vrot.lane.b32.xlu0 %v571, 6
  %v1579 = vpop.permute.xlu0 %1578
  %1580 = vrot.lane.b32.xlu0 %v572, 6
  %v1581 = vpop.permute.xlu0 %1580
  %1582 = vrot.lane.b32.xlu0 %v573, 6
  %v1583 = vpop.permute.xlu0 %1582
  %1584 = vrot.lane.b32.xlu0 %v574, 6
  %v1585 = vpop.permute.xlu0 %1584
  %1586 = vrot.lane.b32.xlu0 %v575, 6
  %v1587 = vpop.permute.xlu0 %1586
  %1588 = vrot.lane.b32.xlu0 %v576, 6
  %v1589 = vpop.permute.xlu0 %1588
  %1590 = vrot.lane.b32.xlu0 %v577, 6
  %v1591 = vpop.permute.xlu0 %1590
  %1592 = vrot.lane.b32.xlu0 %v578, 6
  %v1593 = vpop.permute.xlu0 %1592
  %1594 = vrot.lane.b32.xlu0 %v579, 6
  %v1595 = vpop.permute.xlu0 %1594
  %1596 = vrot.lane.b32.xlu0 %v580, 6
  %v1597 = vpop.permute.xlu0 %1596
  %1598 = vrot.lane.b32.xlu0 %v581, 6
  %v1599 = vpop.permute.xlu0 %1598
  %1600 = vrot.lane.b32.xlu0 %v582, 6
  %v1601 = vpop.permute.xlu0 %1600
  %1602 = vrot.lane.b32.xlu0 %v583, 6
  %v1603 = vpop.permute.xlu0 %1602
  %1604 = vrot.lane.b32.xlu0 %v584, 6
  %v1605 = vpop.permute.xlu0 %1604
  %1606 = vrot.lane.b32.xlu0 %v585, 6
  %v1607 = vpop.permute.xlu0 %1606
  %1608 = vrot.lane.b32.xlu0 %v586, 6
  %v1609 = vpop.permute.xlu0 %1608
  %1610 = vrot.lane.b32.xlu0 %v587, 6
  %v1611 = vpop.permute.xlu0 %1610
  %1612 = vrot.lane.b32.xlu0 %v588, 6
  %v1613 = vpop.permute.xlu0 %1612
  %1742 = vrot.lane.b32.xlu0 %v589, 8
  %v1743 = vpop.permute.xlu0 %1742
  %1744 = vrot.lane.b32.xlu0 %v590, 8
  %v1745 = vpop.permute.xlu0 %1744
  %1746 = vrot.lane.b32.xlu0 %v591, 8
  %v1747 = vpop.permute.xlu0 %1746
  %1748 = vrot.lane.b32.xlu0 %v592, 8
  %v1749 = vpop.permute.xlu0 %1748
  %1750 = vrot.lane.b32.xlu0 %v593, 8
  %v1751 = vpop.permute.xlu0 %1750
  %1752 = vrot.lane.b32.xlu0 %v594, 8
  %v1753 = vpop.permute.xlu0 %1752
  %1754 = vrot.lane.b32.xlu0 %v595, 8
  %v1755 = vpop.permute.xlu0 %1754
  %1756 = vrot.lane.b32.xlu0 %v596, 8
  %v1757 = vpop.permute.xlu0 %1756
  %1758 = vrot.lane.b32.xlu0 %v597, 8
  %v1759 = vpop.permute.xlu0 %1758
  %1760 = vrot.lane.b32.xlu0 %v598, 8
  %v1761 = vpop.permute.xlu0 %1760
  %1762 = vrot.lane.b32.xlu0 %v599, 8
  %v1763 = vpop.permute.xlu0 %1762
  %1764 = vrot.lane.b32.xlu0 %v600, 8
  %v1765 = vpop.permute.xlu0 %1764
  %1766 = vrot.lane.b32.xlu0 %v601, 8
  %v1767 = vpop.permute.xlu0 %1766
  %1768 = vrot.lane.b32.xlu0 %v602, 8
  %v1769 = vpop.permute.xlu0 %1768
  %1770 = vrot.lane.b32.xlu0 %v603, 8
  %v1771 = vpop.permute.xlu0 %1770
  %1772 = vrot.lane.b32.xlu0 %v604, 8
  %v1773 = vpop.permute.xlu0 %1772
  %1774 = vrot.lane.b32.xlu0 %v605, 8
  %v1775 = vpop.permute.xlu0 %1774
  %1776 = vrot.lane.b32.xlu0 %v606, 8
  %v1777 = vpop.permute.xlu0 %1776
  %1778 = vrot.lane.b32.xlu0 %v607, 8
  %v1779 = vpop.permute.xlu0 %1778
  %1780 = vrot.lane.b32.xlu0 %v608, 8
  %v1781 = vpop.permute.xlu0 %1780
  %1782 = vrot.lane.b32.xlu0 %v609, 8
  %v1783 = vpop.permute.xlu0 %1782
  %1784 = vrot.lane.b32.xlu0 %v610, 8
  %v1785 = vpop.permute.xlu0 %1784
  %1786 = vrot.lane.b32.xlu0 %v611, 8
  %v1787 = vpop.permute.xlu0 %1786
  %1788 = vrot.lane.b32.xlu0 %v612, 8
  %v1789 = vpop.permute.xlu0 %1788
  %1790 = vrot.lane.b32.xlu0 %v613, 8
  %v1791 = vpop.permute.xlu0 %1790
  %1792 = vrot.lane.b32.xlu0 %v614, 8
  %v1793 = vpop.permute.xlu0 %1792
  %1794 = vrot.lane.b32.xlu0 %v615, 8
  %v1795 = vpop.permute.xlu0 %1794
  %1796 = vrot.lane.b32.xlu0 %v616, 8
  %v1797 = vpop.permute.xlu0 %1796
  %1798 = vrot.lane.b32.xlu0 %v617, 8
  %v1799 = vpop.permute.xlu0 %1798
  %1800 = vrot.lane.b32.xlu0 %v618, 8
  %v1801 = vpop.permute.xlu0 %1800
  %1802 = vrot.lane.b32.xlu0 %v619, 8
  %v1803 = vpop.permute.xlu0 %1802
  %1804 = vrot.lane.b32.xlu0 %v620, 8
  %v1805 = vpop.permute.xlu0 %1804
  %1806 = vrot.lane.b32.xlu0 %v621, 8
  %v1807 = vpop.permute.xlu0 %1806
  %1808 = vrot.lane.b32.xlu0 %v622, 8
  %v1809 = vpop.permute.xlu0 %1808
  %1810 = vrot.lane.b32.xlu0 %v623, 8
  %v1811 = vpop.permute.xlu0 %1810
  %1812 = vrot.lane.b32.xlu0 %v624, 8
  %v1813 = vpop.permute.xlu0 %1812
  %1814 = vrot.lane.b32.xlu0 %v625, 8
  %v1815 = vpop.permute.xlu0 %1814
  %1816 = vrot.lane.b32.xlu0 %v626, 8
  %v1817 = vpop.permute.xlu0 %1816
  %1818 = vrot.lane.b32.xlu0 %v627, 8
  %v1819 = vpop.permute.xlu0 %1818
  %1820 = vrot.lane.b32.xlu0 %v628, 8
  %v1821 = vpop.permute.xlu0 %1820
  %1822 = vrot.lane.b32.xlu0 %v629, 8
  %v1823 = vpop.permute.xlu0 %1822
  %1824 = vrot.lane.b32.xlu0 %v630, 8
  %v1825 = vpop.permute.xlu0 %1824
  %1826 = vrot.lane.b32.xlu0 %v631, 8
  %v1827 = vpop.permute.xlu0 %1826
  %1828 = vrot.lane.b32.xlu0 %v632, 8
  %v1829 = vpop.permute.xlu0 %1828
  %1830 = vrot.lane.b32.xlu0 %v633, 8
  %v1831 = vpop.permute.xlu0 %1830
  %1832 = vrot.lane.b32.xlu0 %v634, 8
  %v1833 = vpop.permute.xlu0 %1832
  %1834 = vrot.lane.b32.xlu0 %v635, 8
  %v1835 = vpop.permute.xlu0 %1834
  %1836 = vrot.lane.b32.xlu0 %v636, 8
  %v1837 = vpop.permute.xlu0 %1836
  %1838 = vrot.lane.b32.xlu0 %v637, 8
  %v1839 = vpop.permute.xlu0 %1838
  %1840 = vrot.lane.b32.xlu0 %v638, 8
  %v1841 = vpop.permute.xlu0 %1840
  %1842 = vrot.lane.b32.xlu0 %v639, 8
  %v1843 = vpop.permute.xlu0 %1842
  %1844 = vrot.lane.b32.xlu0 %v640, 8
  %v1845 = vpop.permute.xlu0 %1844
  %1846 = vrot.lane.b32.xlu0 %v641, 8
  %v1847 = vpop.permute.xlu0 %1846
  %1848 = vrot.lane.b32.xlu0 %v642, 8
  %v1849 = vpop.permute.xlu0 %1848
  %1850 = vrot.lane.b32.xlu0 %v643, 8
  %v1851 = vpop.permute.xlu0 %1850
  %1852 = vrot.lane.b32.xlu0 %v644, 8
  %v1853 = vpop.permute.xlu0 %1852
  %1854 = vrot.lane.b32.xlu0 %v645, 8
  %v1855 = vpop.permute.xlu0 %1854
  %1856 = vrot.lane.b32.xlu0 %v646, 8
  %v1857 = vpop.permute.xlu0 %1856
  %1858 = vrot.lane.b32.xlu0 %v647, 8
  %v1859 = vpop.permute.xlu0 %1858
  %1860 = vrot.lane.b32.xlu0 %v648, 8
  %v1861 = vpop.permute.xlu0 %1860
  %1862 = vrot.lane.b32.xlu0 %v649, 8
  %v1863 = vpop.permute.xlu0 %1862
  %1864 = vrot.lane.b32.xlu0 %v650, 8
  %v1865 = vpop.permute.xlu0 %1864
  %1866 = vrot.lane.b32.xlu0 %v651, 8
  %v1867 = vpop.permute.xlu0 %1866
  %1868 = vrot.lane.b32.xlu0 %v652, 8
  %v1869 = vpop.permute.xlu0 %1868
  %1998 = vrot.lane.b32.xlu0 %v653, 10
  %v1999 = vpop.permute.xlu0 %1998
  %2000 = vrot.lane.b32.xlu0 %v654, 10
  %v2001 = vpop.permute.xlu0 %2000
  %2002 = vrot.lane.b32.xlu0 %v655, 10
  %v2003 = vpop.permute.xlu0 %2002
  %2004 = vrot.lane.b32.xlu0 %v656, 10
  %v2005 = vpop.permute.xlu0 %2004
  %2006 = vrot.lane.b32.xlu0 %v657, 10
  %v2007 = vpop.permute.xlu0 %2006
  %2008 = vrot.lane.b32.xlu0 %v658, 10
  %v2009 = vpop.permute.xlu0 %2008
  %2010 = vrot.lane.b32.xlu0 %v659, 10
  %v2011 = vpop.permute.xlu0 %2010
  %2012 = vrot.lane.b32.xlu0 %v660, 10
  %v2013 = vpop.permute.xlu0 %2012
  %2014 = vrot.lane.b32.xlu0 %v661, 10
  %v2015 = vpop.permute.xlu0 %2014
  %2016 = vrot.lane.b32.xlu0 %v662, 10
  %v2017 = vpop.permute.xlu0 %2016
  %2018 = vrot.lane.b32.xlu0 %v663, 10
  %v2019 = vpop.permute.xlu0 %2018
  %2020 = vrot.lane.b32.xlu0 %v664, 10
  %v2021 = vpop.permute.xlu0 %2020
  %2022 = vrot.lane.b32.xlu0 %v665, 10
  %v2023 = vpop.permute.xlu0 %2022
  %2024 = vrot.lane.b32.xlu0 %v666, 10
  %v2025 = vpop.permute.xlu0 %2024
  %2026 = vrot.lane.b32.xlu0 %v667, 10
  %v2027 = vpop.permute.xlu0 %2026
  %2028 = vrot.lane.b32.xlu0 %v668, 10
  %v2029 = vpop.permute.xlu0 %2028
  %2030 = vrot.lane.b32.xlu0 %v669, 10
  %v2031 = vpop.permute.xlu0 %2030
  %2032 = vrot.lane.b32.xlu0 %v670, 10
  %v2033 = vpop.permute.xlu0 %2032
  %2034 = vrot.lane.b32.xlu0 %v671, 10
  %v2035 = vpop.permute.xlu0 %2034
  %2036 = vrot.lane.b32.xlu0 %v672, 10
  %v2037 = vpop.permute.xlu0 %2036
  %2038 = vrot.lane.b32.xlu0 %v673, 10
  %v2039 = vpop.permute.xlu0 %2038
  %2040 = vrot.lane.b32.xlu0 %v674, 10
  %v2041 = vpop.permute.xlu0 %2040
  %2042 = vrot.lane.b32.xlu0 %v675, 10
  %v2043 = vpop.permute.xlu0 %2042
  %2044 = vrot.lane.b32.xlu0 %v676, 10
  %v2045 = vpop.permute.xlu0 %2044
  %2046 = vrot.lane.b32.xlu0 %v677, 10
  %v2047 = vpop.permute.xlu0 %2046
  %2048 = vrot.lane.b32.xlu0 %v678, 10
  %v2049 = vpop.permute.xlu0 %2048
  %2050 = vrot.lane.b32.xlu0 %v679, 10
  %v2051 = vpop.permute.xlu0 %2050
  %2052 = vrot.lane.b32.xlu0 %v680, 10
  %v2053 = vpop.permute.xlu0 %2052
  %2054 = vrot.lane.b32.xlu0 %v681, 10
  %v2055 = vpop.permute.xlu0 %2054
  %2056 = vrot.lane.b32.xlu0 %v682, 10
  %v2057 = vpop.permute.xlu0 %2056
  %2058 = vrot.lane.b32.xlu0 %v683, 10
  %v2059 = vpop.permute.xlu0 %2058
  %2060 = vrot.lane.b32.xlu0 %v684, 10
  %v2061 = vpop.permute.xlu0 %2060
  %2062 = vrot.lane.b32.xlu0 %v685, 10
  %v2063 = vpop.permute.xlu0 %2062
  %2064 = vrot.lane.b32.xlu0 %v686, 10
  %v2065 = vpop.permute.xlu0 %2064
  %2066 = vrot.lane.b32.xlu0 %v687, 10
  %v2067 = vpop.permute.xlu0 %2066
  %2068 = vrot.lane.b32.xlu0 %v688, 10
  %v2069 = vpop.permute.xlu0 %2068
  %2070 = vrot.lane.b32.xlu0 %v689, 10
  %v2071 = vpop.permute.xlu0 %2070
  %2072 = vrot.lane.b32.xlu0 %v690, 10
  %v2073 = vpop.permute.xlu0 %2072
  %2074 = vrot.lane.b32.xlu0 %v691, 10
  %v2075 = vpop.permute.xlu0 %2074
  %2076 = vrot.lane.b32.xlu0 %v692, 10
  %v2077 = vpop.permute.xlu0 %2076
  %2078 = vrot.lane.b32.xlu0 %v693, 10
  %v2079 = vpop.permute.xlu0 %2078
  %2080 = vrot.lane.b32.xlu0 %v694, 10
  %v2081 = vpop.permute.xlu0 %2080
  %2082 = vrot.lane.b32.xlu0 %v695, 10
  %v2083 = vpop.permute.xlu0 %2082
  %2084 = vrot.lane.b32.xlu0 %v696, 10
  %v2085 = vpop.permute.xlu0 %2084
  %2086 = vrot.lane.b32.xlu0 %v697, 10
  %v2087 = vpop.permute.xlu0 %2086
  %2088 = vrot.lane.b32.xlu0 %v698, 10
  %v2089 = vpop.permute.xlu0 %2088
  %2090 = vrot.lane.b32.xlu0 %v699, 10
  %v2091 = vpop.permute.xlu0 %2090
  %2092 = vrot.lane.b32.xlu0 %v700, 10
  %v2093 = vpop.permute.xlu0 %2092
  %2094 = vrot.lane.b32.xlu0 %v701, 10
  %v2095 = vpop.permute.xlu0 %2094
  %2096 = vrot.lane.b32.xlu0 %v702, 10
  %v2097 = vpop.permute.xlu0 %2096
  %2098 = vrot.lane.b32.xlu0 %v703, 10
  %v2099 = vpop.permute.xlu0 %2098
  %2100 = vrot.lane.b32.xlu0 %v704, 10
  %v2101 = vpop.permute.xlu0 %2100
  %2102 = vrot.lane.b32.xlu0 %v705, 10
  %v2103 = vpop.permute.xlu0 %2102
  %2104 = vrot.lane.b32.xlu0 %v706, 10
  %v2105 = vpop.permute.xlu0 %2104
  %2106 = vrot.lane.b32.xlu0 %v707, 10
  %v2107 = vpop.permute.xlu0 %2106
  %2108 = vrot.lane.b32.xlu0 %v708, 10
  %v2109 = vpop.permute.xlu0 %2108
  %2110 = vrot.lane.b32.xlu0 %v709, 10
  %v2111 = vpop.permute.xlu0 %2110
  %2112 = vrot.lane.b32.xlu0 %v710, 10
  %v2113 = vpop.permute.xlu0 %2112
  %2114 = vrot.lane.b32.xlu0 %v711, 10
  %v2115 = vpop.permute.xlu0 %2114
  %2116 = vrot.lane.b32.xlu0 %v712, 10
  %v2117 = vpop.permute.xlu0 %2116
  %2118 = vrot.lane.b32.xlu0 %v713, 10
  %v2119 = vpop.permute.xlu0 %2118
  %2120 = vrot.lane.b32.xlu0 %v714, 10
  %v2121 = vpop.permute.xlu0 %2120
  %2122 = vrot.lane.b32.xlu0 %v715, 10
  %v2123 = vpop.permute.xlu0 %2122
  %2124 = vrot.lane.b32.xlu0 %v716, 10
  %v2125 = vpop.permute.xlu0 %2124
  %2254 = vrot.lane.b32.xlu0 %v718, 12
  %v2255 = vpop.permute.xlu0 %2254
  %2256 = vrot.lane.b32.xlu0 %v719, 12
  %v2257 = vpop.permute.xlu0 %2256
  %2258 = vrot.lane.b32.xlu0 %v720, 12
  %v2259 = vpop.permute.xlu0 %2258
  %2260 = vrot.lane.b32.xlu0 %v721, 12
  %v2261 = vpop.permute.xlu0 %2260
  %2262 = vrot.lane.b32.xlu0 %v722, 12
  %v2263 = vpop.permute.xlu0 %2262
  %2264 = vrot.lane.b32.xlu0 %v723, 12
  %v2265 = vpop.permute.xlu0 %2264
  %2266 = vrot.lane.b32.xlu0 %v724, 12
  %v2267 = vpop.permute.xlu0 %2266
  %2268 = vrot.lane.b32.xlu0 %v725, 12
  %v2269 = vpop.permute.xlu0 %2268
  %2270 = vrot.lane.b32.xlu0 %v726, 12
  %v2271 = vpop.permute.xlu0 %2270
  %2272 = vrot.lane.b32.xlu0 %v727, 12
  %v2273 = vpop.permute.xlu0 %2272
  %2274 = vrot.lane.b32.xlu0 %v728, 12
  %v2275 = vpop.permute.xlu0 %2274
  %2276 = vrot.lane.b32.xlu0 %v729, 12
  %v2277 = vpop.permute.xlu0 %2276
  %2278 = vrot.lane.b32.xlu0 %v730, 12
  %v2279 = vpop.permute.xlu0 %2278
  %2280 = vrot.lane.b32.xlu0 %v731, 12
  %v2281 = vpop.permute.xlu0 %2280
  %2282 = vrot.lane.b32.xlu0 %v732, 12
  %v2283 = vpop.permute.xlu0 %2282
  %2284 = vrot.lane.b32.xlu0 %v733, 12
  %v2285 = vpop.permute.xlu0 %2284
  %2286 = vrot.lane.b32.xlu0 %v734, 12
  %v2287 = vpop.permute.xlu0 %2286
  %2288 = vrot.lane.b32.xlu0 %v735, 12
  %v2289 = vpop.permute.xlu0 %2288
  %2290 = vrot.lane.b32.xlu0 %v736, 12
  %v2291 = vpop.permute.xlu0 %2290
  %2292 = vrot.lane.b32.xlu0 %v737, 12
  %v2293 = vpop.permute.xlu0 %2292
  %2294 = vrot.lane.b32.xlu0 %v738, 12
  %v2295 = vpop.permute.xlu0 %2294
  %2296 = vrot.lane.b32.xlu0 %v739, 12
  %v2297 = vpop.permute.xlu0 %2296
  %2298 = vrot.lane.b32.xlu0 %v740, 12
  %v2299 = vpop.permute.xlu0 %2298
  %2300 = vrot.lane.b32.xlu0 %v741, 12
  %v2301 = vpop.permute.xlu0 %2300
  %2302 = vrot.lane.b32.xlu0 %v742, 12
  %v2303 = vpop.permute.xlu0 %2302
  %2304 = vrot.lane.b32.xlu0 %v743, 12
  %v2305 = vpop.permute.xlu0 %2304
  %2306 = vrot.lane.b32.xlu0 %v744, 12
  %v2307 = vpop.permute.xlu0 %2306
  %2308 = vrot.lane.b32.xlu0 %v745, 12
  %v2309 = vpop.permute.xlu0 %2308
  %2310 = vrot.lane.b32.xlu0 %v746, 12
  %v2311 = vpop.permute.xlu0 %2310
  %2312 = vrot.lane.b32.xlu0 %v747, 12
  %v2313 = vpop.permute.xlu0 %2312
  %2314 = vrot.lane.b32.xlu0 %v748, 12
  %v2315 = vpop.permute.xlu0 %2314
  %2316 = vrot.lane.b32.xlu0 %v749, 12
  %v2317 = vpop.permute.xlu0 %2316
  %2318 = vrot.lane.b32.xlu0 %v750, 12
  %v2319 = vpop.permute.xlu0 %2318
  %2320 = vrot.lane.b32.xlu0 %v751, 12
  %v2321 = vpop.permute.xlu0 %2320
  %2322 = vrot.lane.b32.xlu0 %v752, 12
  %v2323 = vpop.permute.xlu0 %2322
  %2324 = vrot.lane.b32.xlu0 %v753, 12
  %v2325 = vpop.permute.xlu0 %2324
  %2326 = vrot.lane.b32.xlu0 %v754, 12
  %v2327 = vpop.permute.xlu0 %2326
  %2328 = vrot.lane.b32.xlu0 %v755, 12
  %v2329 = vpop.permute.xlu0 %2328
  %2330 = vrot.lane.b32.xlu0 %v756, 12
  %v2331 = vpop.permute.xlu0 %2330
  %2332 = vrot.lane.b32.xlu0 %v757, 12
  %v2333 = vpop.permute.xlu0 %2332
  %2334 = vrot.lane.b32.xlu0 %v758, 12
  %v2335 = vpop.permute.xlu0 %2334
  %2336 = vrot.lane.b32.xlu0 %v759, 12
  %v2337 = vpop.permute.xlu0 %2336
  %2338 = vrot.lane.b32.xlu0 %v760, 12
  %v2339 = vpop.permute.xlu0 %2338
  %2340 = vrot.lane.b32.xlu0 %v761, 12
  %v2341 = vpop.permute.xlu0 %2340
  %2342 = vrot.lane.b32.xlu0 %v762, 12
  %v2343 = vpop.permute.xlu0 %2342
  %2344 = vrot.lane.b32.xlu0 %v763, 12
  %v2345 = vpop.permute.xlu0 %2344
  %2346 = vrot.lane.b32.xlu0 %v764, 12
  %v2347 = vpop.permute.xlu0 %2346
  %2348 = vrot.lane.b32.xlu0 %v765, 12
  %v2349 = vpop.permute.xlu0 %2348
  %2350 = vrot.lane.b32.xlu0 %v766, 12
  %v2351 = vpop.permute.xlu0 %2350
  %2352 = vrot.lane.b32.xlu0 %v767, 12
  %v2353 = vpop.permute.xlu0 %2352
  %2354 = vrot.lane.b32.xlu0 %v768, 12
  %v2355 = vpop.permute.xlu0 %2354
  %2356 = vrot.lane.b32.xlu0 %v769, 12
  %v2357 = vpop.permute.xlu0 %2356
  %2358 = vrot.lane.b32.xlu0 %v770, 12
  %v2359 = vpop.permute.xlu0 %2358
  %2360 = vrot.lane.b32.xlu0 %v771, 12
  %v2361 = vpop.permute.xlu0 %2360
  %2362 = vrot.lane.b32.xlu0 %v772, 12
  %v2363 = vpop.permute.xlu0 %2362
  %2364 = vrot.lane.b32.xlu0 %v773, 12
  %v2365 = vpop.permute.xlu0 %2364
  %2366 = vrot.lane.b32.xlu0 %v774, 12
  %v2367 = vpop.permute.xlu0 %2366
  %2368 = vrot.lane.b32.xlu0 %v775, 12
  %v2369 = vpop.permute.xlu0 %2368
  %2370 = vrot.lane.b32.xlu0 %v776, 12
  %v2371 = vpop.permute.xlu0 %2370
  %2372 = vrot.lane.b32.xlu0 %v777, 12
  %v2373 = vpop.permute.xlu0 %2372
  %2374 = vrot.lane.b32.xlu0 %v778, 12
  %v2375 = vpop.permute.xlu0 %2374
  %2376 = vrot.lane.b32.xlu0 %v779, 12
  %v2377 = vpop.permute.xlu0 %2376
  %2378 = vrot.lane.b32.xlu0 %v780, 12
  %v2379 = vpop.permute.xlu0 %2378
  %2380 = vrot.lane.b32.xlu0 %v781, 12
  %v2381 = vpop.permute.xlu0 %2380
  %2510 = vrot.lane.b32.xlu0 %v782, 14
  %v2511 = vpop.permute.xlu0 %2510
  %2512 = vrot.lane.b32.xlu0 %v783, 14
  %v2513 = vpop.permute.xlu0 %2512
  %2514 = vrot.lane.b32.xlu0 %v784, 14
  %v2515 = vpop.permute.xlu0 %2514
  %2516 = vrot.lane.b32.xlu0 %v785, 14
  %v2517 = vpop.permute.xlu0 %2516
  %2518 = vrot.lane.b32.xlu0 %v786, 14
  %v2519 = vpop.permute.xlu0 %2518
  %2520 = vrot.lane.b32.xlu0 %v787, 14
  %v2521 = vpop.permute.xlu0 %2520
  %2522 = vrot.lane.b32.xlu0 %v788, 14
  %v2523 = vpop.permute.xlu0 %2522
  %2524 = vrot.lane.b32.xlu0 %v789, 14
  %v2525 = vpop.permute.xlu0 %2524
  %2526 = vrot.lane.b32.xlu0 %v790, 14
  %v2527 = vpop.permute.xlu0 %2526
  %2528 = vrot.lane.b32.xlu0 %v791, 14
  %v2529 = vpop.permute.xlu0 %2528
  %2530 = vrot.lane.b32.xlu0 %v792, 14
  %v2531 = vpop.permute.xlu0 %2530
  %2532 = vrot.lane.b32.xlu0 %v793, 14
  %v2533 = vpop.permute.xlu0 %2532
  %2534 = vrot.lane.b32.xlu0 %v794, 14
  %v2535 = vpop.permute.xlu0 %2534
  %2536 = vrot.lane.b32.xlu0 %v795, 14
  %v2537 = vpop.permute.xlu0 %2536
  %2538 = vrot.lane.b32.xlu0 %v796, 14
  %v2539 = vpop.permute.xlu0 %2538
  %2540 = vrot.lane.b32.xlu0 %v797, 14
  %v2541 = vpop.permute.xlu0 %2540
  %2542 = vrot.lane.b32.xlu0 %v798, 14
  %v2543 = vpop.permute.xlu0 %2542
  %2544 = vrot.lane.b32.xlu0 %v799, 14
  %v2545 = vpop.permute.xlu0 %2544
  %2546 = vrot.lane.b32.xlu0 %v800, 14
  %v2547 = vpop.permute.xlu0 %2546
  %2548 = vrot.lane.b32.xlu0 %v801, 14
  %v2549 = vpop.permute.xlu0 %2548
  %2550 = vrot.lane.b32.xlu0 %v802, 14
  %v2551 = vpop.permute.xlu0 %2550
  %2552 = vrot.lane.b32.xlu0 %v803, 14
  %v2553 = vpop.permute.xlu0 %2552
  %2554 = vrot.lane.b32.xlu0 %v804, 14
  %v2555 = vpop.permute.xlu0 %2554
  %2556 = vrot.lane.b32.xlu0 %v805, 14
  %v2557 = vpop.permute.xlu0 %2556
  %2558 = vrot.lane.b32.xlu0 %v806, 14
  %v2559 = vpop.permute.xlu0 %2558
  %2560 = vrot.lane.b32.xlu0 %v807, 14
  %v2561 = vpop.permute.xlu0 %2560
  %2562 = vrot.lane.b32.xlu0 %v808, 14
  %v2563 = vpop.permute.xlu0 %2562
  %2564 = vrot.lane.b32.xlu0 %v809, 14
  %v2565 = vpop.permute.xlu0 %2564
  %2566 = vrot.lane.b32.xlu0 %v810, 14
  %v2567 = vpop.permute.xlu0 %2566
  %2568 = vrot.lane.b32.xlu0 %v811, 14
  %v2569 = vpop.permute.xlu0 %2568
  %2570 = vrot.lane.b32.xlu0 %v812, 14
  %v2571 = vpop.permute.xlu0 %2570
  %2572 = vrot.lane.b32.xlu0 %v813, 14
  %v2573 = vpop.permute.xlu0 %2572
  %2574 = vrot.lane.b32.xlu0 %v814, 14
  %v2575 = vpop.permute.xlu0 %2574
  %2576 = vrot.lane.b32.xlu0 %v815, 14
  %v2577 = vpop.permute.xlu0 %2576
  %2578 = vrot.lane.b32.xlu0 %v816, 14
  %v2579 = vpop.permute.xlu0 %2578
  %2580 = vrot.lane.b32.xlu0 %v817, 14
  %v2581 = vpop.permute.xlu0 %2580
  %2582 = vrot.lane.b32.xlu0 %v818, 14
  %v2583 = vpop.permute.xlu0 %2582
  %2584 = vrot.lane.b32.xlu0 %v819, 14
  %v2585 = vpop.permute.xlu0 %2584
  %2586 = vrot.lane.b32.xlu0 %v820, 14
  %v2587 = vpop.permute.xlu0 %2586
  %2588 = vrot.lane.b32.xlu0 %v821, 14
  %v2589 = vpop.permute.xlu0 %2588
  %2590 = vrot.lane.b32.xlu0 %v822, 14
  %v2591 = vpop.permute.xlu0 %2590
  %2592 = vrot.lane.b32.xlu0 %v823, 14
  %v2593 = vpop.permute.xlu0 %2592
  %2594 = vrot.lane.b32.xlu0 %v824, 14
  %v2595 = vpop.permute.xlu0 %2594
  %2596 = vrot.lane.b32.xlu0 %v825, 14
  %v2597 = vpop.permute.xlu0 %2596
  %2598 = vrot.lane.b32.xlu0 %v826, 14
  %v2599 = vpop.permute.xlu0 %2598
  %2600 = vrot.lane.b32.xlu0 %v827, 14
  %v2601 = vpop.permute.xlu0 %2600
  %2602 = vrot.lane.b32.xlu0 %v828, 14
  %v2603 = vpop.permute.xlu0 %2602
  %2604 = vrot.lane.b32.xlu0 %v829, 14
  %v2605 = vpop.permute.xlu0 %2604
  %2606 = vrot.lane.b32.xlu0 %v830, 14
  %v2607 = vpop.permute.xlu0 %2606
  %2608 = vrot.lane.b32.xlu0 %v831, 14
  %v2609 = vpop.permute.xlu0 %2608
  %2610 = vrot.lane.b32.xlu0 %v832, 14
  %v2611 = vpop.permute.xlu0 %2610
  %2612 = vrot.lane.b32.xlu0 %v833, 14
  %v2613 = vpop.permute.xlu0 %2612
  %2614 = vrot.lane.b32.xlu0 %v834, 14
  %v2615 = vpop.permute.xlu0 %2614
  %2616 = vrot.lane.b32.xlu0 %v835, 14
  %v2617 = vpop.permute.xlu0 %2616
  %2618 = vrot.lane.b32.xlu0 %v836, 14
  %v2619 = vpop.permute.xlu0 %2618
  %2620 = vrot.lane.b32.xlu0 %v837, 14
  %v2621 = vpop.permute.xlu0 %2620
  %2622 = vrot.lane.b32.xlu0 %v838, 14
  %v2623 = vpop.permute.xlu0 %2622
  %2624 = vrot.lane.b32.xlu0 %v839, 14
  %v2625 = vpop.permute.xlu0 %2624
  %2626 = vrot.lane.b32.xlu0 %v840, 14
  %v2627 = vpop.permute.xlu0 %2626
  %2628 = vrot.lane.b32.xlu0 %v841, 14
  %v2629 = vpop.permute.xlu0 %2628
  %2630 = vrot.lane.b32.xlu0 %v842, 14
  %v2631 = vpop.permute.xlu0 %2630
  %2632 = vrot.lane.b32.xlu0 %v843, 14
  %v2633 = vpop.permute.xlu0 %2632
  %2634 = vrot.lane.b32.xlu0 %v844, 14
  %v2635 = vpop.permute.xlu0 %2634
  %2636 = vrot.lane.b32.xlu0 %v845, 14
  %v2637 = vpop.permute.xlu0 %2636
  %2766 = vrot.lane.b32.xlu0 %v846, 16
  %v2767 = vpop.permute.xlu0 %2766
  %2768 = vrot.lane.b32.xlu0 %v847, 16
  %v2769 = vpop.permute.xlu0 %2768
  %2770 = vrot.lane.b32.xlu0 %v848, 16
  %v2771 = vpop.permute.xlu0 %2770
  %2772 = vrot.lane.b32.xlu0 %v849, 16
  %v2773 = vpop.permute.xlu0 %2772
  %2774 = vrot.lane.b32.xlu0 %v850, 16
  %v2775 = vpop.permute.xlu0 %2774
  %2776 = vrot.lane.b32.xlu0 %v851, 16
  %v2777 = vpop.permute.xlu0 %2776
  %2778 = vrot.lane.b32.xlu0 %v852, 16
  %v2779 = vpop.permute.xlu0 %2778
  %2780 = vrot.lane.b32.xlu0 %v853, 16
  %v2781 = vpop.permute.xlu0 %2780
  %2782 = vrot.lane.b32.xlu0 %v854, 16
  %v2783 = vpop.permute.xlu0 %2782
  %2784 = vrot.lane.b32.xlu0 %v855, 16
  %v2785 = vpop.permute.xlu0 %2784
  %2786 = vrot.lane.b32.xlu0 %v856, 16
  %v2787 = vpop.permute.xlu0 %2786
  %2788 = vrot.lane.b32.xlu0 %v857, 16
  %v2789 = vpop.permute.xlu0 %2788
  %2790 = vrot.lane.b32.xlu0 %v858, 16
  %v2791 = vpop.permute.xlu0 %2790
  %2792 = vrot.lane.b32.xlu0 %v859, 16
  %v2793 = vpop.permute.xlu0 %2792
  %2794 = vrot.lane.b32.xlu0 %v860, 16
  %v2795 = vpop.permute.xlu0 %2794
  %2796 = vrot.lane.b32.xlu0 %v861, 16
  %v2797 = vpop.permute.xlu0 %2796
  %2798 = vrot.lane.b32.xlu0 %v862, 16
  %v2799 = vpop.permute.xlu0 %2798
  %2800 = vrot.lane.b32.xlu0 %v863, 16
  %v2801 = vpop.permute.xlu0 %2800
  %2802 = vrot.lane.b32.xlu0 %v864, 16
  %v2803 = vpop.permute.xlu0 %2802
  %2804 = vrot.lane.b32.xlu0 %v865, 16
  %v2805 = vpop.permute.xlu0 %2804
  %2806 = vrot.lane.b32.xlu0 %v866, 16
  %v2807 = vpop.permute.xlu0 %2806
  %2808 = vrot.lane.b32.xlu0 %v867, 16
  %v2809 = vpop.permute.xlu0 %2808
  %2810 = vrot.lane.b32.xlu0 %v868, 16
  %v2811 = vpop.permute.xlu0 %2810
  %2812 = vrot.lane.b32.xlu0 %v869, 16
  %v2813 = vpop.permute.xlu0 %2812
  %2814 = vrot.lane.b32.xlu0 %v870, 16
  %v2815 = vpop.permute.xlu0 %2814
  %2816 = vrot.lane.b32.xlu0 %v871, 16
  %v2817 = vpop.permute.xlu0 %2816
  %2818 = vrot.lane.b32.xlu0 %v872, 16
  %v2819 = vpop.permute.xlu0 %2818
  %2820 = vrot.lane.b32.xlu0 %v873, 16
  %v2821 = vpop.permute.xlu0 %2820
  %2822 = vrot.lane.b32.xlu0 %v874, 16
  %v2823 = vpop.permute.xlu0 %2822
  %2824 = vrot.lane.b32.xlu0 %v875, 16
  %v2825 = vpop.permute.xlu0 %2824
  %2826 = vrot.lane.b32.xlu0 %v876, 16
  %v2827 = vpop.permute.xlu0 %2826
  %2828 = vrot.lane.b32.xlu0 %v877, 16
  %v2829 = vpop.permute.xlu0 %2828
  %2830 = vrot.lane.b32.xlu0 %v878, 16
  %v2831 = vpop.permute.xlu0 %2830
  %2832 = vrot.lane.b32.xlu0 %v879, 16
  %v2833 = vpop.permute.xlu0 %2832
  %2834 = vrot.lane.b32.xlu0 %v880, 16
  %v2835 = vpop.permute.xlu0 %2834
  %2836 = vrot.lane.b32.xlu0 %v881, 16
  %v2837 = vpop.permute.xlu0 %2836
  %2838 = vrot.lane.b32.xlu0 %v882, 16
  %v2839 = vpop.permute.xlu0 %2838
  %2840 = vrot.lane.b32.xlu0 %v883, 16
  %v2841 = vpop.permute.xlu0 %2840
  %2842 = vrot.lane.b32.xlu0 %v884, 16
  %v2843 = vpop.permute.xlu0 %2842
  %2844 = vrot.lane.b32.xlu0 %v885, 16
  %v2845 = vpop.permute.xlu0 %2844
  %2846 = vrot.lane.b32.xlu0 %v886, 16
  %v2847 = vpop.permute.xlu0 %2846
  %2848 = vrot.lane.b32.xlu0 %v887, 16
  %v2849 = vpop.permute.xlu0 %2848
  %2850 = vrot.lane.b32.xlu0 %v888, 16
  %v2851 = vpop.permute.xlu0 %2850
  %2852 = vrot.lane.b32.xlu0 %v889, 16
  %v2853 = vpop.permute.xlu0 %2852
  %2854 = vrot.lane.b32.xlu0 %v890, 16
  %v2855 = vpop.permute.xlu0 %2854
  %2856 = vrot.lane.b32.xlu0 %v891, 16
  %v2857 = vpop.permute.xlu0 %2856
  %2858 = vrot.lane.b32.xlu0 %v892, 16
  %v2859 = vpop.permute.xlu0 %2858
  %2860 = vrot.lane.b32.xlu0 %v893, 16
  %v2861 = vpop.permute.xlu0 %2860
  %2862 = vrot.lane.b32.xlu0 %v894, 16
  %v2863 = vpop.permute.xlu0 %2862
  %2864 = vrot.lane.b32.xlu0 %v895, 16
  %v2865 = vpop.permute.xlu0 %2864
  %2866 = vrot.lane.b32.xlu0 %v896, 16
  %v2867 = vpop.permute.xlu0 %2866
  %2868 = vrot.lane.b32.xlu0 %v897, 16
  %v2869 = vpop.permute.xlu0 %2868
  %2870 = vrot.lane.b32.xlu0 %v898, 16
  %v2871 = vpop.permute.xlu0 %2870
  %2872 = vrot.lane.b32.xlu0 %v899, 16
  %v2873 = vpop.permute.xlu0 %2872
  %2874 = vrot.lane.b32.xlu0 %v900, 16
  %v2875 = vpop.permute.xlu0 %2874
  %2876 = vrot.lane.b32.xlu0 %v901, 16
  %v2877 = vpop.permute.xlu0 %2876
  %2878 = vrot.lane.b32.xlu0 %v902, 16
  %v2879 = vpop.permute.xlu0 %2878
  %2880 = vrot.lane.b32.xlu0 %v903, 16
  %v2881 = vpop.permute.xlu0 %2880
  %2882 = vrot.lane.b32.xlu0 %v904, 16
  %v2883 = vpop.permute.xlu0 %2882
  %2884 = vrot.lane.b32.xlu0 %v905, 16
  %v2885 = vpop.permute.xlu0 %2884
  %2886 = vrot.lane.b32.xlu0 %v906, 16
  %v2887 = vpop.permute.xlu0 %2886
  %2888 = vrot.lane.b32.xlu0 %v907, 16
  %v2889 = vpop.permute.xlu0 %2888
  %2890 = vrot.lane.b32.xlu0 %v908, 16
  %v2891 = vpop.permute.xlu0 %2890
  %2892 = vrot.lane.b32.xlu0 %v909, 16
  %v2893 = vpop.permute.xlu0 %2892
  %v2958 = vsel %vm39, %v333, %v975
  %v2959 = vsel %vm39, %v334, %v977
  %v2960 = vsel %vm39, %v335, %v979
  %v2961 = vsel %vm39, %v336, %v981
  %v2962 = vsel %vm39, %v337, %v983
  %v2963 = vsel %vm39, %v338, %v985
  %v2964 = vsel %vm39, %v339, %v987
  %v2965 = vsel %vm39, %v340, %v989
  %v2966 = vsel %vm39, %v341, %v991
  %v2967 = vsel %vm39, %v342, %v993
  %v2968 = vsel %vm39, %v343, %v995
  %v2969 = vsel %vm39, %v344, %v997
  %v2970 = vsel %vm39, %v345, %v999
  %v2971 = vsel %vm39, %v346, %v1001
  %v2972 = vsel %vm39, %v347, %v1003
  %v2973 = vsel %vm39, %v348, %v1005
  %v2974 = vsel %vm39, %v349, %v1007
  %v2975 = vsel %vm39, %v350, %v1009
  %v2976 = vsel %vm39, %v351, %v1011
  %v2977 = vsel %vm39, %v352, %v1013
  %v2978 = vsel %vm39, %v353, %v1015
  %v2979 = vsel %vm39, %v354, %v1017
  %v2980 = vsel %vm39, %v355, %v1019
  %v2981 = vsel %vm39, %v356, %v1021
  %v2982 = vsel %vm39, %v357, %v1023
  %v2983 = vsel %vm39, %v358, %v1025
  %v2984 = vsel %vm39, %v359, %v1027
  %v2985 = vsel %vm39, %v360, %v1029
  %v2986 = vsel %vm39, %v361, %v1031
  %v2987 = vsel %vm39, %v362, %v1033
  %v2988 = vsel %vm39, %v363, %v1035
  %v2989 = vsel %vm39, %v364, %v1037
  %v2990 = vsel %vm39, %v365, %v1039
  %v2991 = vsel %vm39, %v366, %v1041
  %v2992 = vsel %vm39, %v367, %v1043
  %v2993 = vsel %vm39, %v368, %v1045
  %v2994 = vsel %vm39, %v369, %v1047
  %v2995 = vsel %vm39, %v370, %v1049
  %v2996 = vsel %vm39, %v371, %v1051
  %v2997 = vsel %vm39, %v372, %v1053
  %v2998 = vsel %vm39, %v373, %v1055
  %v2999 = vsel %vm39, %v374, %v1057
  %v3000 = vsel %vm39, %v375, %v1059
  %v3001 = vsel %vm39, %v376, %v1061
  %v3002 = vsel %vm39, %v377, %v1063
  %v3003 = vsel %vm39, %v378, %v1065
  %v3004 = vsel %vm39, %v379, %v1067
  %v3005 = vsel %vm39, %v380, %v1069
  %v3006 = vsel %vm39, %v381, %v1071
  %v3007 = vsel %vm39, %v382, %v1073
  %v3008 = vsel %vm39, %v383, %v1075
  %v3009 = vsel %vm39, %v384, %v1077
  %v3010 = vsel %vm39, %v385, %v1079
  %v3011 = vsel %vm39, %v386, %v1081
  %v3012 = vsel %vm39, %v387, %v1083
  %v3013 = vsel %vm39, %v388, %v1085
  %v3014 = vsel %vm39, %v389, %v1087
  %v3015 = vsel %vm39, %v390, %v1089
  %v3016 = vsel %vm39, %v391, %v1091
  %v3017 = vsel %vm39, %v392, %v1093
  %v3018 = vsel %vm39, %v393, %v1095
  %v3019 = vsel %vm39, %v394, %v1097
  %v3020 = vsel %vm39, %v395, %v1099
  %v3021 = vsel %vm39, %v396, %v1101
  %vm3022 = vcmask 31744
  %v3023 = vsel %vm3022, %v2958, %v1231
  %v3024 = vsel %vm3022, %v2959, %v1233
  %v3025 = vsel %vm3022, %v2960, %v1235
  %v3026 = vsel %vm3022, %v2961, %v1237
  %v3027 = vsel %vm3022, %v2962, %v1239
  %v3028 = vsel %vm3022, %v2963, %v1241
  %v3029 = vsel %vm3022, %v2964, %v1243
  %v3030 = vsel %vm3022, %v2965, %v1245
  %v3031 = vsel %vm3022, %v2966, %v1247
  %v3032 = vsel %vm3022, %v2967, %v1249
  %v3033 = vsel %vm3022, %v2968, %v1251
  %v3034 = vsel %vm3022, %v2969, %v1253
  %v3035 = vsel %vm3022, %v2970, %v1255
  %v3036 = vsel %vm3022, %v2971, %v1257
  %v3037 = vsel %vm3022, %v2972, %v1259
  %v3038 = vsel %vm3022, %v2973, %v1261
  %v3039 = vsel %vm3022, %v2974, %v1263
  %v3040 = vsel %vm3022, %v2975, %v1265
  %v3041 = vsel %vm3022, %v2976, %v1267
  %v3042 = vsel %vm3022, %v2977, %v1269
  %v3043 = vsel %vm3022, %v2978, %v1271
  %v3044 = vsel %vm3022, %v2979, %v1273
  %v3045 = vsel %vm3022, %v2980, %v1275
  %v3046 = vsel %vm3022, %v2981, %v1277
  %v3047 = vsel %vm3022, %v2982, %v1279
  %v3048 = vsel %vm3022, %v2983, %v1281
  %v3049 = vsel %vm3022, %v2984, %v1283
  %v3050 = vsel %vm3022, %v2985, %v1285
  %v3051 = vsel %vm3022, %v2986, %v1287
  %v3052 = vsel %vm3022, %v2987, %v1289
  %v3053 = vsel %vm3022, %v2988, %v1291
  %v3054 = vsel %vm3022, %v2989, %v1293
  %v3055 = vsel %vm3022, %v2990, %v1295
  %v3056 = vsel %vm3022, %v2991, %v1297
  %v3057 = vsel %vm3022, %v2992, %v1299
  %v3058 = vsel %vm3022, %v2993, %v1301
  %v3059 = vsel %vm3022, %v2994, %v1303
  %v3060 = vsel %vm3022, %v2995, %v1305
  %v3061 = vsel %vm3022, %v2996, %v1307
  %v3062 = vsel %vm3022, %v2997, %v1309
  %v3063 = vsel %vm3022, %v2998, %v1311
  %v3064 = vsel %vm3022, %v2999, %v1313
  %v3065 = vsel %vm3022, %v3000, %v1315
  %v3066 = vsel %vm3022, %v3001, %v1317
  %v3067 = vsel %vm3022, %v3002, %v1319
  %v3068 = vsel %vm3022, %v3003, %v1321
  %v3069 = vsel %vm3022, %v3004, %v1323
  %v3070 = vsel %vm3022, %v3005, %v1325
  %v3071 = vsel %vm3022, %v3006, %v1327
  %v3072 = vsel %vm3022, %v3007, %v1329
  %v3073 = vsel %vm3022, %v3008, %v1331
  %v3074 = vsel %vm3022, %v3009, %v1333
  %v3075 = vsel %vm3022, %v3010, %v1335
  %v3076 = vsel %vm3022, %v3011, %v1337
  %v3077 = vsel %vm3022, %v3012, %v1339
  %v3078 = vsel %vm3022, %v3013, %v1341
  %v3079 = vsel %vm3022, %v3014, %v1343
  %v3080 = vsel %vm3022, %v3015, %v1345
  %v3081 = vsel %vm3022, %v3016, %v1347
  %v3082 = vsel %vm3022, %v3017, %v1349
  %v3083 = vsel %vm3022, %v3018, %v1351
  %v3084 = vsel %vm3022, %v3019, %v1353
  %v3085 = vsel %vm3022, %v3020, %v1355
  %v3086 = vsel %vm3022, %v3021, %v1357
  %vm3087 = vcmask 48128
  %v3088 = vsel %vm3087, %v3023, %v1487
  %v3089 = vsel %vm3087, %v3024, %v1489
  %v3090 = vsel %vm3087, %v3025, %v1491
  %v3091 = vsel %vm3087, %v3026, %v1493
  %v3092 = vsel %vm3087, %v3027, %v1495
  %v3093 = vsel %vm3087, %v3028, %v1497
  %v3094 = vsel %vm3087, %v3029, %v1499
  %v3095 = vsel %vm3087, %v3030, %v1501
  %v3096 = vsel %vm3087, %v3031, %v1503
  %v3097 = vsel %vm3087, %v3032, %v1505
  %v3098 = vsel %vm3087, %v3033, %v1507
  %v3099 = vsel %vm3087, %v3034, %v1509
  %v3100 = vsel %vm3087, %v3035, %v1511
  %v3101 = vsel %vm3087, %v3036, %v1513
  %v3102 = vsel %vm3087, %v3037, %v1515
  %v3103 = vsel %vm3087, %v3038, %v1517
  %v3104 = vsel %vm3087, %v3039, %v1519
  %v3105 = vsel %vm3087, %v3040, %v1521
  %v3106 = vsel %vm3087, %v3041, %v1523
  %v3107 = vsel %vm3087, %v3042, %v1525
  %v3108 = vsel %vm3087, %v3043, %v1527
  %v3109 = vsel %vm3087, %v3044, %v1529
  %v3110 = vsel %vm3087, %v3045, %v1531
  %v3111 = vsel %vm3087, %v3046, %v1533
  %v3112 = vsel %vm3087, %v3047, %v1535
  %v3113 = vsel %vm3087, %v3048, %v1537
  %v3114 = vsel %vm3087, %v3049, %v1539
  %v3115 = vsel %vm3087, %v3050, %v1541
  %v3116 = vsel %vm3087, %v3051, %v1543
  %v3117 = vsel %vm3087, %v3052, %v1545
  %v3118 = vsel %vm3087, %v3053, %v1547
  %v3119 = vsel %vm3087, %v3054, %v1549
  %v3120 = vsel %vm3087, %v3055, %v1551
  %v3121 = vsel %vm3087, %v3056, %v1553
  %v3122 = vsel %vm3087, %v3057, %v1555
  %v3123 = vsel %vm3087, %v3058, %v1557
  %v3124 = vsel %vm3087, %v3059, %v1559
  %v3125 = vsel %vm3087, %v3060, %v1561
  %v3126 = vsel %vm3087, %v3061, %v1563
  %v3127 = vsel %vm3087, %v3062, %v1565
  %v3128 = vsel %vm3087, %v3063, %v1567
  %v3129 = vsel %vm3087, %v3064, %v1569
  %v3130 = vsel %vm3087, %v3065, %v1571
  %v3131 = vsel %vm3087, %v3066, %v1573
  %v3132 = vsel %vm3087, %v3067, %v1575
  %v3133 = vsel %vm3087, %v3068, %v1577
  %v3134 = vsel %vm3087, %v3069, %v1579
  %v3135 = vsel %vm3087, %v3070, %v1581
  %v3136 = vsel %vm3087, %v3071, %v1583
  %v3137 = vsel %vm3087, %v3072, %v1585
  %v3138 = vsel %vm3087, %v3073, %v1587
  %v3139 = vsel %vm3087, %v3074, %v1589
  %v3140 = vsel %vm3087, %v3075, %v1591
  %v3141 = vsel %vm3087, %v3076, %v1593
  %v3142 = vsel %vm3087, %v3077, %v1595
  %v3143 = vsel %vm3087, %v3078, %v1597
  %v3144 = vsel %vm3087, %v3079, %v1599
  %v3145 = vsel %vm3087, %v3080, %v1601
  %v3146 = vsel %vm3087, %v3081, %v1603
  %v3147 = vsel %vm3087, %v3082, %v1605
  %v3148 = vsel %vm3087, %v3083, %v1607
  %v3149 = vsel %vm3087, %v3084, %v1609
  %v3150 = vsel %vm3087, %v3085, %v1611
  %v3151 = vsel %vm3087, %v3086, %v1613
  %vm3152 = vcmask 64512
  %v3153 = vsel %vm3152, %v3088, %v1743
  %v3154 = vsel %vm3152, %v3089, %v1745
  %v3155 = vsel %vm3152, %v3090, %v1747
  %v3156 = vsel %vm3152, %v3091, %v1749
  %v3157 = vsel %vm3152, %v3092, %v1751
  %v3158 = vsel %vm3152, %v3093, %v1753
  %v3159 = vsel %vm3152, %v3094, %v1755
  %v3160 = vsel %vm3152, %v3095, %v1757
  %v3161 = vsel %vm3152, %v3096, %v1759
  %v3162 = vsel %vm3152, %v3097, %v1761
  %v3163 = vsel %vm3152, %v3098, %v1763
  %v3164 = vsel %vm3152, %v3099, %v1765
  %v3165 = vsel %vm3152, %v3100, %v1767
  %v3166 = vsel %vm3152, %v3101, %v1769
  %v3167 = vsel %vm3152, %v3102, %v1771
  %v3168 = vsel %vm3152, %v3103, %v1773
  %v3169 = vsel %vm3152, %v3104, %v1775
  %v3170 = vsel %vm3152, %v3105, %v1777
  %v3171 = vsel %vm3152, %v3106, %v1779
  %v3172 = vsel %vm3152, %v3107, %v1781
  %v3173 = vsel %vm3152, %v3108, %v1783
  %v3174 = vsel %vm3152, %v3109, %v1785
  %v3175 = vsel %vm3152, %v3110, %v1787
  %v3176 = vsel %vm3152, %v3111, %v1789
  %v3177 = vsel %vm3152, %v3112, %v1791
  %v3178 = vsel %vm3152, %v3113, %v1793
  %v3179 = vsel %vm3152, %v3114, %v1795
  %v3180 = vsel %vm3152, %v3115, %v1797
  %v3181 = vsel %vm3152, %v3116, %v1799
  %v3182 = vsel %vm3152, %v3117, %v1801
  %v3183 = vsel %vm3152, %v3118, %v1803
  %v3184 = vsel %vm3152, %v3119, %v1805
  %v3185 = vsel %vm3152, %v3120, %v1807
  %v3186 = vsel %vm3152, %v3121, %v1809
  %v3187 = vsel %vm3152, %v3122, %v1811
  %v3188 = vsel %vm3152, %v3123, %v1813
  %v3189 = vsel %vm3152, %v3124, %v1815
  %v3190 = vsel %vm3152, %v3125, %v1817
  %v3191 = vsel %vm3152, %v3126, %v1819
  %v3192 = vsel %vm3152, %v3127, %v1821
  %v3193 = vsel %vm3152, %v3128, %v1823
  %v3194 = vsel %vm3152, %v3129, %v1825
  %v3195 = vsel %vm3152, %v3130, %v1827
  %v3196 = vsel %vm3152, %v3131, %v1829
  %v3197 = vsel %vm3152, %v3132, %v1831
  %v3198 = vsel %vm3152, %v3133, %v1833
  %v3199 = vsel %vm3152, %v3134, %v1835
  %v3200 = vsel %vm3152, %v3135, %v1837
  %v3201 = vsel %vm3152, %v3136, %v1839
  %v3202 = vsel %vm3152, %v3137, %v1841
  %v3203 = vsel %vm3152, %v3138, %v1843
  %v3204 = vsel %vm3152, %v3139, %v1845
  %v3205 = vsel %vm3152, %v3140, %v1847
  %v3206 = vsel %vm3152, %v3141, %v1849
  %v3207 = vsel %vm3152, %v3142, %v1851
  %v3208 = vsel %vm3152, %v3143, %v1853
  %v3209 = vsel %vm3152, %v3144, %v1855
  %v3210 = vsel %vm3152, %v3145, %v1857
  %v3211 = vsel %vm3152, %v3146, %v1859
  %v3212 = vsel %vm3152, %v3147, %v1861
  %v3213 = vsel %vm3152, %v3148, %v1863
  %v3214 = vsel %vm3152, %v3149, %v1865
  %v3215 = vsel %vm3152, %v3150, %v1867
  %v3216 = vsel %vm3152, %v3151, %v1869
  %vm3217 = vcmask 80896
  %v3218 = vsel %vm3217, %v3153, %v1999
  %v3219 = vsel %vm3217, %v3154, %v2001
  %v3220 = vsel %vm3217, %v3155, %v2003
  %v3221 = vsel %vm3217, %v3156, %v2005
  %v3222 = vsel %vm3217, %v3157, %v2007
  %v3223 = vsel %vm3217, %v3158, %v2009
  %v3224 = vsel %vm3217, %v3159, %v2011
  %v3225 = vsel %vm3217, %v3160, %v2013
  %v3226 = vsel %vm3217, %v3161, %v2015
  %v3227 = vsel %vm3217, %v3162, %v2017
  %v3228 = vsel %vm3217, %v3163, %v2019
  %v3229 = vsel %vm3217, %v3164, %v2021
  %v3230 = vsel %vm3217, %v3165, %v2023
  %v3231 = vsel %vm3217, %v3166, %v2025
  %v3232 = vsel %vm3217, %v3167, %v2027
  %v3233 = vsel %vm3217, %v3168, %v2029
  %v3234 = vsel %vm3217, %v3169, %v2031
  %v3235 = vsel %vm3217, %v3170, %v2033
  %v3236 = vsel %vm3217, %v3171, %v2035
  %v3237 = vsel %vm3217, %v3172, %v2037
  %v3238 = vsel %vm3217, %v3173, %v2039
  %v3239 = vsel %vm3217, %v3174, %v2041
  %v3240 = vsel %vm3217, %v3175, %v2043
  %v3241 = vsel %vm3217, %v3176, %v2045
  %v3242 = vsel %vm3217, %v3177, %v2047
  %v3243 = vsel %vm3217, %v3178, %v2049
  %v3244 = vsel %vm3217, %v3179, %v2051
  %v3245 = vsel %vm3217, %v3180, %v2053
  %v3246 = vsel %vm3217, %v3181, %v2055
  %v3247 = vsel %vm3217, %v3182, %v2057
  %v3248 = vsel %vm3217, %v3183, %v2059
  %v3249 = vsel %vm3217, %v3184, %v2061
  %v3250 = vsel %vm3217, %v3185, %v2063
  %v3251 = vsel %vm3217, %v3186, %v2065
  %v3252 = vsel %vm3217, %v3187, %v2067
  %v3253 = vsel %vm3217, %v3188, %v2069
  %v3254 = vsel %vm3217, %v3189, %v2071
  %v3255 = vsel %vm3217, %v3190, %v2073
  %v3256 = vsel %vm3217, %v3191, %v2075
  %v3257 = vsel %vm3217, %v3192, %v2077
  %v3258 = vsel %vm3217, %v3193, %v2079
  %v3259 = vsel %vm3217, %v3194, %v2081
  %v3260 = vsel %vm3217, %v3195, %v2083
  %v3261 = vsel %vm3217, %v3196, %v2085
  %v3262 = vsel %vm3217, %v3197, %v2087
  %v3263 = vsel %vm3217, %v3198, %v2089
  %v3264 = vsel %vm3217, %v3199, %v2091
  %v3265 = vsel %vm3217, %v3200, %v2093
  %v3266 = vsel %vm3217, %v3201, %v2095
  %v3267 = vsel %vm3217, %v3202, %v2097
  %v3268 = vsel %vm3217, %v3203, %v2099
  %v3269 = vsel %vm3217, %v3204, %v2101
  %v3270 = vsel %vm3217, %v3205, %v2103
  %v3271 = vsel %vm3217, %v3206, %v2105
  %v3272 = vsel %vm3217, %v3207, %v2107
  %v3273 = vsel %vm3217, %v3208, %v2109
  %v3274 = vsel %vm3217, %v3209, %v2111
  %v3275 = vsel %vm3217, %v3210, %v2113
  %v3276 = vsel %vm3217, %v3211, %v2115
  %v3277 = vsel %vm3217, %v3212, %v2117
  %v3278 = vsel %vm3217, %v3213, %v2119
  %v3279 = vsel %vm3217, %v3214, %v2121
  %v3280 = vsel %vm3217, %v3215, %v2123
  %v3281 = vsel %vm3217, %v3216, %v2125
  %vm3282 = vcmask 97280
  %v3283 = vsel %vm3282, %v3218, %v2255
  %v3284 = vsel %vm3282, %v3219, %v2257
  %v3285 = vsel %vm3282, %v3220, %v2259
  %v3286 = vsel %vm3282, %v3221, %v2261
  %v3287 = vsel %vm3282, %v3222, %v2263
  %v3288 = vsel %vm3282, %v3223, %v2265
  %v3289 = vsel %vm3282, %v3224, %v2267
  %v3290 = vsel %vm3282, %v3225, %v2269
  %v3291 = vsel %vm3282, %v3226, %v2271
  %v3292 = vsel %vm3282, %v3227, %v2273
  %v3293 = vsel %vm3282, %v3228, %v2275
  %v3294 = vsel %vm3282, %v3229, %v2277
  %v3295 = vsel %vm3282, %v3230, %v2279
  %v3296 = vsel %vm3282, %v3231, %v2281
  %v3297 = vsel %vm3282, %v3232, %v2283
  %v3298 = vsel %vm3282, %v3233, %v2285
  %v3299 = vsel %vm3282, %v3234, %v2287
  %v3300 = vsel %vm3282, %v3235, %v2289
  %v3301 = vsel %vm3282, %v3236, %v2291
  %v3302 = vsel %vm3282, %v3237, %v2293
  %v3303 = vsel %vm3282, %v3238, %v2295
  %v3304 = vsel %vm3282, %v3239, %v2297
  %v3305 = vsel %vm3282, %v3240, %v2299
  %v3306 = vsel %vm3282, %v3241, %v2301
  %v3307 = vsel %vm3282, %v3242, %v2303
  %v3308 = vsel %vm3282, %v3243, %v2305
  %v3309 = vsel %vm3282, %v3244, %v2307
  %v3310 = vsel %vm3282, %v3245, %v2309
  %v3311 = vsel %vm3282, %v3246, %v2311
  %v3312 = vsel %vm3282, %v3247, %v2313
  %v3313 = vsel %vm3282, %v3248, %v2315
  %v3314 = vsel %vm3282, %v3249, %v2317
  %v3315 = vsel %vm3282, %v3250, %v2319
  %v3316 = vsel %vm3282, %v3251, %v2321
  %v3317 = vsel %vm3282, %v3252, %v2323
  %v3318 = vsel %vm3282, %v3253, %v2325
  %v3319 = vsel %vm3282, %v3254, %v2327
  %v3320 = vsel %vm3282, %v3255, %v2329
  %v3321 = vsel %vm3282, %v3256, %v2331
  %v3322 = vsel %vm3282, %v3257, %v2333
  %v3323 = vsel %vm3282, %v3258, %v2335
  %v3324 = vsel %vm3282, %v3259, %v2337
  %v3325 = vsel %vm3282, %v3260, %v2339
  %v3326 = vsel %vm3282, %v3261, %v2341
  %v3327 = vsel %vm3282, %v3262, %v2343
  %v3328 = vsel %vm3282, %v3263, %v2345
  %v3329 = vsel %vm3282, %v3264, %v2347
  %v3330 = vsel %vm3282, %v3265, %v2349
  %v3331 = vsel %vm3282, %v3266, %v2351
  %v3332 = vsel %vm3282, %v3267, %v2353
  %v3333 = vsel %vm3282, %v3268, %v2355
  %v3334 = vsel %vm3282, %v3269, %v2357
  %v3335 = vsel %vm3282, %v3270, %v2359
  %v3336 = vsel %vm3282, %v3271, %v2361
  %v3337 = vsel %vm3282, %v3272, %v2363
  %v3338 = vsel %vm3282, %v3273, %v2365
  %v3339 = vsel %vm3282, %v3274, %v2367
  %v3340 = vsel %vm3282, %v3275, %v2369
  %v3341 = vsel %vm3282, %v3276, %v2371
  %v3342 = vsel %vm3282, %v3277, %v2373
  %v3343 = vsel %vm3282, %v3278, %v2375
  %v3344 = vsel %vm3282, %v3279, %v2377
  %v3345 = vsel %vm3282, %v3280, %v2379
  %v3346 = vsel %vm3282, %v3281, %v2381
  %vm3347 = vcmask 113664
  %v3348 = vsel %vm3347, %v3283, %v2511
  %v3349 = vsel %vm3347, %v3284, %v2513
  %v3350 = vsel %vm3347, %v3285, %v2515
  %v3351 = vsel %vm3347, %v3286, %v2517
  %v3352 = vsel %vm3347, %v3287, %v2519
  %v3353 = vsel %vm3347, %v3288, %v2521
  %v3354 = vsel %vm3347, %v3289, %v2523
  %v3355 = vsel %vm3347, %v3290, %v2525
  %v3356 = vsel %vm3347, %v3291, %v2527
  %v3357 = vsel %vm3347, %v3292, %v2529
  %v3358 = vsel %vm3347, %v3293, %v2531
  %v3359 = vsel %vm3347, %v3294, %v2533
  %v3360 = vsel %vm3347, %v3295, %v2535
  %v3361 = vsel %vm3347, %v3296, %v2537
  %v3362 = vsel %vm3347, %v3297, %v2539
  %v3363 = vsel %vm3347, %v3298, %v2541
  %v3364 = vsel %vm3347, %v3299, %v2543
  %v3365 = vsel %vm3347, %v3300, %v2545
  %v3366 = vsel %vm3347, %v3301, %v2547
  %v3367 = vsel %vm3347, %v3302, %v2549
  %v3368 = vsel %vm3347, %v3303, %v2551
  %v3369 = vsel %vm3347, %v3304, %v2553
  %v3370 = vsel %vm3347, %v3305, %v2555
  %v3371 = vsel %vm3347, %v3306, %v2557
  %v3372 = vsel %vm3347, %v3307, %v2559
  %v3373 = vsel %vm3347, %v3308, %v2561
  %v3374 = vsel %vm3347, %v3309, %v2563
  %v3375 = vsel %vm3347, %v3310, %v2565
  %v3376 = vsel %vm3347, %v3311, %v2567
  %v3377 = vsel %vm3347, %v3312, %v2569
  %v3378 = vsel %vm3347, %v3313, %v2571
  %v3379 = vsel %vm3347, %v3314, %v2573
  %v3380 = vsel %vm3347, %v3315, %v2575
  %v3381 = vsel %vm3347, %v3316, %v2577
  %v3382 = vsel %vm3347, %v3317, %v2579
  %v3383 = vsel %vm3347, %v3318, %v2581
  %v3384 = vsel %vm3347, %v3319, %v2583
  %v3385 = vsel %vm3347, %v3320, %v2585
  %v3386 = vsel %vm3347, %v3321, %v2587
  %v3387 = vsel %vm3347, %v3322, %v2589
  %v3388 = vsel %vm3347, %v3323, %v2591
  %v3389 = vsel %vm3347, %v3324, %v2593
  %v3390 = vsel %vm3347, %v3325, %v2595
  %v3391 = vsel %vm3347, %v3326, %v2597
  %v3392 = vsel %vm3347, %v3327, %v2599
  %v3393 = vsel %vm3347, %v3328, %v2601
  %v3394 = vsel %vm3347, %v3329, %v2603
  %v3395 = vsel %vm3347, %v3330, %v2605
  %v3396 = vsel %vm3347, %v3331, %v2607
  %v3397 = vsel %vm3347, %v3332, %v2609
  %v3398 = vsel %vm3347, %v3333, %v2611
  %v3399 = vsel %vm3347, %v3334, %v2613
  %v3400 = vsel %vm3347, %v3335, %v2615
  %v3401 = vsel %vm3347, %v3336, %v2617
  %v3402 = vsel %vm3347, %v3337, %v2619
  %v3403 = vsel %vm3347, %v3338, %v2621
  %v3404 = vsel %vm3347, %v3339, %v2623
  %v3405 = vsel %vm3347, %v3340, %v2625
  %v3406 = vsel %vm3347, %v3341, %v2627
  %v3407 = vsel %vm3347, %v3342, %v2629
  %v3408 = vsel %vm3347, %v3343, %v2631
  %v3409 = vsel %vm3347, %v3344, %v2633
  %v3410 = vsel %vm3347, %v3345, %v2635
  %v3411 = vsel %vm3347, %v3346, %v2637
  %vm3412 = vcmask 130048
  %v3413 = vsel %vm3412, %v3348, %v2767
  %v3414 = vsel %vm3412, %v3349, %v2769
  %v3415 = vsel %vm3412, %v3350, %v2771
  %v3416 = vsel %vm3412, %v3351, %v2773
  %v3417 = vsel %vm3412, %v3352, %v2775
  %v3418 = vsel %vm3412, %v3353, %v2777
  %v3419 = vsel %vm3412, %v3354, %v2779
  %v3420 = vsel %vm3412, %v3355, %v2781
  %v3421 = vsel %vm3412, %v3356, %v2783
  %v3422 = vsel %vm3412, %v3357, %v2785
  %v3423 = vsel %vm3412, %v3358, %v2787
  %v3424 = vsel %vm3412, %v3359, %v2789
  %v3425 = vsel %vm3412, %v3360, %v2791
  %v3426 = vsel %vm3412, %v3361, %v2793
  %v3427 = vsel %vm3412, %v3362, %v2795
  %v3428 = vsel %vm3412, %v3363, %v2797
  %v3429 = vsel %vm3412, %v3364, %v2799
  %v3430 = vsel %vm3412, %v3365, %v2801
  %v3431 = vsel %vm3412, %v3366, %v2803
  %v3432 = vsel %vm3412, %v3367, %v2805
  %v3433 = vsel %vm3412, %v3368, %v2807
  %v3434 = vsel %vm3412, %v3369, %v2809
  %v3435 = vsel %vm3412, %v3370, %v2811
  %v3436 = vsel %vm3412, %v3371, %v2813
  %v3437 = vsel %vm3412, %v3372, %v2815
  %v3438 = vsel %vm3412, %v3373, %v2817
  %v3439 = vsel %vm3412, %v3374, %v2819
  %v3440 = vsel %vm3412, %v3375, %v2821
  %v3441 = vsel %vm3412, %v3376, %v2823
  %v3442 = vsel %vm3412, %v3377, %v2825
  %v3443 = vsel %vm3412, %v3378, %v2827
  %v3444 = vsel %vm3412, %v3379, %v2829
  %v3445 = vsel %vm3412, %v3380, %v2831
  %v3446 = vsel %vm3412, %v3381, %v2833
  %v3447 = vsel %vm3412, %v3382, %v2835
  %v3448 = vsel %vm3412, %v3383, %v2837
  %v3449 = vsel %vm3412, %v3384, %v2839
  %v3450 = vsel %vm3412, %v3385, %v2841
  %v3451 = vsel %vm3412, %v3386, %v2843
  %v3452 = vsel %vm3412, %v3387, %v2845
  %v3453 = vsel %vm3412, %v3388, %v2847
  %v3454 = vsel %vm3412, %v3389, %v2849
  %v3455 = vsel %vm3412, %v3390, %v2851
  %v3456 = vsel %vm3412, %v3391, %v2853
  %v3457 = vsel %vm3412, %v3392, %v2855
  %v3458 = vsel %vm3412, %v3393, %v2857
  %v3459 = vsel %vm3412, %v3394, %v2859
  %v3460 = vsel %vm3412, %v3395, %v2861
  %v3461 = vsel %vm3412, %v3396, %v2863
  %v3462 = vsel %vm3412, %v3397, %v2865
  %v3463 = vsel %vm3412, %v3398, %v2867
  %v3464 = vsel %vm3412, %v3399, %v2869
  %v3465 = vsel %vm3412, %v3400, %v2871
  %v3466 = vsel %vm3412, %v3401, %v2873
  %v3467 = vsel %vm3412, %v3402, %v2875
  %v3468 = vsel %vm3412, %v3403, %v2877
  %v3469 = vsel %vm3412, %v3404, %v2879
  %v3470 = vsel %vm3412, %v3405, %v2881
  %v3471 = vsel %vm3412, %v3406, %v2883
  %v3472 = vsel %vm3412, %v3407, %v2885
  %v3473 = vsel %vm3412, %v3408, %v2887
  %v3474 = vsel %vm3412, %v3409, %v2889
  %v3475 = vsel %vm3412, %v3410, %v2891
  %v3476 = vsel %vm3412, %v3411, %v2893
  %v3477 = vpack.c.bf16 %v3414, %v3413
  %v3478 = vpack.c.bf16 %v3416, %v3415
  %v3479 = vpack.c.bf16 %v3418, %v3417
  %v3480 = vpack.c.bf16 %v3420, %v3419
  %v3481 = vpack.c.bf16 %v3422, %v3421
  %v3482 = vpack.c.bf16 %v3424, %v3423
  %v3483 = vpack.c.bf16 %v3426, %v3425
  %v3484 = vpack.c.bf16 %v3428, %v3427
  %v3485 = vpack.c.bf16 %v3430, %v3429
  %v3486 = vpack.c.bf16 %v3432, %v3431
  %v3487 = vpack.c.bf16 %v3434, %v3433
  %v3488 = vpack.c.bf16 %v3436, %v3435
  %v3489 = vpack.c.bf16 %v3438, %v3437
  %v3490 = vpack.c.bf16 %v3440, %v3439
  %v3491 = vpack.c.bf16 %v3442, %v3441
  %v3492 = vpack.c.bf16 %v3444, %v3443
  %v3493 = vpack.c.bf16 %v3446, %v3445
  %v3494 = vpack.c.bf16 %v3448, %v3447
  %v3495 = vpack.c.bf16 %v3450, %v3449
  %v3496 = vpack.c.bf16 %v3452, %v3451
  %v3497 = vpack.c.bf16 %v3454, %v3453
  %v3498 = vpack.c.bf16 %v3456, %v3455
  %v3499 = vpack.c.bf16 %v3458, %v3457
  %v3500 = vpack.c.bf16 %v3460, %v3459
  %v3501 = vpack.c.bf16 %v3462, %v3461
  %v3502 = vpack.c.bf16 %v3464, %v3463
  %v3503 = vpack.c.bf16 %v3466, %v3465
  %v3504 = vpack.c.bf16 %v3468, %v3467
  %v3505 = vpack.c.bf16 %v3470, %v3469
  %v3506 = vpack.c.bf16 %v3472, %v3471
  %v3507 = vpack.c.bf16 %v3474, %v3473
  %v3508 = vpack.c.bf16 %v3476, %v3475
  %v3509 = vld [vmem:[%s1] sm:$0xf]
  %v3510 = vld [vmem:[%s1 + $0x4] sm:$0xf]
  %v3511 = vld [vmem:[%s1 + $0x8] sm:$0x1]
  %v3512 = vld [vmem:[%s2] sm:$0x1]
  %v3514 = vlaneseq
  %v3515 = vshrl.u32 %v3514, 7
  %v3516 = vsub.s32 0, %v3515
  %v3517 = vrot.slane %v3512, %v3516
  %v3522 = vunpack.c.l.b16 %v3509
  %v3523 = vunpack.c.l.b16 %v3510
  %v3524 = vunpack.c.l.b16 %v3511
  %v3525 = vpack.c.b16 %v3523, %v3522
  %v3526 = vpack.c.b16 %v3524, %v3524
  %vm3528 = vcmask 146432
  %v3530 = vsel %vm3528, %v3477, 0
  %v3533 = vsel %vm3528, %v3478, 0
  %v3536 = vsel %vm3528, %v3479, 0
  %v3539 = vsel %vm3528, %v3480, 0
  %v3542 = vsel %vm3528, %v3481, 0
  %v3545 = vsel %vm3528, %v3482, 0
  %v3548 = vsel %vm3528, %v3483, 0
  %v3551 = vsel %vm3528, %v3484, 0
  %v3554 = vsel %vm3528, %v3485, 0
  %v3557 = vsel %vm3528, %v3486, 0
  %v3560 = vsel %vm3528, %v3487, 0
  %v3563 = vsel %vm3528, %v3488, 0
  %v3566 = vsel %vm3528, %v3489, 0
  %v3569 = vsel %vm3528, %v3490, 0
  %v3572 = vsel %vm3528, %v3491, 0
  %v3575 = vsel %vm3528, %v3492, 0
  %v3578 = vsel %vm3528, %v3493, 0
  %v3581 = vsel %vm3528, %v3494, 0
  %v3584 = vsel %vm3528, %v3495, 0
  %v3587 = vsel %vm3528, %v3496, 0
  %v3590 = vsel %vm3528, %v3497, 0
  %v3593 = vsel %vm3528, %v3498, 0
  %v3596 = vsel %vm3528, %v3499, 0
  %v3599 = vsel %vm3528, %v3500, 0
  %v3602 = vsel %vm3528, %v3501, 0
  %v3605 = vsel %vm3528, %v3502, 0
  %v3608 = vsel %vm3528, %v3503, 0
  %v3611 = vsel %vm3528, %v3504, 0
  %v3614 = vsel %vm3528, %v3505, 0
  %v3617 = vsel %vm3528, %v3506, 0
  %v3620 = vsel %vm3528, %v3507, 0
  %v3623 = vsel %vm3528, %v3508, 0
  %vm3625 = vcmask 1040384
  %v3627 = vsel %vm3625, %v3526, 0
  %3629 = vmatprep.subr.bf16.mxu0 0
  %3630 = vmatpush1.bf16.msra.mxu0 %v3525
  %3631 = vmatprep.subr.bf16.mxu0 0
  %3632 = vmatpush1.bf16.msra.mxu0 %v3627
  %3633 = vmatprep.subr.bf16.mxu0 0
  %3634 = vmatpush1.bf16.msra.mxu0 0
  %3635 = vmatprep.subr.bf16.mxu0 0
  %3636 = vmatpush1.bf16.msra.mxu0 0
  %3637 = vmatprep.subr.bf16.mxu0 0
  %3638 = vmatpush1.bf16.msra.mxu0 0
  %3639 = vmatprep.subr.bf16.mxu0 0
  %3640 = vmatpush1.bf16.msra.mxu0 0
  %3641 = vmatprep.subr.bf16.mxu0 0
  %3642 = vmatpush1.bf16.msra.mxu0 0
  %3643 = vmatprep.subr.bf16.mxu0 0
  %3644 = vmatpush1.bf16.msra.mxu0 0
  %3645 = vmatprep.subr.bf16.mxu0 0
  %3646 = vmatpush1.bf16.msra.mxu0 0
  %3647 = vmatprep.subr.bf16.mxu0 0
  %3648 = vmatpush1.bf16.msra.mxu0 0
  %3649 = vmatprep.subr.bf16.mxu0 0
  %3650 = vmatpush1.bf16.msra.mxu0 0
  %3651 = vmatprep.subr.bf16.mxu0 0
  %3652 = vmatpush1.bf16.msra.mxu0 0
  %3653 = vmatprep.subr.bf16.mxu0 0
  %3654 = vmatpush1.bf16.msra.mxu0 0
  %3655 = vmatprep.subr.bf16.mxu0 0
  %3656 = vmatpush1.bf16.msra.mxu0 0
  %3657 = vmatprep.subr.bf16.mxu0 0
  %3658 = vmatpush1.bf16.msra.mxu0 0
  %3659 = vmatprep.subr.bf16.mxu0 0
  %3660 = vmatpush1.bf16.msra.mxu0 0
  %3661 = vmatprep.mubr.bf16.mxu0 0
  %3662 = vmatmul.mubr.bf16.gmra.mrb[0].mxu0 %v3530
  %v3663 = vpop.f32.mrb[0].mxu0
  %v3664 = vadd.f32 %v3517, %v3663
  %v3665 = vpop.f32.mrb[0].mxu0
  %v3666 = vpop.f32.mrb[0].mxu0
  %v3667 = vadd.f32 %v3517, %v3666
  %v3668 = vpop.f32.mrb[0].mxu0
  %3669 = vmatprep.mubr.bf16.mxu0 0
  %3670 = vmatmul.mubr.bf16.gmra.mrb[0].mxu0 %v3533
  %v3671 = vpop.f32.mrb[0].mxu0
  %v3672 = vadd.f32 %v3517, %v3671
  %v3673 = vpop.f32.mrb[0].mxu0
  %v3674 = vpop.f32.mrb[0].mxu0
  %v3675 = vadd.f32 %v3517, %v3674
  %v3676 = vpop.f32.mrb[0].mxu0
  %3677 = vmatprep.mubr.bf16.mxu0 0
  %3678 = vmatmul.mubr.bf16.gmra.mrb[0].mxu0 %v3536
  %v3679 = vpop.f32.mrb[0].mxu0
  %v3680 = vadd.f32 %v3517, %v3679
  %v3681 = vpop.f32.mrb[0].mxu0
  %v3682 = vpop.f32.mrb[0].mxu0
  %v3683 = vadd.f32 %v3517, %v3682
  %v3684 = vpop.f32.mrb[0].mxu0
  %3685 = vmatprep.mubr.bf16.mxu0 0
  %3686 = vmatmul.mubr.bf16.gmra.mrb[0].mxu0 %v3539
  %v3687 = vpop.f32.mrb[0].mxu0
  %v3688 = vadd.f32 %v3517, %v3687
  %v3689 = vpop.f32.mrb[0].mxu0
  %v3690 = vpop.f32.mrb[0].mxu0
  %v3691 = vadd.f32 %v3517, %v3690
  %v3692 = vpop.f32.mrb[0].mxu0
  %3693 = vmatprep.mubr.bf16.mxu0 0
  %3694 = vmatmul.mubr.bf16.gmra.mrb[0].mxu0 %v3542
  %v3695 = vpop.f32.mrb[0].mxu0
  %v3696 = vadd.f32 %v3517, %v3695
  %v3697 = vpop.f32.mrb[0].mxu0
  %v3698 = vpop.f32.mrb[0].mxu0
  %v3699 = vadd.f32 %v3517, %v3698
  %v3700 = vpop.f32.mrb[0].mxu0
  %3701 = vmatprep.mubr.bf16.mxu0 0
  %3702 = vmatmul.mubr.bf16.gmra.mrb[0].mxu0 %v3545
  %v3703 = vpop.f32.mrb[0].mxu0
  %v3704 = vadd.f32 %v3517, %v3703
  %v3705 = vpop.f32.mrb[0].mxu0
  %v3706 = vpop.f32.mrb[0].mxu0
  %v3707 = vadd.f32 %v3517, %v3706
  %v3708 = vpop.f32.mrb[0].mxu0
  %3709 = vmatprep.mubr.bf16.mxu0 0
  %3710 = vmatmul.mubr.bf16.gmra.mrb[0].mxu0 %v3548
  %v3711 = vpop.f32.mrb[0].mxu0
  %v3712 = vadd.f32 %v3517, %v3711
  %v3713 = vpop.f32.mrb[0].mxu0
  %v3714 = vpop.f32.mrb[0].mxu0
  %v3715 = vadd.f32 %v3517, %v3714
  %v3716 = vpop.f32.mrb[0].mxu0
  %3717 = vmatprep.mubr.bf16.mxu0 0
  %3718 = vmatmul.mubr.bf16.gmra.mrb[0].mxu0 %v3551
  %v3719 = vpop.f32.mrb[0].mxu0
  %v3720 = vadd.f32 %v3517, %v3719
  %v3721 = vpop.f32.mrb[0].mxu0
  %v3722 = vpop.f32.mrb[0].mxu0
  %v3723 = vadd.f32 %v3517, %v3722
  %v3724 = vpop.f32.mrb[0].mxu0
  %3725 = vmatprep.mubr.bf16.mxu0 0
  %3726 = vmatmul.mubr.bf16.gmra.mrb[0].mxu0 %v3554
  %v3727 = vpop.f32.mrb[0].mxu0
  %v3728 = vadd.f32 %v3517, %v3727
  %v3729 = vpop.f32.mrb[0].mxu0
  %v3730 = vpop.f32.mrb[0].mxu0
  %v3731 = vadd.f32 %v3517, %v3730
  %v3732 = vpop.f32.mrb[0].mxu0
  %3733 = vmatprep.mubr.bf16.mxu0 0
  %3734 = vmatmul.mubr.bf16.gmra.mrb[0].mxu0 %v3557
  %v3735 = vpop.f32.mrb[0].mxu0
  %v3736 = vadd.f32 %v3517, %v3735
  %v3737 = vpop.f32.mrb[0].mxu0
  %v3738 = vpop.f32.mrb[0].mxu0
  %v3739 = vadd.f32 %v3517, %v3738
  %v3740 = vpop.f32.mrb[0].mxu0
  %3741 = vmatprep.mubr.bf16.mxu0 0
  %3742 = vmatmul.mubr.bf16.gmra.mrb[0].mxu0 %v3560
  %v3743 = vpop.f32.mrb[0].mxu0
  %v3744 = vadd.f32 %v3517, %v3743
  %v3745 = vpop.f32.mrb[0].mxu0
  %v3746 = vpop.f32.mrb[0].mxu0
  %v3747 = vadd.f32 %v3517, %v3746
  %v3748 = vpop.f32.mrb[0].mxu0
  %3749 = vmatprep.mubr.bf16.mxu0 0
  %3750 = vmatmul.mubr.bf16.gmra.mrb[0].mxu0 %v3563
  %v3751 = vpop.f32.mrb[0].mxu0
  %v3752 = vadd.f32 %v3517, %v3751
  %v3753 = vpop.f32.mrb[0].mxu0
  %v3754 = vpop.f32.mrb[0].mxu0
  %v3755 = vadd.f32 %v3517, %v3754
  %v3756 = vpop.f32.mrb[0].mxu0
  %3757 = vmatprep.mubr.bf16.mxu0 0
  %3758 = vmatmul.mubr.bf16.gmra.mrb[0].mxu0 %v3566
  %v3759 = vpop.f32.mrb[0].mxu0
  %v3760 = vadd.f32 %v3517, %v3759
  %v3761 = vpop.f32.mrb[0].mxu0
  %v3762 = vpop.f32.mrb[0].mxu0
  %v3763 = vadd.f32 %v3517, %v3762
  %v3764 = vpop.f32.mrb[0].mxu0
  %3765 = vmatprep.mubr.bf16.mxu0 0
  %3766 = vmatmul.mubr.bf16.gmra.mrb[0].mxu0 %v3569
  %v3767 = vpop.f32.mrb[0].mxu0
  %v3768 = vadd.f32 %v3517, %v3767
  %v3769 = vpop.f32.mrb[0].mxu0
  %v3770 = vpop.f32.mrb[0].mxu0
  %v3771 = vadd.f32 %v3517, %v3770
  %v3772 = vpop.f32.mrb[0].mxu0
  %3773 = vmatprep.mubr.bf16.mxu0 0
  %3774 = vmatmul.mubr.bf16.gmra.mrb[0].mxu0 %v3572
  %v3775 = vpop.f32.mrb[0].mxu0
  %v3776 = vadd.f32 %v3517, %v3775
  %v3777 = vpop.f32.mrb[0].mxu0
  %v3778 = vpop.f32.mrb[0].mxu0
  %v3779 = vadd.f32 %v3517, %v3778
  %v3780 = vpop.f32.mrb[0].mxu0
  %3781 = vmatprep.mubr.bf16.mxu0 0
  %3782 = vmatmul.mubr.bf16.gmra.mrb[0].mxu0 %v3575
  %v3783 = vpop.f32.mrb[0].mxu0
  %v3784 = vadd.f32 %v3517, %v3783
  %v3785 = vpop.f32.mrb[0].mxu0
  %v3786 = vpop.f32.mrb[0].mxu0
  %v3787 = vadd.f32 %v3517, %v3786
  %v3788 = vpop.f32.mrb[0].mxu0
  %3789 = vmatprep.mubr.bf16.mxu0 0
  %3790 = vmatmul.mubr.bf16.gmra.mrb[0].mxu0 %v3578
  %v3791 = vpop.f32.mrb[0].mxu0
  %v3792 = vadd.f32 %v3517, %v3791
  %v3793 = vpop.f32.mrb[0].mxu0
  %v3794 = vpop.f32.mrb[0].mxu0
  %v3795 = vadd.f32 %v3517, %v3794
  %v3796 = vpop.f32.mrb[0].mxu0
  %3797 = vmatprep.mubr.bf16.mxu0 0
  %3798 = vmatmul.mubr.bf16.gmra.mrb[0].mxu0 %v3581
  %v3799 = vpop.f32.mrb[0].mxu0
  %v3800 = vadd.f32 %v3517, %v3799
  %v3801 = vpop.f32.mrb[0].mxu0
  %v3802 = vpop.f32.mrb[0].mxu0
  %v3803 = vadd.f32 %v3517, %v3802
  %v3804 = vpop.f32.mrb[0].mxu0
  %3805 = vmatprep.mubr.bf16.mxu0 0
  %3806 = vmatmul.mubr.bf16.gmra.mrb[0].mxu0 %v3584
  %v3807 = vpop.f32.mrb[0].mxu0
  %v3808 = vadd.f32 %v3517, %v3807
  %v3809 = vpop.f32.mrb[0].mxu0
  %v3810 = vpop.f32.mrb[0].mxu0
  %v3811 = vadd.f32 %v3517, %v3810
  %v3812 = vpop.f32.mrb[0].mxu0
  %3813 = vmatprep.mubr.bf16.mxu0 0
  %3814 = vmatmul.mubr.bf16.gmra.mrb[0].mxu0 %v3587
  %v3815 = vpop.f32.mrb[0].mxu0
  %v3816 = vadd.f32 %v3517, %v3815
  %v3817 = vpop.f32.mrb[0].mxu0
  %v3818 = vpop.f32.mrb[0].mxu0
  %v3819 = vadd.f32 %v3517, %v3818
  %v3820 = vpop.f32.mrb[0].mxu0
  %3821 = vmatprep.mubr.bf16.mxu0 0
  %3822 = vmatmul.mubr.bf16.gmra.mrb[0].mxu0 %v3590
  %v3823 = vpop.f32.mrb[0].mxu0
  %v3824 = vadd.f32 %v3517, %v3823
  %v3825 = vpop.f32.mrb[0].mxu0
  %v3826 = vpop.f32.mrb[0].mxu0
  %v3827 = vadd.f32 %v3517, %v3826
  %v3828 = vpop.f32.mrb[0].mxu0
  %3829 = vmatprep.mubr.bf16.mxu0 0
  %3830 = vmatmul.mubr.bf16.gmra.mrb[0].mxu0 %v3593
  %v3831 = vpop.f32.mrb[0].mxu0
  %v3832 = vadd.f32 %v3517, %v3831
  %v3833 = vpop.f32.mrb[0].mxu0
  %v3834 = vpop.f32.mrb[0].mxu0
  %v3835 = vadd.f32 %v3517, %v3834
  %v3836 = vpop.f32.mrb[0].mxu0
  %3837 = vmatprep.mubr.bf16.mxu0 0
  %3838 = vmatmul.mubr.bf16.gmra.mrb[0].mxu0 %v3596
  %v3839 = vpop.f32.mrb[0].mxu0
  %v3840 = vadd.f32 %v3517, %v3839
  %v3841 = vpop.f32.mrb[0].mxu0
  %v3842 = vpop.f32.mrb[0].mxu0
  %v3843 = vadd.f32 %v3517, %v3842
  %v3844 = vpop.f32.mrb[0].mxu0
  %3845 = vmatprep.mubr.bf16.mxu0 0
  %3846 = vmatmul.mubr.bf16.gmra.mrb[0].mxu0 %v3599
  %v3847 = vpop.f32.mrb[0].mxu0
  %v3848 = vadd.f32 %v3517, %v3847
  %v3849 = vpop.f32.mrb[0].mxu0
  %v3850 = vpop.f32.mrb[0].mxu0
  %v3851 = vadd.f32 %v3517, %v3850
  %v3852 = vpop.f32.mrb[0].mxu0
  %3853 = vmatprep.mubr.bf16.mxu0 0
  %3854 = vmatmul.mubr.bf16.gmra.mrb[0].mxu0 %v3602
  %v3855 = vpop.f32.mrb[0].mxu0
  %v3856 = vadd.f32 %v3517, %v3855
  %v3857 = vpop.f32.mrb[0].mxu0
  %v3858 = vpop.f32.mrb[0].mxu0
  %v3859 = vadd.f32 %v3517, %v3858
  %v3860 = vpop.f32.mrb[0].mxu0
  %3861 = vmatprep.mubr.bf16.mxu0 0
  %3862 = vmatmul.mubr.bf16.gmra.mrb[0].mxu0 %v3605
  %v3863 = vpop.f32.mrb[0].mxu0
  %v3864 = vadd.f32 %v3517, %v3863
  %v3865 = vpop.f32.mrb[0].mxu0
  %v3866 = vpop.f32.mrb[0].mxu0
  %v3867 = vadd.f32 %v3517, %v3866
  %v3868 = vpop.f32.mrb[0].mxu0
  %3869 = vmatprep.mubr.bf16.mxu0 0
  %3870 = vmatmul.mubr.bf16.gmra.mrb[0].mxu0 %v3608
  %v3871 = vpop.f32.mrb[0].mxu0
  %v3872 = vadd.f32 %v3517, %v3871
  %v3873 = vpop.f32.mrb[0].mxu0
  %v3874 = vpop.f32.mrb[0].mxu0
  %v3875 = vadd.f32 %v3517, %v3874
  %v3876 = vpop.f32.mrb[0].mxu0
  %3877 = vmatprep.mubr.bf16.mxu0 0
  %3878 = vmatmul.mubr.bf16.gmra.mrb[0].mxu0 %v3611
  %v3879 = vpop.f32.mrb[0].mxu0
  %v3880 = vadd.f32 %v3517, %v3879
  %v3881 = vpop.f32.mrb[0].mxu0
  %v3882 = vpop.f32.mrb[0].mxu0
  %v3883 = vadd.f32 %v3517, %v3882
  %v3884 = vpop.f32.mrb[0].mxu0
  %3885 = vmatprep.mubr.bf16.mxu0 0
  %3886 = vmatmul.mubr.bf16.gmra.mrb[0].mxu0 %v3614
  %v3887 = vpop.f32.mrb[0].mxu0
  %v3888 = vadd.f32 %v3517, %v3887
  %v3889 = vpop.f32.mrb[0].mxu0
  %v3890 = vpop.f32.mrb[0].mxu0
  %v3891 = vadd.f32 %v3517, %v3890
  %v3892 = vpop.f32.mrb[0].mxu0
  %3893 = vmatprep.mubr.bf16.mxu0 0
  %3894 = vmatmul.mubr.bf16.gmra.mrb[0].mxu0 %v3617
  %v3895 = vpop.f32.mrb[0].mxu0
  %v3896 = vadd.f32 %v3517, %v3895
  %v3897 = vpop.f32.mrb[0].mxu0
  %v3898 = vpop.f32.mrb[0].mxu0
  %v3899 = vadd.f32 %v3517, %v3898
  %v3900 = vpop.f32.mrb[0].mxu0
  %3901 = vmatprep.mubr.bf16.mxu0 0
  %3902 = vmatmul.mubr.bf16.gmra.mrb[0].mxu0 %v3620
  %v3903 = vpop.f32.mrb[0].mxu0
  %v3904 = vadd.f32 %v3517, %v3903
  %v3905 = vpop.f32.mrb[0].mxu0
  %v3906 = vpop.f32.mrb[0].mxu0
  %v3907 = vadd.f32 %v3517, %v3906
  %v3908 = vpop.f32.mrb[0].mxu0
  %3909 = vmatprep.mubr.bf16.mxu0 0
  %3910 = vmatmul.mubr.bf16.gmra.mrb[0].mxu0 %v3623
  %v3911 = vpop.f32.mrb[0].mxu0
  %v3912 = vadd.f32 %v3517, %v3911
  %v3913 = vpop.f32.mrb[0].mxu0
  %v3914 = vpop.f32.mrb[0].mxu0
  %v3915 = vadd.f32 %v3517, %v3914
  %v3916 = vpop.f32.mrb[0].mxu0
  %3917 = vdwg.mxu0
  %v3918 = vmax.f32 %v3664, 0.0
  %v3919 = vmax.f32 %v3667, 0.0
  %v3920 = vmax.f32 %v3672, 0.0
  %v3921 = vmax.f32 %v3675, 0.0
  %v3922 = vmax.f32 %v3680, 0.0
  %v3923 = vmax.f32 %v3683, 0.0
  %v3924 = vmax.f32 %v3688, 0.0
  %v3925 = vmax.f32 %v3691, 0.0
  %v3926 = vmax.f32 %v3696, 0.0
  %v3927 = vmax.f32 %v3699, 0.0
  %v3928 = vmax.f32 %v3704, 0.0
  %v3929 = vmax.f32 %v3707, 0.0
  %v3930 = vmax.f32 %v3712, 0.0
  %v3931 = vmax.f32 %v3715, 0.0
  %v3932 = vmax.f32 %v3720, 0.0
  %v3933 = vmax.f32 %v3723, 0.0
  %v3934 = vmax.f32 %v3728, 0.0
  %v3935 = vmax.f32 %v3731, 0.0
  %v3936 = vmax.f32 %v3736, 0.0
  %v3937 = vmax.f32 %v3739, 0.0
  %v3938 = vmax.f32 %v3744, 0.0
  %v3939 = vmax.f32 %v3747, 0.0
  %v3940 = vmax.f32 %v3752, 0.0
  %v3941 = vmax.f32 %v3755, 0.0
  %v3942 = vmax.f32 %v3760, 0.0
  %v3943 = vmax.f32 %v3763, 0.0
  %v3944 = vmax.f32 %v3768, 0.0
  %v3945 = vmax.f32 %v3771, 0.0
  %v3946 = vmax.f32 %v3776, 0.0
  %v3947 = vmax.f32 %v3779, 0.0
  %v3948 = vmax.f32 %v3784, 0.0
  %v3949 = vmax.f32 %v3787, 0.0
  %v3950 = vmax.f32 %v3792, 0.0
  %v3951 = vmax.f32 %v3795, 0.0
  %v3952 = vmax.f32 %v3800, 0.0
  %v3953 = vmax.f32 %v3803, 0.0
  %v3954 = vmax.f32 %v3808, 0.0
  %v3955 = vmax.f32 %v3811, 0.0
  %v3956 = vmax.f32 %v3816, 0.0
  %v3957 = vmax.f32 %v3819, 0.0
  %v3958 = vmax.f32 %v3824, 0.0
  %v3959 = vmax.f32 %v3827, 0.0
  %v3960 = vmax.f32 %v3832, 0.0
  %v3961 = vmax.f32 %v3835, 0.0
  %v3962 = vmax.f32 %v3840, 0.0
  %v3963 = vmax.f32 %v3843, 0.0
  %v3964 = vmax.f32 %v3848, 0.0
  %v3965 = vmax.f32 %v3851, 0.0
  %v3966 = vmax.f32 %v3856, 0.0
  %v3967 = vmax.f32 %v3859, 0.0
  %v3968 = vmax.f32 %v3864, 0.0
  %v3969 = vmax.f32 %v3867, 0.0
  %v3970 = vmax.f32 %v3872, 0.0
  %v3971 = vmax.f32 %v3875, 0.0
  %v3972 = vmax.f32 %v3880, 0.0
  %v3973 = vmax.f32 %v3883, 0.0
  %v3974 = vmax.f32 %v3888, 0.0
  %v3975 = vmax.f32 %v3891, 0.0
  %v3976 = vmax.f32 %v3896, 0.0
  %v3977 = vmax.f32 %v3899, 0.0
  %v3978 = vmax.f32 %v3904, 0.0
  %v3979 = vmax.f32 %v3907, 0.0
  %v3980 = vmax.f32 %v3912, 0.0
  %v3981 = vmax.f32 %v3915, 0.0
  %3982 = vst.msk [vmem:[#allocation3] sm:$0xff] %vm149, %v3918
  %3983 = vst.msk [vmem:[#allocation3 + $0x8] sm:$0xff] %vm149, %v3919
  %3984 = vst.msk [vmem:[#allocation3 + $0x10] sm:$0xff] %vm149, %v3920
  %3985 = vst.msk [vmem:[#allocation3 + $0x18] sm:$0xff] %vm149, %v3921
  %3986 = vst.msk [vmem:[#allocation3 + $0x20] sm:$0xff] %vm149, %v3922
  %3987 = vst.msk [vmem:[#allocation3 + $0x28] sm:$0xff] %vm149, %v3923
  %3988 = vst.msk [vmem:[#allocation3 + $0x30] sm:$0xff] %vm149, %v3924
  %3989 = vst.msk [vmem:[#allocation3 + $0x38] sm:$0xff] %vm149, %v3925
  %3990 = vst.msk [vmem:[#allocation3 + $0x40] sm:$0xff] %vm149, %v3926
  %3991 = vst.msk [vmem:[#allocation3 + $0x48] sm:$0xff] %vm149, %v3927
  %3992 = vst.msk [vmem:[#allocation3 + $0x50] sm:$0xff] %vm149, %v3928
  %3993 = vst.msk [vmem:[#allocation3 + $0x58] sm:$0xff] %vm149, %v3929
  %3994 = vst.msk [vmem:[#allocation3 + $0x60] sm:$0xff] %vm149, %v3930
  %3995 = vst.msk [vmem:[#allocation3 + $0x68] sm:$0xff] %vm149, %v3931
  %3996 = vst.msk [vmem:[#allocation3 + $0x70] sm:$0xff] %vm149, %v3932
  %3997 = vst.msk [vmem:[#allocation3 + $0x78] sm:$0xff] %vm149, %v3933
  %3998 = vst.msk [vmem:[#allocation3 + $0x80] sm:$0xff] %vm149, %v3934
  %3999 = vst.msk [vmem:[#allocation3 + $0x88] sm:$0xff] %vm149, %v3935
  %4000 = vst.msk [vmem:[#allocation3 + $0x90] sm:$0xff] %vm149, %v3936
  %4001 = vst.msk [vmem:[#allocation3 + $0x98] sm:$0xff] %vm149, %v3937
  %4002 = vst.msk [vmem:[#allocation3 + $0xa0] sm:$0xff] %vm149, %v3938
  %4003 = vst.msk [vmem:[#allocation3 + $0xa8] sm:$0xff] %vm149, %v3939
  %4004 = vst.msk [vmem:[#allocation3 + $0xb0] sm:$0xff] %vm149, %v3940
  %4005 = vst.msk [vmem:[#allocation3 + $0xb8] sm:$0xff] %vm149, %v3941
  %4006 = vst.msk [vmem:[#allocation3 + $0xc0] sm:$0xff] %vm149, %v3942
  %4007 = vst.msk [vmem:[#allocation3 + $0xc8] sm:$0xff] %vm149, %v3943
  %4008 = vst.msk [vmem:[#allocation3 + $0xd0] sm:$0xff] %vm149, %v3944
  %4009 = vst.msk [vmem:[#allocation3 + $0xd8] sm:$0xff] %vm149, %v3945
  %4010 = vst.msk [vmem:[#allocation3 + $0xe0] sm:$0xff] %vm149, %v3946
  %4011 = vst.msk [vmem:[#allocation3 + $0xe8] sm:$0xff] %vm149, %v3947
  %4012 = vst.msk [vmem:[#allocation3 + $0xf0] sm:$0xff] %vm149, %v3948
  %4013 = vst.msk [vmem:[#allocation3 + $0xf8] sm:$0xff] %vm149, %v3949
  %4014 = vst.msk [vmem:[#allocation3 + $0x100] sm:$0xff] %vm149, %v3950
  %4015 = vst.msk [vmem:[#allocation3 + $0x108] sm:$0xff] %vm149, %v3951
  %4016 = vst.msk [vmem:[#allocation3 + $0x110] sm:$0xff] %vm149, %v3952
  %4017 = vst.msk [vmem:[#allocation3 + $0x118] sm:$0xff] %vm149, %v3953
  %4018 = vst.msk [vmem:[#allocation3 + $0x120] sm:$0xff] %vm149, %v3954
  %4019 = vst.msk [vmem:[#allocation3 + $0x128] sm:$0xff] %vm149, %v3955
  %4020 = vst.msk [vmem:[#allocation3 + $0x130] sm:$0xff] %vm149, %v3956
  %4021 = vst.msk [vmem:[#allocation3 + $0x138] sm:$0xff] %vm149, %v3957
  %4022 = vst.msk [vmem:[#allocation3 + $0x140] sm:$0xff] %vm149, %v3958
  %4023 = vst.msk [vmem:[#allocation3 + $0x148] sm:$0xff] %vm149, %v3959
  %4024 = vst.msk [vmem:[#allocation3 + $0x150] sm:$0xff] %vm149, %v3960
  %4025 = vst.msk [vmem:[#allocation3 + $0x158] sm:$0xff] %vm149, %v3961
  %4026 = vst.msk [vmem:[#allocation3 + $0x160] sm:$0xff] %vm149, %v3962
  %4027 = vst.msk [vmem:[#allocation3 + $0x168] sm:$0xff] %vm149, %v3963
  %4028 = vst.msk [vmem:[#allocation3 + $0x170] sm:$0xff] %vm149, %v3964
  %4029 = vst.msk [vmem:[#allocation3 + $0x178] sm:$0xff] %vm149, %v3965
  %4030 = vst.msk [vmem:[#allocation3 + $0x180] sm:$0xff] %vm149, %v3966
  %4031 = vst.msk [vmem:[#allocation3 + $0x188] sm:$0xff] %vm149, %v3967
  %4032 = vst.msk [vmem:[#allocation3 + $0x190] sm:$0xff] %vm149, %v3968
  %4033 = vst.msk [vmem:[#allocation3 + $0x198] sm:$0xff] %vm149, %v3969
  %4034 = vst.msk [vmem:[#allocation3 + $0x1a0] sm:$0xff] %vm149, %v3970
  %4035 = vst.msk [vmem:[#allocation3 + $0x1a8] sm:$0xff] %vm149, %v3971
  %4036 = vst.msk [vmem:[#allocation3 + $0x1b0] sm:$0xff] %vm149, %v3972
  %4037 = vst.msk [vmem:[#allocation3 + $0x1b8] sm:$0xff] %vm149, %v3973
  %4038 = vst.msk [vmem:[#allocation3 + $0x1c0] sm:$0xff] %vm149, %v3974
  %4039 = vst.msk [vmem:[#allocation3 + $0x1c8] sm:$0xff] %vm149, %v3975
  %4040 = vst.msk [vmem:[#allocation3 + $0x1d0] sm:$0xff] %vm149, %v3976
  %4041 = vst.msk [vmem:[#allocation3 + $0x1d8] sm:$0xff] %vm149, %v3977
  %4042 = vst.msk [vmem:[#allocation3 + $0x1e0] sm:$0xff] %vm149, %v3978
  %4043 = vst.msk [vmem:[#allocation3 + $0x1e8] sm:$0xff] %vm149, %v3979
  %4044 = vst.msk [vmem:[#allocation3 + $0x1f0] sm:$0xff] %vm149, %v3980
  %4045 = vst.msk [vmem:[#allocation3 + $0x1f8] sm:$0xff] %vm149, %v3981
  %v4046 = vld [vmem:[#allocation3] ss:$2 sm:$0xff]
  %s4047 = scalar_lea.vmem [#allocation3], 16
  %v4048 = vld [vmem:[%s4047] ss:$2 sm:$0xff]
  %s4049 = scalar_lea.vmem [#allocation3], 32
  %v4050 = vld [vmem:[%s4049] ss:$2 sm:$0xff]
  %s4051 = scalar_lea.vmem [#allocation3], 48
  %v4052 = vld [vmem:[%s4051] ss:$2 sm:$0xff]
  %s4053 = scalar_lea.vmem [#allocation3], 64
  %v4054 = vld [vmem:[%s4053] ss:$2 sm:$0xff]
  %s4055 = scalar_lea.vmem [#allocation3], 80
  %v4056 = vld [vmem:[%s4055] ss:$2 sm:$0xff]
  %s4057 = scalar_lea.vmem [#allocation3], 96
  %v4058 = vld [vmem:[%s4057] ss:$2 sm:$0xff]
  %s4059 = scalar_lea.vmem [#allocation3], 112
  %v4060 = vld [vmem:[%s4059] ss:$2 sm:$0xff]
  %s4061 = scalar_lea.vmem [#allocation3], 128
  %v4062 = vld [vmem:[%s4061] ss:$2 sm:$0xff]
  %s4063 = scalar_lea.vmem [#allocation3], 144
  %v4064 = vld [vmem:[%s4063] ss:$2 sm:$0xff]
  %s4065 = scalar_lea.vmem [#allocation3], 160
  %v4066 = vld [vmem:[%s4065] ss:$2 sm:$0xff]
  %s4067 = scalar_lea.vmem [#allocation3], 176
  %v4068 = vld [vmem:[%s4067] ss:$2 sm:$0xff]
  %s4069 = scalar_lea.vmem [#allocation3], 192
  %v4070 = vld [vmem:[%s4069] ss:$2 sm:$0xff]
  %s4071 = scalar_lea.vmem [#allocation3], 208
  %v4072 = vld [vmem:[%s4071] ss:$2 sm:$0xff]
  %s4073 = scalar_lea.vmem [#allocation3], 224
  %v4074 = vld [vmem:[%s4073] ss:$2 sm:$0xff]
  %s4075 = scalar_lea.vmem [#allocation3], 240
  %v4076 = vld [vmem:[%s4075] ss:$2 sm:$0xff]
  %s4077 = scalar_lea.vmem [#allocation3], 256
  %v4078 = vld [vmem:[%s4077] ss:$2 sm:$0xff]
  %s4079 = scalar_lea.vmem [#allocation3], 272
  %v4080 = vld [vmem:[%s4079] ss:$2 sm:$0xff]
  %s4081 = scalar_lea.vmem [#allocation3], 288
  %v4082 = vld [vmem:[%s4081] ss:$2 sm:$0xff]
  %s4083 = scalar_lea.vmem [#allocation3], 304
  %v4084 = vld [vmem:[%s4083] ss:$2 sm:$0xff]
  %s4085 = scalar_lea.vmem [#allocation3], 320
  %v4086 = vld [vmem:[%s4085] ss:$2 sm:$0xff]
  %s4087 = scalar_lea.vmem [#allocation3], 336
  %v4088 = vld [vmem:[%s4087] ss:$2 sm:$0xff]
  %s4089 = scalar_lea.vmem [#allocation3], 352
  %v4090 = vld [vmem:[%s4089] ss:$2 sm:$0xff]
  %s4091 = scalar_lea.vmem [#allocation3], 368
  %v4092 = vld [vmem:[%s4091] ss:$2 sm:$0xff]
  %s4093 = scalar_lea.vmem [#allocation3], 384
  %v4094 = vld [vmem:[%s4093] ss:$2 sm:$0xff]
  %s4095 = scalar_lea.vmem [#allocation3], 400
  %v4096 = vld [vmem:[%s4095] ss:$2 sm:$0xff]
  %s4097 = scalar_lea.vmem [#allocation3], 416
  %v4098 = vld [vmem:[%s4097] ss:$2 sm:$0xff]
  %s4099 = scalar_lea.vmem [#allocation3], 432
  %v4100 = vld [vmem:[%s4099] ss:$2 sm:$0xff]
  %s4101 = scalar_lea.vmem [#allocation3], 448
  %v4102 = vld [vmem:[%s4101] ss:$2 sm:$0xff]
  %s4103 = scalar_lea.vmem [#allocation3], 464
  %v4104 = vld [vmem:[%s4103] ss:$2 sm:$0xff]
  %s4105 = scalar_lea.vmem [#allocation3], 480
  %v4106 = vld [vmem:[%s4105] ss:$2 sm:$0xff]
  %s4107 = scalar_lea.vmem [#allocation3], 496
  %v4108 = vld [vmem:[%s4107] ss:$2 sm:$0xff]
  %s4109 = scalar_lea.vmem [#allocation3], 1
  %v4110 = vld [vmem:[%s4109] ss:$2 sm:$0xff]
  %s4111 = scalar_lea.vmem [#allocation3], 17
  %v4112 = vld [vmem:[%s4111] ss:$2 sm:$0xff]
  %s4113 = scalar_lea.vmem [#allocation3], 33
  %v4114 = vld [vmem:[%s4113] ss:$2 sm:$0xff]
  %s4115 = scalar_lea.vmem [#allocation3], 49
  %v4116 = vld [vmem:[%s4115] ss:$2 sm:$0xff]
  %s4117 = scalar_lea.vmem [#allocation3], 65
  %v4118 = vld [vmem:[%s4117] ss:$2 sm:$0xff]
  %s4119 = scalar_lea.vmem [#allocation3], 81
  %v4120 = vld [vmem:[%s4119] ss:$2 sm:$0xff]
  %s4121 = scalar_lea.vmem [#allocation3], 97
  %v4122 = vld [vmem:[%s4121] ss:$2 sm:$0xff]
  %s4123 = scalar_lea.vmem [#allocation3], 113
  %v4124 = vld [vmem:[%s4123] ss:$2 sm:$0xff]
  %s4125 = scalar_lea.vmem [#allocation3], 129
  %v4126 = vld [vmem:[%s4125] ss:$2 sm:$0xff]
  %s4127 = scalar_lea.vmem [#allocation3], 145
  %v4128 = vld [vmem:[%s4127] ss:$2 sm:$0xff]
  %s4129 = scalar_lea.vmem [#allocation3], 161
  %v4130 = vld [vmem:[%s4129] ss:$2 sm:$0xff]
  %s4131 = scalar_lea.vmem [#allocation3], 177
  %v4132 = vld [vmem:[%s4131] ss:$2 sm:$0xff]
  %s4133 = scalar_lea.vmem [#allocation3], 193
  %v4134 = vld [vmem:[%s4133] ss:$2 sm:$0xff]
  %s4135 = scalar_lea.vmem [#allocation3], 209
  %v4136 = vld [vmem:[%s4135] ss:$2 sm:$0xff]
  %s4137 = scalar_lea.vmem [#allocation3], 225
  %v4138 = vld [vmem:[%s4137] ss:$2 sm:$0xff]
  %s4139 = scalar_lea.vmem [#allocation3], 241
  %v4140 = vld [vmem:[%s4139] ss:$2 sm:$0xff]
  %s4141 = scalar_lea.vmem [#allocation3], 257
  %v4142 = vld [vmem:[%s4141] ss:$2 sm:$0xff]
  %s4143 = scalar_lea.vmem [#allocation3], 273
  %v4144 = vld [vmem:[%s4143] ss:$2 sm:$0xff]
  %s4145 = scalar_lea.vmem [#allocation3], 289
  %v4146 = vld [vmem:[%s4145] ss:$2 sm:$0xff]
  %s4147 = scalar_lea.vmem [#allocation3], 305
  %v4148 = vld [vmem:[%s4147] ss:$2 sm:$0xff]
  %s4149 = scalar_lea.vmem [#allocation3], 321
  %v4150 = vld [vmem:[%s4149] ss:$2 sm:$0xff]
  %s4151 = scalar_lea.vmem [#allocation3], 337
  %v4152 = vld [vmem:[%s4151] ss:$2 sm:$0xff]
  %s4153 = scalar_lea.vmem [#allocation3], 353
  %v4154 = vld [vmem:[%s4153] ss:$2 sm:$0xff]
  %s4155 = scalar_lea.vmem [#allocation3], 369
  %v4156 = vld [vmem:[%s4155] ss:$2 sm:$0xff]
  %s4157 = scalar_lea.vmem [#allocation3], 385
  %v4158 = vld [vmem:[%s4157] ss:$2 sm:$0xff]
  %s4159 = scalar_lea.vmem [#allocation3], 401
  %v4160 = vld [vmem:[%s4159] ss:$2 sm:$0xff]
  %s4161 = scalar_lea.vmem [#allocation3], 417
  %v4162 = vld [vmem:[%s4161] ss:$2 sm:$0xff]
  %s4163 = scalar_lea.vmem [#allocation3], 433
  %v4164 = vld [vmem:[%s4163] ss:$2 sm:$0xff]
  %s4165 = scalar_lea.vmem [#allocation3], 449
  %v4166 = vld [vmem:[%s4165] ss:$2 sm:$0xff]
  %s4167 = scalar_lea.vmem [#allocation3], 465
  %v4168 = vld [vmem:[%s4167] ss:$2 sm:$0xff]
  %s4169 = scalar_lea.vmem [#allocation3], 481
  %v4170 = vld [vmem:[%s4169] ss:$2 sm:$0xff]
  %s4171 = scalar_lea.vmem [#allocation3], 497
  %v4172 = vld [vmem:[%s4171] ss:$2 sm:$0xff]
  %v4173 = vmax.f32 %v4046, %v4110
  %v4174 = vmax.f32 %v4048, %v4112
  %v4175 = vmax.f32 %v4050, %v4114
  %v4176 = vmax.f32 %v4052, %v4116
  %v4177 = vmax.f32 %v4054, %v4118
  %v4178 = vmax.f32 %v4056, %v4120
  %v4179 = vmax.f32 %v4058, %v4122
  %v4180 = vmax.f32 %v4060, %v4124
  %v4181 = vmax.f32 %v4062, %v4126
  %v4182 = vmax.f32 %v4064, %v4128
  %v4183 = vmax.f32 %v4066, %v4130
  %v4184 = vmax.f32 %v4068, %v4132
  %v4185 = vmax.f32 %v4070, %v4134
  %v4186 = vmax.f32 %v4072, %v4136
  %v4187 = vmax.f32 %v4074, %v4138
  %v4188 = vmax.f32 %v4076, %v4140
  %v4189 = vmax.f32 %v4078, %v4142
  %v4190 = vmax.f32 %v4080, %v4144
  %v4191 = vmax.f32 %v4082, %v4146
  %v4192 = vmax.f32 %v4084, %v4148
  %v4193 = vmax.f32 %v4086, %v4150
  %v4194 = vmax.f32 %v4088, %v4152
  %v4195 = vmax.f32 %v4090, %v4154
  %v4196 = vmax.f32 %v4092, %v4156
  %v4197 = vmax.f32 %v4094, %v4158
  %v4198 = vmax.f32 %v4096, %v4160
  %v4199 = vmax.f32 %v4098, %v4162
  %v4200 = vmax.f32 %v4100, %v4164
  %v4201 = vmax.f32 %v4102, %v4166
  %v4202 = vmax.f32 %v4104, %v4168
  %v4203 = vmax.f32 %v4106, %v4170
  %v4204 = vmax.f32 %v4108, %v4172
  %v4205 = vsel %vm149, %v4173, -inf
  %v4206 = vsel %vm149, %v4174, -inf
  %v4207 = vmax.f32 %v4205, %v4206
  %v4208 = vsel %vm149, %v4175, -inf
  %v4209 = vsel %vm149, %v4176, -inf
  %v4210 = vmax.f32 %v4208, %v4209
  %v4211 = vsel %vm149, %v4177, -inf
  %v4212 = vsel %vm149, %v4178, -inf
  %v4213 = vmax.f32 %v4211, %v4212
  %v4214 = vsel %vm149, %v4179, -inf
  %v4215 = vsel %vm149, %v4180, -inf
  %v4216 = vmax.f32 %v4214, %v4215
  %v4217 = vsel %vm149, %v4181, -inf
  %v4218 = vsel %vm149, %v4182, -inf
  %v4219 = vmax.f32 %v4217, %v4218
  %v4220 = vsel %vm149, %v4183, -inf
  %v4221 = vsel %vm149, %v4184, -inf
  %v4222 = vmax.f32 %v4220, %v4221
  %v4223 = vsel %vm149, %v4185, -inf
  %v4224 = vsel %vm149, %v4186, -inf
  %v4225 = vmax.f32 %v4223, %v4224
  %v4226 = vsel %vm149, %v4187, -inf
  %v4227 = vsel %vm149, %v4188, -inf
  %v4228 = vmax.f32 %v4226, %v4227
  %v4229 = vsel %vm149, %v4189, -inf
  %v4230 = vsel %vm149, %v4190, -inf
  %v4231 = vmax.f32 %v4229, %v4230
  %v4232 = vsel %vm149, %v4191, -inf
  %v4233 = vsel %vm149, %v4192, -inf
  %v4234 = vmax.f32 %v4232, %v4233
  %v4235 = vsel %vm149, %v4193, -inf
  %v4236 = vsel %vm149, %v4194, -inf
  %v4237 = vmax.f32 %v4235, %v4236
  %v4238 = vsel %vm149, %v4195, -inf
  %v4239 = vsel %vm149, %v4196, -inf
  %v4240 = vmax.f32 %v4238, %v4239
  %v4241 = vsel %vm149, %v4197, -inf
  %v4242 = vsel %vm149, %v4198, -inf
  %v4243 = vmax.f32 %v4241, %v4242
  %v4244 = vsel %vm149, %v4199, -inf
  %v4245 = vsel %vm149, %v4200, -inf
  %v4246 = vmax.f32 %v4244, %v4245
  %v4247 = vsel %vm149, %v4201, -inf
  %v4248 = vsel %vm149, %v4202, -inf
  %v4249 = vmax.f32 %v4247, %v4248
  %v4250 = vsel %vm149, %v4203, -inf
  %v4251 = vsel %vm149, %v4204, -inf
  %v4252 = vmax.f32 %v4250, %v4251
  %s4253 = scalar_lea.vmem [#allocation4], 16
  %4254 = vst.msk [vmem:[%s4253 + $0x1] sm:$0xff] %vm149, %v4207
  %4255 = vst.msk [vmem:[%s4253 + $0x11] sm:$0xff] %vm149, %v4210
  %4256 = vst.msk [vmem:[%s4253 + $0x21] sm:$0xff] %vm149, %v4213
  %4257 = vst.msk [vmem:[%s4253 + $0x31] sm:$0xff] %vm149, %v4216
  %4258 = vst.msk [vmem:[%s4253 + $0x41] sm:$0xff] %vm149, %v4219
  %4259 = vst.msk [vmem:[%s4253 + $0x51] sm:$0xff] %vm149, %v4222
  %4260 = vst.msk [vmem:[%s4253 + $0x61] sm:$0xff] %vm149, %v4225
  %4261 = vst.msk [vmem:[%s4253 + $0x71] sm:$0xff] %vm149, %v4228
  %4262 = vst.msk [vmem:[%s4253 + $0xa1] sm:$0xff] %vm149, %v4231
  %4263 = vst.msk [vmem:[%s4253 + $0xb1] sm:$0xff] %vm149, %v4234
  %4264 = vst.msk [vmem:[%s4253 + $0xc1] sm:$0xff] %vm149, %v4237
  %4265 = vst.msk [vmem:[%s4253 + $0xd1] sm:$0xff] %vm149, %v4240
  %4266 = vst.msk [vmem:[%s4253 + $0xe1] sm:$0xff] %vm149, %v4243
  %4267 = vst.msk [vmem:[%s4253 + $0xf1] sm:$0xff] %vm149, %v4246
  %4268 = vst.msk [vmem:[%s4253 + $0x101] sm:$0xff] %vm149, %v4249
  %4269 = vst.msk [vmem:[%s4253 + $0x111] sm:$0xff] %vm149, %v4252
  %v4270 = vld [vmem:[#allocation4] sm:$0xff]
  %v4271 = vld [vmem:[#allocation4 + $0x10] sm:$0xff]
  %v4272 = vld [vmem:[#allocation4 + $0x20] sm:$0xff]
  %v4273 = vld [vmem:[#allocation4 + $0x30] sm:$0xff]
  %v4274 = vld [vmem:[#allocation4 + $0x40] sm:$0xff]
  %v4275 = vld [vmem:[#allocation4 + $0x50] sm:$0xff]
  %v4276 = vld [vmem:[#allocation4 + $0x60] sm:$0xff]
  %v4277 = vld [vmem:[#allocation4 + $0x70] sm:$0xff]
  %v4278 = vld [vmem:[#allocation4 + $0xa0] sm:$0xff]
  %v4279 = vld [vmem:[#allocation4 + $0xb0] sm:$0xff]
  %v4280 = vld [vmem:[#allocation4 + $0xc0] sm:$0xff]
  %v4281 = vld [vmem:[#allocation4 + $0xd0] sm:$0xff]
  %v4282 = vld [vmem:[#allocation4 + $0xe0] sm:$0xff]
  %v4283 = vld [vmem:[#allocation4 + $0xf0] sm:$0xff]
  %v4284 = vld [vmem:[#allocation4 + $0x100] sm:$0xff]
  %v4285 = vld [vmem:[#allocation4 + $0x110] sm:$0xff]
  %v4286 = vld [vmem:[#allocation4 + $0x1] sm:$0xff]
  %v4287 = vld [vmem:[#allocation4 + $0x11] sm:$0xff]
  %v4288 = vld [vmem:[#allocation4 + $0x21] sm:$0xff]
  %v4289 = vld [vmem:[#allocation4 + $0x31] sm:$0xff]
  %v4290 = vld [vmem:[#allocation4 + $0x41] sm:$0xff]
  %v4291 = vld [vmem:[#allocation4 + $0x51] sm:$0xff]
  %v4292 = vld [vmem:[#allocation4 + $0x61] sm:$0xff]
  %v4293 = vld [vmem:[#allocation4 + $0x71] sm:$0xff]
  %v4294 = vld [vmem:[#allocation4 + $0xa1] sm:$0xff]
  %v4295 = vld [vmem:[#allocation4 + $0xb1] sm:$0xff]
  %v4296 = vld [vmem:[#allocation4 + $0xc1] sm:$0xff]
  %v4297 = vld [vmem:[#allocation4 + $0xd1] sm:$0xff]
  %v4298 = vld [vmem:[#allocation4 + $0xe1] sm:$0xff]
  %v4299 = vld [vmem:[#allocation4 + $0xf1] sm:$0xff]
  %v4300 = vld [vmem:[#allocation4 + $0x101] sm:$0xff]
  %v4301 = vld [vmem:[#allocation4 + $0x111] sm:$0xff]
  %v4302 = vld [vmem:[#allocation4 + $0x2] sm:$0xff]
  %v4303 = vld [vmem:[#allocation4 + $0x12] sm:$0xff]
  %v4304 = vld [vmem:[#allocation4 + $0x22] sm:$0xff]
  %v4305 = vld [vmem:[#allocation4 + $0x32] sm:$0xff]
  %v4306 = vld [vmem:[#allocation4 + $0x42] sm:$0xff]
  %v4307 = vld [vmem:[#allocation4 + $0x52] sm:$0xff]
  %v4308 = vld [vmem:[#allocation4 + $0x62] sm:$0xff]
  %v4309 = vld [vmem:[#allocation4 + $0x72] sm:$0xff]
  %v4310 = vld [vmem:[#allocation4 + $0xa2] sm:$0xff]
  %v4311 = vld [vmem:[#allocation4 + $0xb2] sm:$0xff]
  %v4312 = vld [vmem:[#allocation4 + $0xc2] sm:$0xff]
  %v4313 = vld [vmem:[#allocation4 + $0xd2] sm:$0xff]
  %v4314 = vld [vmem:[#allocation4 + $0xe2] sm:$0xff]
  %v4315 = vld [vmem:[#allocation4 + $0xf2] sm:$0xff]
  %v4316 = vld [vmem:[#allocation4 + $0x102] sm:$0xff]
  %v4317 = vld [vmem:[#allocation4 + $0x112] sm:$0xff]
  %v4318 = vld [vmem:[%s4253] sm:$0xff]
  %v4319 = vld [vmem:[%s4253 + $0x10] sm:$0xff]
  %v4320 = vld [vmem:[%s4253 + $0x20] sm:$0xff]
  %v4321 = vld [vmem:[%s4253 + $0x30] sm:$0xff]
  %v4322 = vld [vmem:[%s4253 + $0x40] sm:$0xff]
  %v4323 = vld [vmem:[%s4253 + $0x50] sm:$0xff]
  %v4324 = vld [vmem:[%s4253 + $0x60] sm:$0xff]
  %v4325 = vld [vmem:[%s4253 + $0x70] sm:$0xff]
  %v4326 = vld [vmem:[%s4253 + $0xa0] sm:$0xff]
  %v4327 = vld [vmem:[%s4253 + $0xb0] sm:$0xff]
  %v4328 = vld [vmem:[%s4253 + $0xc0] sm:$0xff]
  %v4329 = vld [vmem:[%s4253 + $0xd0] sm:$0xff]
  %v4330 = vld [vmem:[%s4253 + $0xe0] sm:$0xff]
  %v4331 = vld [vmem:[%s4253 + $0xf0] sm:$0xff]
  %v4332 = vld [vmem:[%s4253 + $0x100] sm:$0xff]
  %v4333 = vld [vmem:[%s4253 + $0x110] sm:$0xff]
  %v4334 = vld [vmem:[%s4253 + $0x1] sm:$0xff]
  %v4335 = vld [vmem:[%s4253 + $0x11] sm:$0xff]
  %v4336 = vld [vmem:[%s4253 + $0x21] sm:$0xff]
  %v4337 = vld [vmem:[%s4253 + $0x31] sm:$0xff]
  %v4338 = vld [vmem:[%s4253 + $0x41] sm:$0xff]
  %v4339 = vld [vmem:[%s4253 + $0x51] sm:$0xff]
  %v4340 = vld [vmem:[%s4253 + $0x61] sm:$0xff]
  %v4341 = vld [vmem:[%s4253 + $0x71] sm:$0xff]
  %v4342 = vld [vmem:[%s4253 + $0xa1] sm:$0xff]
  %v4343 = vld [vmem:[%s4253 + $0xb1] sm:$0xff]
  %v4344 = vld [vmem:[%s4253 + $0xc1] sm:$0xff]
  %v4345 = vld [vmem:[%s4253 + $0xd1] sm:$0xff]
  %v4346 = vld [vmem:[%s4253 + $0xe1] sm:$0xff]
  %v4347 = vld [vmem:[%s4253 + $0xf1] sm:$0xff]
  %v4348 = vld [vmem:[%s4253 + $0x101] sm:$0xff]
  %v4349 = vld [vmem:[%s4253 + $0x111] sm:$0xff]
  %v4350 = vld [vmem:[%s4253 + $0x2] sm:$0xff]
  %v4351 = vld [vmem:[%s4253 + $0x12] sm:$0xff]
  %v4352 = vld [vmem:[%s4253 + $0x22] sm:$0xff]
  %v4353 = vld [vmem:[%s4253 + $0x32] sm:$0xff]
  %v4354 = vld [vmem:[%s4253 + $0x42] sm:$0xff]
  %v4355 = vld [vmem:[%s4253 + $0x52] sm:$0xff]
  %v4356 = vld [vmem:[%s4253 + $0x62] sm:$0xff]
  %v4357 = vld [vmem:[%s4253 + $0x72] sm:$0xff]
  %v4358 = vld [vmem:[%s4253 + $0xa2] sm:$0xff]
  %v4359 = vld [vmem:[%s4253 + $0xb2] sm:$0xff]
  %v4360 = vld [vmem:[%s4253 + $0xc2] sm:$0xff]
  %v4361 = vld [vmem:[%s4253 + $0xd2] sm:$0xff]
  %v4362 = vld [vmem:[%s4253 + $0xe2] sm:$0xff]
  %v4363 = vld [vmem:[%s4253 + $0xf2] sm:$0xff]
  %v4364 = vld [vmem:[%s4253 + $0x102] sm:$0xff]
  %v4365 = vld [vmem:[%s4253 + $0x112] sm:$0xff]
  %s4366 = scalar_lea.vmem [#allocation4], 32
  %v4367 = vld [vmem:[%s4366] sm:$0xff]
  %v4368 = vld [vmem:[%s4366 + $0x10] sm:$0xff]
  %v4369 = vld [vmem:[%s4366 + $0x20] sm:$0xff]
  %v4370 = vld [vmem:[%s4366 + $0x30] sm:$0xff]
  %v4371 = vld [vmem:[%s4366 + $0x40] sm:$0xff]
  %v4372 = vld [vmem:[%s4366 + $0x50] sm:$0xff]
  %v4373 = vld [vmem:[%s4366 + $0x60] sm:$0xff]
  %v4374 = vld [vmem:[%s4366 + $0x70] sm:$0xff]
  %v4375 = vld [vmem:[%s4366 + $0xa0] sm:$0xff]
  %v4376 = vld [vmem:[%s4366 + $0xb0] sm:$0xff]
  %v4377 = vld [vmem:[%s4366 + $0xc0] sm:$0xff]
  %v4378 = vld [vmem:[%s4366 + $0xd0] sm:$0xff]
  %v4379 = vld [vmem:[%s4366 + $0xe0] sm:$0xff]
  %v4380 = vld [vmem:[%s4366 + $0xf0] sm:$0xff]
  %v4381 = vld [vmem:[%s4366 + $0x100] sm:$0xff]
  %v4382 = vld [vmem:[%s4366 + $0x110] sm:$0xff]
  %v4383 = vld [vmem:[%s4366 + $0x1] sm:$0xff]
  %v4384 = vld [vmem:[%s4366 + $0x11] sm:$0xff]
  %v4385 = vld [vmem:[%s4366 + $0x21] sm:$0xff]
  %v4386 = vld [vmem:[%s4366 + $0x31] sm:$0xff]
  %v4387 = vld [vmem:[%s4366 + $0x41] sm:$0xff]
  %v4388 = vld [vmem:[%s4366 + $0x51] sm:$0xff]
  %v4389 = vld [vmem:[%s4366 + $0x61] sm:$0xff]
  %v4390 = vld [vmem:[%s4366 + $0x71] sm:$0xff]
  %v4391 = vld [vmem:[%s4366 + $0xa1] sm:$0xff]
  %v4392 = vld [vmem:[%s4366 + $0xb1] sm:$0xff]
  %v4393 = vld [vmem:[%s4366 + $0xc1] sm:$0xff]
  %v4394 = vld [vmem:[%s4366 + $0xd1] sm:$0xff]
  %v4395 = vld [vmem:[%s4366 + $0xe1] sm:$0xff]
  %v4396 = vld [vmem:[%s4366 + $0xf1] sm:$0xff]
  %v4397 = vld [vmem:[%s4366 + $0x101] sm:$0xff]
  %v4398 = vld [vmem:[%s4366 + $0x111] sm:$0xff]
  %v4399 = vld [vmem:[%s4366 + $0x2] sm:$0xff]
  %v4400 = vld [vmem:[%s4366 + $0x12] sm:$0xff]
  %v4401 = vld [vmem:[%s4366 + $0x22] sm:$0xff]
  %v4402 = vld [vmem:[%s4366 + $0x32] sm:$0xff]
  %v4403 = vld [vmem:[%s4366 + $0x42] sm:$0xff]
  %v4404 = vld [vmem:[%s4366 + $0x52] sm:$0xff]
  %v4405 = vld [vmem:[%s4366 + $0x62] sm:$0xff]
  %v4406 = vld [vmem:[%s4366 + $0x72] sm:$0xff]
  %v4407 = vld [vmem:[%s4366 + $0xa2] sm:$0xff]
  %v4408 = vld [vmem:[%s4366 + $0xb2] sm:$0xff]
  %v4409 = vld [vmem:[%s4366 + $0xc2] sm:$0xff]
  %v4410 = vld [vmem:[%s4366 + $0xd2] sm:$0xff]
  %v4411 = vld [vmem:[%s4366 + $0xe2] sm:$0xff]
  %v4412 = vld [vmem:[%s4366 + $0xf2] sm:$0xff]
  %v4413 = vld [vmem:[%s4366 + $0x102] sm:$0xff]
  %v4414 = vld [vmem:[%s4366 + $0x112] sm:$0xff]
  %4431 = vrot.lane.b32.xlu0 %v4286, 32
  %v4432 = vpop.permute.xlu0 %4431
  %4433 = vrot.lane.b32.xlu0 %v4287, 32
  %v4434 = vpop.permute.xlu0 %4433
  %4435 = vrot.lane.b32.xlu0 %v4288, 32
  %v4436 = vpop.permute.xlu0 %4435
  %4437 = vrot.lane.b32.xlu0 %v4289, 32
  %v4438 = vpop.permute.xlu0 %4437
  %4439 = vrot.lane.b32.xlu0 %v4290, 32
  %v4440 = vpop.permute.xlu0 %4439
  %4441 = vrot.lane.b32.xlu0 %v4291, 32
  %v4442 = vpop.permute.xlu0 %4441
  %4443 = vrot.lane.b32.xlu0 %v4292, 32
  %v4444 = vpop.permute.xlu0 %4443
  %4445 = vrot.lane.b32.xlu0 %v4293, 32
  %v4446 = vpop.permute.xlu0 %4445
  %4447 = vrot.lane.b32.xlu0 %v4294, 32
  %v4448 = vpop.permute.xlu0 %4447
  %4449 = vrot.lane.b32.xlu0 %v4295, 32
  %v4450 = vpop.permute.xlu0 %4449
  %4451 = vrot.lane.b32.xlu0 %v4296, 32
  %v4452 = vpop.permute.xlu0 %4451
  %4453 = vrot.lane.b32.xlu0 %v4297, 32
  %v4454 = vpop.permute.xlu0 %4453
  %4455 = vrot.lane.b32.xlu0 %v4298, 32
  %v4456 = vpop.permute.xlu0 %4455
  %4457 = vrot.lane.b32.xlu0 %v4299, 32
  %v4458 = vpop.permute.xlu0 %4457
  %4459 = vrot.lane.b32.xlu0 %v4300, 32
  %v4460 = vpop.permute.xlu0 %4459
  %4461 = vrot.lane.b32.xlu0 %v4301, 32
  %v4462 = vpop.permute.xlu0 %4461
  %4495 = vrot.lane.b32.xlu0 %v4302, 64
  %v4496 = vpop.permute.xlu0 %4495
  %4497 = vrot.lane.b32.xlu0 %v4303, 64
  %v4498 = vpop.permute.xlu0 %4497
  %4499 = vrot.lane.b32.xlu0 %v4304, 64
  %v4500 = vpop.permute.xlu0 %4499
  %4501 = vrot.lane.b32.xlu0 %v4305, 64
  %v4502 = vpop.permute.xlu0 %4501
  %4503 = vrot.lane.b32.xlu0 %v4306, 64
  %v4504 = vpop.permute.xlu0 %4503
  %4505 = vrot.lane.b32.xlu0 %v4307, 64
  %v4506 = vpop.permute.xlu0 %4505
  %4507 = vrot.lane.b32.xlu0 %v4308, 64
  %v4508 = vpop.permute.xlu0 %4507
  %4509 = vrot.lane.b32.xlu0 %v4309, 64
  %v4510 = vpop.permute.xlu0 %4509
  %4511 = vrot.lane.b32.xlu0 %v4310, 64
  %v4512 = vpop.permute.xlu0 %4511
  %4513 = vrot.lane.b32.xlu0 %v4311, 64
  %v4514 = vpop.permute.xlu0 %4513
  %4515 = vrot.lane.b32.xlu0 %v4312, 64
  %v4516 = vpop.permute.xlu0 %4515
  %4517 = vrot.lane.b32.xlu0 %v4313, 64
  %v4518 = vpop.permute.xlu0 %4517
  %4519 = vrot.lane.b32.xlu0 %v4314, 64
  %v4520 = vpop.permute.xlu0 %4519
  %4521 = vrot.lane.b32.xlu0 %v4315, 64
  %v4522 = vpop.permute.xlu0 %4521
  %4523 = vrot.lane.b32.xlu0 %v4316, 64
  %v4524 = vpop.permute.xlu0 %4523
  %4525 = vrot.lane.b32.xlu0 %v4317, 64
  %v4526 = vpop.permute.xlu0 %4525
  %4559 = vrot.lane.b32.xlu0 %v4318, 96
  %v4560 = vpop.permute.xlu0 %4559
  %4561 = vrot.lane.b32.xlu0 %v4319, 96
  %v4562 = vpop.permute.xlu0 %4561
  %4563 = vrot.lane.b32.xlu0 %v4320, 96
  %v4564 = vpop.permute.xlu0 %4563
  %4565 = vrot.lane.b32.xlu0 %v4321, 96
  %v4566 = vpop.permute.xlu0 %4565
  %4567 = vrot.lane.b32.xlu0 %v4322, 96
  %v4568 = vpop.permute.xlu0 %4567
  %4569 = vrot.lane.b32.xlu0 %v4323, 96
  %v4570 = vpop.permute.xlu0 %4569
  %4571 = vrot.lane.b32.xlu0 %v4324, 96
  %v4572 = vpop.permute.xlu0 %4571
  %4573 = vrot.lane.b32.xlu0 %v4325, 96
  %v4574 = vpop.permute.xlu0 %4573
  %4575 = vrot.lane.b32.xlu0 %v4326, 96
  %v4576 = vpop.permute.xlu0 %4575
  %4577 = vrot.lane.b32.xlu0 %v4327, 96
  %v4578 = vpop.permute.xlu0 %4577
  %4579 = vrot.lane.b32.xlu0 %v4328, 96
  %v4580 = vpop.permute.xlu0 %4579
  %4581 = vrot.lane.b32.xlu0 %v4329, 96
  %v4582 = vpop.permute.xlu0 %4581
  %4583 = vrot.lane.b32.xlu0 %v4330, 96
  %v4584 = vpop.permute.xlu0 %4583
  %4585 = vrot.lane.b32.xlu0 %v4331, 96
  %v4586 = vpop.permute.xlu0 %4585
  %4587 = vrot.lane.b32.xlu0 %v4332, 96
  %v4588 = vpop.permute.xlu0 %4587
  %4589 = vrot.lane.b32.xlu0 %v4333, 96
  %v4590 = vpop.permute.xlu0 %4589
  %4623 = vrot.lane.b32.xlu0 %v4350, 32
  %v4624 = vpop.permute.xlu0 %4623
  %4625 = vrot.lane.b32.xlu0 %v4351, 32
  %v4626 = vpop.permute.xlu0 %4625
  %4627 = vrot.lane.b32.xlu0 %v4352, 32
  %v4628 = vpop.permute.xlu0 %4627
  %4629 = vrot.lane.b32.xlu0 %v4353, 32
  %v4630 = vpop.permute.xlu0 %4629
  %4631 = vrot.lane.b32.xlu0 %v4354, 32
  %v4632 = vpop.permute.xlu0 %4631
  %4633 = vrot.lane.b32.xlu0 %v4355, 32
  %v4634 = vpop.permute.xlu0 %4633
  %4635 = vrot.lane.b32.xlu0 %v4356, 32
  %v4636 = vpop.permute.xlu0 %4635
  %4637 = vrot.lane.b32.xlu0 %v4357, 32
  %v4638 = vpop.permute.xlu0 %4637
  %4639 = vrot.lane.b32.xlu0 %v4358, 32
  %v4640 = vpop.permute.xlu0 %4639
  %4641 = vrot.lane.b32.xlu0 %v4359, 32
  %v4642 = vpop.permute.xlu0 %4641
  %4643 = vrot.lane.b32.xlu0 %v4360, 32
  %v4644 = vpop.permute.xlu0 %4643
  %4645 = vrot.lane.b32.xlu0 %v4361, 32
  %v4646 = vpop.permute.xlu0 %4645
  %4647 = vrot.lane.b32.xlu0 %v4362, 32
  %v4648 = vpop.permute.xlu0 %4647
  %4649 = vrot.lane.b32.xlu0 %v4363, 32
  %v4650 = vpop.permute.xlu0 %4649
  %4651 = vrot.lane.b32.xlu0 %v4364, 32
  %v4652 = vpop.permute.xlu0 %4651
  %4653 = vrot.lane.b32.xlu0 %v4365, 32
  %v4654 = vpop.permute.xlu0 %4653
  %4687 = vrot.lane.b32.xlu0 %v4367, 64
  %v4688 = vpop.permute.xlu0 %4687
  %4689 = vrot.lane.b32.xlu0 %v4368, 64
  %v4690 = vpop.permute.xlu0 %4689
  %4691 = vrot.lane.b32.xlu0 %v4369, 64
  %v4692 = vpop.permute.xlu0 %4691
  %4693 = vrot.lane.b32.xlu0 %v4370, 64
  %v4694 = vpop.permute.xlu0 %4693
  %4695 = vrot.lane.b32.xlu0 %v4371, 64
  %v4696 = vpop.permute.xlu0 %4695
  %4697 = vrot.lane.b32.xlu0 %v4372, 64
  %v4698 = vpop.permute.xlu0 %4697
  %4699 = vrot.lane.b32.xlu0 %v4373, 64
  %v4700 = vpop.permute.xlu0 %4699
  %4701 = vrot.lane.b32.xlu0 %v4374, 64
  %v4702 = vpop.permute.xlu0 %4701
  %4703 = vrot.lane.b32.xlu0 %v4375, 64
  %v4704 = vpop.permute.xlu0 %4703
  %4705 = vrot.lane.b32.xlu0 %v4376, 64
  %v4706 = vpop.permute.xlu0 %4705
  %4707 = vrot.lane.b32.xlu0 %v4377, 64
  %v4708 = vpop.permute.xlu0 %4707
  %4709 = vrot.lane.b32.xlu0 %v4378, 64
  %v4710 = vpop.permute.xlu0 %4709
  %4711 = vrot.lane.b32.xlu0 %v4379, 64
  %v4712 = vpop.permute.xlu0 %4711
  %4713 = vrot.lane.b32.xlu0 %v4380, 64
  %v4714 = vpop.permute.xlu0 %4713
  %4715 = vrot.lane.b32.xlu0 %v4381, 64
  %v4716 = vpop.permute.xlu0 %4715
  %4717 = vrot.lane.b32.xlu0 %v4382, 64
  %v4718 = vpop.permute.xlu0 %4717
  %4751 = vrot.lane.b32.xlu0 %v4383, 96
  %v4752 = vpop.permute.xlu0 %4751
  %4753 = vrot.lane.b32.xlu0 %v4384, 96
  %v4754 = vpop.permute.xlu0 %4753
  %4755 = vrot.lane.b32.xlu0 %v4385, 96
  %v4756 = vpop.permute.xlu0 %4755
  %4757 = vrot.lane.b32.xlu0 %v4386, 96
  %v4758 = vpop.permute.xlu0 %4757
  %4759 = vrot.lane.b32.xlu0 %v4387, 96
  %v4760 = vpop.permute.xlu0 %4759
  %4761 = vrot.lane.b32.xlu0 %v4388, 96
  %v4762 = vpop.permute.xlu0 %4761
  %4763 = vrot.lane.b32.xlu0 %v4389, 96
  %v4764 = vpop.permute.xlu0 %4763
  %4765 = vrot.lane.b32.xlu0 %v4390, 96
  %v4766 = vpop.permute.xlu0 %4765
  %4767 = vrot.lane.b32.xlu0 %v4391, 96
  %v4768 = vpop.permute.xlu0 %4767
  %4769 = vrot.lane.b32.xlu0 %v4392, 96
  %v4770 = vpop.permute.xlu0 %4769
  %4771 = vrot.lane.b32.xlu0 %v4393, 96
  %v4772 = vpop.permute.xlu0 %4771
  %4773 = vrot.lane.b32.xlu0 %v4394, 96
  %v4774 = vpop.permute.xlu0 %4773
  %4775 = vrot.lane.b32.xlu0 %v4395, 96
  %v4776 = vpop.permute.xlu0 %4775
  %4777 = vrot.lane.b32.xlu0 %v4396, 96
  %v4778 = vpop.permute.xlu0 %4777
  %4779 = vrot.lane.b32.xlu0 %v4397, 96
  %v4780 = vpop.permute.xlu0 %4779
  %4781 = vrot.lane.b32.xlu0 %v4398, 96
  %v4782 = vpop.permute.xlu0 %4781
  %v4799 = vsel %vm149, %v4270, %v4432
  %v4800 = vsel %vm149, %v4271, %v4434
  %v4801 = vsel %vm149, %v4272, %v4436
  %v4802 = vsel %vm149, %v4273, %v4438
  %v4803 = vsel %vm149, %v4274, %v4440
  %v4804 = vsel %vm149, %v4275, %v4442
  %v4805 = vsel %vm149, %v4276, %v4444
  %v4806 = vsel %vm149, %v4277, %v4446
  %v4807 = vsel %vm149, %v4278, %v4448
  %v4808 = vsel %vm149, %v4279, %v4450
  %v4809 = vsel %vm149, %v4280, %v4452
  %v4810 = vsel %vm149, %v4281, %v4454
  %v4811 = vsel %vm149, %v4282, %v4456
  %v4812 = vsel %vm149, %v4283, %v4458
  %v4813 = vsel %vm149, %v4284, %v4460
  %v4814 = vsel %vm149, %v4285, %v4462
  %vm4815 = vcmask 523264
  %v4816 = vsel %vm4815, %v4799, %v4496
  %v4817 = vsel %vm4815, %v4800, %v4498
  %v4818 = vsel %vm4815, %v4801, %v4500
  %v4819 = vsel %vm4815, %v4802, %v4502
  %v4820 = vsel %vm4815, %v4803, %v4504
  %v4821 = vsel %vm4815, %v4804, %v4506
  %v4822 = vsel %vm4815, %v4805, %v4508
  %v4823 = vsel %vm4815, %v4806, %v4510
  %v4824 = vsel %vm4815, %v4807, %v4512
  %v4825 = vsel %vm4815, %v4808, %v4514
  %v4826 = vsel %vm4815, %v4809, %v4516
  %v4827 = vsel %vm4815, %v4810, %v4518
  %v4828 = vsel %vm4815, %v4811, %v4520
  %v4829 = vsel %vm4815, %v4812, %v4522
  %v4830 = vsel %vm4815, %v4813, %v4524
  %v4831 = vsel %vm4815, %v4814, %v4526
  %vm4832 = vcmask 785408
  %v4833 = vsel %vm4832, %v4816, %v4560
  %v4834 = vsel %vm4832, %v4817, %v4562
  %v4835 = vsel %vm4832, %v4818, %v4564
  %v4836 = vsel %vm4832, %v4819, %v4566
  %v4837 = vsel %vm4832, %v4820, %v4568
  %v4838 = vsel %vm4832, %v4821, %v4570
  %v4839 = vsel %vm4832, %v4822, %v4572
  %v4840 = vsel %vm4832, %v4823, %v4574
  %v4841 = vsel %vm4832, %v4824, %v4576
  %v4842 = vsel %vm4832, %v4825, %v4578
  %v4843 = vsel %vm4832, %v4826, %v4580
  %v4844 = vsel %vm4832, %v4827, %v4582
  %v4845 = vsel %vm4832, %v4828, %v4584
  %v4846 = vsel %vm4832, %v4829, %v4586
  %v4847 = vsel %vm4832, %v4830, %v4588
  %v4848 = vsel %vm4832, %v4831, %v4590
  %v4849 = vsel %vm149, %v4334, %v4624
  %v4850 = vsel %vm149, %v4335, %v4626
  %v4851 = vsel %vm149, %v4336, %v4628
  %v4852 = vsel %vm149, %v4337, %v4630
  %v4853 = vsel %vm149, %v4338, %v4632
  %v4854 = vsel %vm149, %v4339, %v4634
  %v4855 = vsel %vm149, %v4340, %v4636
  %v4856 = vsel %vm149, %v4341, %v4638
  %v4857 = vsel %vm149, %v4342, %v4640
  %v4858 = vsel %vm149, %v4343, %v4642
  %v4859 = vsel %vm149, %v4344, %v4644
  %v4860 = vsel %vm149, %v4345, %v4646
  %v4861 = vsel %vm149, %v4346, %v4648
  %v4862 = vsel %vm149, %v4347, %v4650
  %v4863 = vsel %vm149, %v4348, %v4652
  %v4864 = vsel %vm149, %v4349, %v4654
  %v4865 = vsel %vm4815, %v4849, %v4688
  %v4866 = vsel %vm4815, %v4850, %v4690
  %v4867 = vsel %vm4815, %v4851, %v4692
  %v4868 = vsel %vm4815, %v4852, %v4694
  %v4869 = vsel %vm4815, %v4853, %v4696
  %v4870 = vsel %vm4815, %v4854, %v4698
  %v4871 = vsel %vm4815, %v4855, %v4700
  %v4872 = vsel %vm4815, %v4856, %v4702
  %v4873 = vsel %vm4815, %v4857, %v4704
  %v4874 = vsel %vm4815, %v4858, %v4706
  %v4875 = vsel %vm4815, %v4859, %v4708
  %v4876 = vsel %vm4815, %v4860, %v4710
  %v4877 = vsel %vm4815, %v4861, %v4712
  %v4878 = vsel %vm4815, %v4862, %v4714
  %v4879 = vsel %vm4815, %v4863, %v4716
  %v4880 = vsel %vm4815, %v4864, %v4718
  %v4881 = vsel %vm4832, %v4865, %v4752
  %v4882 = vsel %vm4832, %v4866, %v4754
  %v4883 = vsel %vm4832, %v4867, %v4756
  %v4884 = vsel %vm4832, %v4868, %v4758
  %v4885 = vsel %vm4832, %v4869, %v4760
  %v4886 = vsel %vm4832, %v4870, %v4762
  %v4887 = vsel %vm4832, %v4871, %v4764
  %v4888 = vsel %vm4832, %v4872, %v4766
  %v4889 = vsel %vm4832, %v4873, %v4768
  %v4890 = vsel %vm4832, %v4874, %v4770
  %v4891 = vsel %vm4832, %v4875, %v4772
  %v4892 = vsel %vm4832, %v4876, %v4774
  %v4893 = vsel %vm4832, %v4877, %v4776
  %v4894 = vsel %vm4832, %v4878, %v4778
  %v4895 = vsel %vm4832, %v4879, %v4780
  %v4896 = vsel %vm4832, %v4880, %v4782
  %v4897 = vpack.c.bf16 %v4834, %v4833
  %v4898 = vpack.c.bf16 %v4882, %v4881
  %v4899 = vpack.c.bf16 %v4400, %v4399
  %v4900 = vpack.c.bf16 %v4836, %v4835
  %v4901 = vpack.c.bf16 %v4884, %v4883
  %v4902 = vpack.c.bf16 %v4402, %v4401
  %v4903 = vpack.c.bf16 %v4838, %v4837
  %v4904 = vpack.c.bf16 %v4886, %v4885
  %v4905 = vpack.c.bf16 %v4404, %v4403
  %v4906 = vpack.c.bf16 %v4840, %v4839
  %v4907 = vpack.c.bf16 %v4888, %v4887
  %v4908 = vpack.c.bf16 %v4406, %v4405
  %v4909 = vpack.c.bf16 %v4842, %v4841
  %v4910 = vpack.c.bf16 %v4890, %v4889
  %v4911 = vpack.c.bf16 %v4408, %v4407
  %v4912 = vpack.c.bf16 %v4844, %v4843
  %v4913 = vpack.c.bf16 %v4892, %v4891
  %v4914 = vpack.c.bf16 %v4410, %v4409
  %v4915 = vpack.c.bf16 %v4846, %v4845
  %v4916 = vpack.c.bf16 %v4894, %v4893
  %v4917 = vpack.c.bf16 %v4412, %v4411
  %v4918 = vpack.c.bf16 %v4848, %v4847
  %v4919 = vpack.c.bf16 %v4896, %v4895
  %v4920 = vpack.c.bf16 %v4414, %v4413
  %v4921 = vld [vmem:[%s3] sm:$0xf]
  %v4922 = vld [vmem:[%s3 + $0x4] sm:$0xf]
  %v4923 = vld [vmem:[%s3 + $0x8] sm:$0xf]
  %v4924 = vld [vmem:[%s3 + $0xc] sm:$0xf]
  %v4925 = vld [vmem:[%s3 + $0x10] sm:$0xf]
  %v4926 = vld [vmem:[%s3 + $0x14] sm:$0xf]
  %v4927 = vld [vmem:[%s3 + $0x18] sm:$0xf]
  %v4928 = vld [vmem:[%s3 + $0x1c] sm:$0xf]
  %v4929 = vld [vmem:[%s3 + $0x20] sm:$0xf]
  %v4930 = vld [vmem:[%s3 + $0x24] sm:$0xf]
  %v4931 = vld [vmem:[%s3 + $0x28] sm:$0xf]
  %v4932 = vld [vmem:[%s3 + $0x2c] sm:$0xf]
  %v4933 = vld [vmem:[%s3 + $0x30] sm:$0xf]
  %v4934 = vld [vmem:[%s3 + $0x34] sm:$0xf]
  %v4935 = vld [vmem:[%s3 + $0x38] sm:$0xf]
  %v4936 = vld [vmem:[%s3 + $0x3c] sm:$0xf]
  %v4937 = vld [vmem:[%s3 + $0x40] sm:$0xf]
  %v4938 = vld [vmem:[%s3 + $0x44] sm:$0xf]
  %v4939 = vld [vmem:[%s3 + $0x48] sm:$0xf]
  %v4940 = vld [vmem:[%s3 + $0x4c] sm:$0xf]
  %v4941 = vld [vmem:[%s3 + $0x50] sm:$0xf]
  %v4942 = vld [vmem:[%s3 + $0x54] sm:$0xf]
  %v4943 = vld [vmem:[%s3 + $0x58] sm:$0xf]
  %v4944 = vld [vmem:[%s3 + $0x5c] sm:$0xf]
  %v4945 = vld [vmem:[%s3 + $0x60] sm:$0xf]
  %v4946 = vld [vmem:[%s3 + $0x64] sm:$0xf]
  %v4947 = vld [vmem:[%s3 + $0x68] sm:$0xf]
  %v4948 = vld [vmem:[%s3 + $0x6c] sm:$0xf]
  %v4949 = vld [vmem:[%s3 + $0x70] sm:$0xf]
  %v4950 = vld [vmem:[%s3 + $0x74] sm:$0xf]
  %v4951 = vld [vmem:[%s3 + $0x78] sm:$0xf]
  %v4952 = vld [vmem:[%s3 + $0x7c] sm:$0xf]
  %v4953 = vld [vmem:[%s3 + $0x80] sm:$0xf]
  %v4954 = vld [vmem:[%s3 + $0x84] sm:$0xf]
  %v4955 = vld [vmem:[%s3 + $0x88] sm:$0xf]
  %v4956 = vld [vmem:[%s3 + $0x8c] sm:$0xf]
  %v4957 = vld [vmem:[%s4] sm:$0x1]
  %v4959 = vlaneseq
  %v4960 = vshrl.u32 %v4959, 7
  %v4961 = vsub.s32 0, %v4960
  %v4962 = vrot.slane %v4957, %v4961
  %v5000 = vunpack.c.l.b16 %v4921
  %v5001 = vunpack.c.l.b16 %v4922
  %v5002 = vunpack.c.l.b16 %v4923
  %v5003 = vunpack.c.l.b16 %v4924
  %v5004 = vunpack.c.l.b16 %v4925
  %v5005 = vunpack.c.l.b16 %v4926
  %v5006 = vunpack.c.l.b16 %v4927
  %v5007 = vunpack.c.l.b16 %v4928
  %v5008 = vunpack.c.l.b16 %v4929
  %v5009 = vunpack.c.l.b16 %v4930
  %v5010 = vunpack.c.l.b16 %v4931
  %v5011 = vunpack.c.l.b16 %v4932
  %v5012 = vunpack.c.l.b16 %v4933
  %v5013 = vunpack.c.l.b16 %v4934
  %v5014 = vunpack.c.l.b16 %v4935
  %v5015 = vunpack.c.l.b16 %v4936
  %v5016 = vunpack.c.l.b16 %v4937
  %v5017 = vunpack.c.l.b16 %v4938
  %v5018 = vunpack.c.l.b16 %v4939
  %v5019 = vunpack.c.l.b16 %v4940
  %v5020 = vunpack.c.l.b16 %v4941
  %v5021 = vunpack.c.l.b16 %v4942
  %v5022 = vunpack.c.l.b16 %v4943
  %v5023 = vunpack.c.l.b16 %v4944
  %v5024 = vunpack.c.l.b16 %v4945
  %v5025 = vunpack.c.l.b16 %v4946
  %v5026 = vunpack.c.l.b16 %v4947
  %v5027 = vunpack.c.l.b16 %v4948
  %v5028 = vunpack.c.l.b16 %v4949
  %v5029 = vunpack.c.l.b16 %v4950
  %v5030 = vunpack.c.l.b16 %v4951
  %v5031 = vunpack.c.l.b16 %v4952
  %v5032 = vunpack.c.l.b16 %v4953
  %v5033 = vunpack.c.l.b16 %v4954
  %v5034 = vunpack.c.l.b16 %v4955
  %v5035 = vunpack.c.l.b16 %v4956
  %v5036 = vpack.c.b16 %v5001, %v5000
  %v5037 = vpack.c.b16 %v5003, %v5002
  %v5038 = vpack.c.b16 %v5005, %v5004
  %v5039 = vpack.c.b16 %v5007, %v5006
  %v5040 = vpack.c.b16 %v5009, %v5008
  %v5041 = vpack.c.b16 %v5011, %v5010
  %v5042 = vpack.c.b16 %v5013, %v5012
  %v5043 = vpack.c.b16 %v5015, %v5014
  %v5044 = vpack.c.b16 %v5017, %v5016
  %v5045 = vpack.c.b16 %v5019, %v5018
  %v5046 = vpack.c.b16 %v5021, %v5020
  %v5047 = vpack.c.b16 %v5023, %v5022
  %v5048 = vpack.c.b16 %v5025, %v5024
  %v5049 = vpack.c.b16 %v5027, %v5026
  %v5050 = vpack.c.b16 %v5029, %v5028
  %v5051 = vpack.c.b16 %v5031, %v5030
  %v5052 = vpack.c.b16 %v5033, %v5032
  %v5053 = vpack.c.b16 %v5035, %v5034
  %v5073 = vsel %vm149, %v4899, 0
  %v5076 = vsel %vm149, %v4902, 0
  %v5079 = vsel %vm149, %v4905, 0
  %v5082 = vsel %vm149, %v4908, 0
  %v5085 = vsel %vm149, %v4911, 0
  %v5088 = vsel %vm149, %v4914, 0
  %v5091 = vsel %vm149, %v4917, 0
  %v5094 = vsel %vm149, %v4920, 0
  %5096 = vmatprep.subr.bf16.mxu0 0
  %5097 = vmatpush1.bf16.msra.mxu0 %v5036
  %5098 = vmatprep.subr.bf16.mxu0 0
  %5099 = vmatpush1.bf16.msra.mxu0 %v5037
  %5100 = vmatprep.subr.bf16.mxu0 0
  %5101 = vmatpush1.bf16.msra.mxu0 %v5038
  %5102 = vmatprep.subr.bf16.mxu0 0
  %5103 = vmatpush1.bf16.msra.mxu0 %v5039
  %5104 = vmatprep.subr.bf16.mxu0 0
  %5105 = vmatpush1.bf16.msra.mxu0 %v5040
  %5106 = vmatprep.subr.bf16.mxu0 0
  %5107 = vmatpush1.bf16.msra.mxu0 %v5041
  %5108 = vmatprep.subr.bf16.mxu0 0
  %5109 = vmatpush1.bf16.msra.mxu0 %v5042
  %5110 = vmatprep.subr.bf16.mxu0 0
  %5111 = vmatpush1.bf16.msra.mxu0 %v5043
  %5112 = vmatprep.subr.bf16.mxu0 0
  %5113 = vmatpush1.bf16.msra.mxu0 %v5044
  %5114 = vmatprep.subr.bf16.mxu0 0
  %5115 = vmatpush1.bf16.msra.mxu0 %v5045
  %5116 = vmatprep.subr.bf16.mxu0 0
  %5117 = vmatpush1.bf16.msra.mxu0 %v5046
  %5118 = vmatprep.subr.bf16.mxu0 0
  %5119 = vmatpush1.bf16.msra.mxu0 %v5047
  %5120 = vmatprep.subr.bf16.mxu0 0
  %5121 = vmatpush1.bf16.msra.mxu0 %v5048
  %5122 = vmatprep.subr.bf16.mxu0 0
  %5123 = vmatpush1.bf16.msra.mxu0 %v5049
  %5124 = vmatprep.subr.bf16.mxu0 0
  %5125 = vmatpush1.bf16.msra.mxu0 %v5050
  %5126 = vmatprep.subr.bf16.mxu0 0
  %5127 = vmatpush1.bf16.msra.mxu0 %v5051
  %5128 = vmatprep.mubr.bf16.mxu0 %v4898
  %5129 = vmatmul.mubr.bf16.gmra.mrb[0].mxu0 %v4897
  %v5130 = vpop.f32.mrb[0].mxu0
  %v5131 = vadd.f32 %v4962, %v5130
  %v5132 = vpop.f32.mrb[0].mxu0
  %v5133 = vpop.f32.mrb[0].mxu0
  %v5134 = vadd.f32 %v4962, %v5133
  %v5135 = vpop.f32.mrb[0].mxu0
  %5136 = vmatprep.mubr.bf16.mxu0 %v4901
  %5137 = vmatmul.mubr.bf16.gmra.mrb[0].mxu0 %v4900
  %v5138 = vpop.f32.mrb[0].mxu0
  %v5139 = vadd.f32 %v4962, %v5138
  %v5140 = vpop.f32.mrb[0].mxu0
  %v5141 = vpop.f32.mrb[0].mxu0
  %v5142 = vadd.f32 %v4962, %v5141
  %v5143 = vpop.f32.mrb[0].mxu0
  %5144 = vmatprep.mubr.bf16.mxu0 %v4904
  %5145 = vmatmul.mubr.bf16.gmra.mrb[0].mxu0 %v4903
  %v5146 = vpop.f32.mrb[0].mxu0
  %v5147 = vadd.f32 %v4962, %v5146
  %v5148 = vpop.f32.mrb[0].mxu0
  %v5149 = vpop.f32.mrb[0].mxu0
  %v5150 = vadd.f32 %v4962, %v5149
  %v5151 = vpop.f32.mrb[0].mxu0
  %5152 = vmatprep.mubr.bf16.mxu0 %v4907
  %5153 = vmatmul.mubr.bf16.gmra.mrb[0].mxu0 %v4906
  %v5154 = vpop.f32.mrb[0].mxu0
  %v5155 = vadd.f32 %v4962, %v5154
  %v5156 = vpop.f32.mrb[0].mxu0
  %v5157 = vpop.f32.mrb[0].mxu0
  %v5158 = vadd.f32 %v4962, %v5157
  %v5159 = vpop.f32.mrb[0].mxu0
  %5160 = vmatprep.mubr.bf16.mxu0 %v4910
  %5161 = vmatmul.mubr.bf16.gmra.mrb[0].mxu0 %v4909
  %v5162 = vpop.f32.mrb[0].mxu0
  %v5163 = vadd.f32 %v4962, %v5162
  %v5164 = vpop.f32.mrb[0].mxu0
  %v5165 = vpop.f32.mrb[0].mxu0
  %v5166 = vadd.f32 %v4962, %v5165
  %v5167 = vpop.f32.mrb[0].mxu0
  %5168 = vmatprep.mubr.bf16.mxu0 %v4913
  %5169 = vmatmul.mubr.bf16.gmra.mrb[0].mxu0 %v4912
  %v5170 = vpop.f32.mrb[0].mxu0
  %v5171 = vadd.f32 %v4962, %v5170
  %v5172 = vpop.f32.mrb[0].mxu0
  %v5173 = vpop.f32.mrb[0].mxu0
  %v5174 = vadd.f32 %v4962, %v5173
  %v5175 = vpop.f32.mrb[0].mxu0
  %5176 = vmatprep.mubr.bf16.mxu0 %v4916
  %5177 = vmatmul.mubr.bf16.gmra.mrb[0].mxu0 %v4915
  %v5178 = vpop.f32.mrb[0].mxu0
  %v5179 = vadd.f32 %v4962, %v5178
  %v5180 = vpop.f32.mrb[0].mxu0
  %v5181 = vpop.f32.mrb[0].mxu0
  %v5182 = vadd.f32 %v4962, %v5181
  %v5183 = vpop.f32.mrb[0].mxu0
  %5184 = vmatprep.mubr.bf16.mxu0 %v4919
  %5185 = vmatmul.mubr.bf16.gmra.mrb[0].mxu0 %v4918
  %v5186 = vpop.f32.mrb[0].mxu0
  %v5187 = vadd.f32 %v4962, %v5186
  %v5188 = vpop.f32.mrb[0].mxu0
  %v5189 = vpop.f32.mrb[0].mxu0
  %v5190 = vadd.f32 %v4962, %v5189
  %v5191 = vpop.f32.mrb[0].mxu0
  %5192 = vdwg.mxu0
  %5193 = vmatprep.subr.bf16.mxu0 0
  %5194 = vmatpush1.bf16.msra.mxu0 %v5052
  %5195 = vmatprep.subr.bf16.mxu0 0
  %5196 = vmatpush1.bf16.msra.mxu0 %v5053
  %5197 = vmatprep.subr.bf16.mxu0 0
  %5198 = vmatpush1.bf16.msra.mxu0 0
  %5199 = vmatprep.subr.bf16.mxu0 0
  %5200 = vmatpush1.bf16.msra.mxu0 0
  %5201 = vmatprep.subr.bf16.mxu0 0
  %5202 = vmatpush1.bf16.msra.mxu0 0
  %5203 = vmatprep.subr.bf16.mxu0 0
  %5204 = vmatpush1.bf16.msra.mxu0 0
  %5205 = vmatprep.subr.bf16.mxu0 0
  %5206 = vmatpush1.bf16.msra.mxu0 0
  %5207 = vmatprep.subr.bf16.mxu0 0
  %5208 = vmatpush1.bf16.msra.mxu0 0
  %5209 = vmatprep.subr.bf16.mxu0 0
  %5210 = vmatpush1.bf16.msra.mxu0 0
  %5211 = vmatprep.subr.bf16.mxu0 0
  %5212 = vmatpush1.bf16.msra.mxu0 0
  %5213 = vmatprep.subr.bf16.mxu0 0
  %5214 = vmatpush1.bf16.msra.mxu0 0
  %5215 = vmatprep.subr.bf16.mxu0 0
  %5216 = vmatpush1.bf16.msra.mxu0 0
  %5217 = vmatprep.subr.bf16.mxu0 0
  %5218 = vmatpush1.bf16.msra.mxu0 0
  %5219 = vmatprep.subr.bf16.mxu0 0
  %5220 = vmatpush1.bf16.msra.mxu0 0
  %5221 = vmatprep.subr.bf16.mxu0 0
  %5222 = vmatpush1.bf16.msra.mxu0 0
  %5223 = vmatprep.subr.bf16.mxu0 0
  %5224 = vmatpush1.bf16.msra.mxu0 0
  %5225 = vmatprep.mubr.bf16.mxu0 0
  %5226 = vmatmul.mubr.bf16.gmra.mrb[0].mxu0 %v5073
  %v5227 = vpop.f32.mrb[0].mxu0
  %v5228 = vadd.f32 %v5131, %v5227
  %v5229 = vpop.f32.mrb[0].mxu0
  %v5230 = vpop.f32.mrb[0].mxu0
  %v5231 = vadd.f32 %v5134, %v5230
  %v5232 = vpop.f32.mrb[0].mxu0
  %5233 = vmatprep.mubr.bf16.mxu0 0
  %5234 = vmatmul.mubr.bf16.gmra.mrb[0].mxu0 %v5076
  %v5235 = vpop.f32.mrb[0].mxu0
  %v5236 = vadd.f32 %v5139, %v5235
  %v5237 = vpop.f32.mrb[0].mxu0
  %v5238 = vpop.f32.mrb[0].mxu0
  %v5239 = vadd.f32 %v5142, %v5238
  %v5240 = vpop.f32.mrb[0].mxu0
  %5241 = vmatprep.mubr.bf16.mxu0 0
  %5242 = vmatmul.mubr.bf16.gmra.mrb[0].mxu0 %v5079
  %v5243 = vpop.f32.mrb[0].mxu0
  %v5244 = vadd.f32 %v5147, %v5243
  %v5245 = vpop.f32.mrb[0].mxu0
  %v5246 = vpop.f32.mrb[0].mxu0
  %v5247 = vadd.f32 %v5150, %v5246
  %v5248 = vpop.f32.mrb[0].mxu0
  %5249 = vmatprep.mubr.bf16.mxu0 0
  %5250 = vmatmul.mubr.bf16.gmra.mrb[0].mxu0 %v5082
  %v5251 = vpop.f32.mrb[0].mxu0
  %v5252 = vadd.f32 %v5155, %v5251
  %v5253 = vpop.f32.mrb[0].mxu0
  %v5254 = vpop.f32.mrb[0].mxu0
  %v5255 = vadd.f32 %v5158, %v5254
  %v5256 = vpop.f32.mrb[0].mxu0
  %5257 = vmatprep.mubr.bf16.mxu0 0
  %5258 = vmatmul.mubr.bf16.gmra.mrb[0].mxu0 %v5085
  %v5259 = vpop.f32.mrb[0].mxu0
  %v5260 = vadd.f32 %v5163, %v5259
  %v5261 = vpop.f32.mrb[0].mxu0
  %v5262 = vpop.f32.mrb[0].mxu0
  %v5263 = vadd.f32 %v5166, %v5262
  %v5264 = vpop.f32.mrb[0].mxu0
  %5265 = vmatprep.mubr.bf16.mxu0 0
  %5266 = vmatmul.mubr.bf16.gmra.mrb[0].mxu0 %v5088
  %v5267 = vpop.f32.mrb[0].mxu0
  %v5268 = vadd.f32 %v5171, %v5267
  %v5269 = vpop.f32.mrb[0].mxu0
  %v5270 = vpop.f32.mrb[0].mxu0
  %v5271 = vadd.f32 %v5174, %v5270
  %v5272 = vpop.f32.mrb[0].mxu0
  %5273 = vmatprep.mubr.bf16.mxu0 0
  %5274 = vmatmul.mubr.bf16.gmra.mrb[0].mxu0 %v5091
  %v5275 = vpop.f32.mrb[0].mxu0
  %v5276 = vadd.f32 %v5179, %v5275
  %v5277 = vpop.f32.mrb[0].mxu0
  %v5278 = vpop.f32.mrb[0].mxu0
  %v5279 = vadd.f32 %v5182, %v5278
  %v5280 = vpop.f32.mrb[0].mxu0
  %5281 = vmatprep.mubr.bf16.mxu0 0
  %5282 = vmatmul.mubr.bf16.gmra.mrb[0].mxu0 %v5094
  %v5283 = vpop.f32.mrb[0].mxu0
  %v5284 = vadd.f32 %v5187, %v5283
  %v5285 = vpop.f32.mrb[0].mxu0
  %v5286 = vpop.f32.mrb[0].mxu0
  %v5287 = vadd.f32 %v5190, %v5286
  %v5288 = vpop.f32.mrb[0].mxu0
  %5289 = vdwg.mxu0
  %v5290 = vmax.f32 %v5228, 0.0
  %v5291 = vmax.f32 %v5231, 0.0
  %v5292 = vmax.f32 %v5236, 0.0
  %v5293 = vmax.f32 %v5239, 0.0
  %v5294 = vmax.f32 %v5244, 0.0
  %v5295 = vmax.f32 %v5247, 0.0
  %v5296 = vmax.f32 %v5252, 0.0
  %v5297 = vmax.f32 %v5255, 0.0
  %v5298 = vmax.f32 %v5260, 0.0
  %v5299 = vmax.f32 %v5263, 0.0
  %v5300 = vmax.f32 %v5268, 0.0
  %v5301 = vmax.f32 %v5271, 0.0
  %v5302 = vmax.f32 %v5276, 0.0
  %v5303 = vmax.f32 %v5279, 0.0
  %v5304 = vmax.f32 %v5284, 0.0
  %v5305 = vmax.f32 %v5287, 0.0
  %5306 = vst.msk [vmem:[#allocation5] sm:$0xff] %vm4815, %v5290
  %5307 = vst.msk [vmem:[#allocation5 + $0x8] sm:$0xff] %vm4815, %v5291
  %5308 = vst.msk [vmem:[#allocation5 + $0x10] sm:$0xff] %vm4815, %v5292
  %5309 = vst.msk [vmem:[#allocation5 + $0x18] sm:$0xff] %vm4815, %v5293
  %5310 = vst.msk [vmem:[#allocation5 + $0x20] sm:$0xff] %vm4815, %v5294
  %5311 = vst.msk [vmem:[#allocation5 + $0x28] sm:$0xff] %vm4815, %v5295
  %5312 = vst.msk [vmem:[#allocation5 + $0x30] sm:$0xff] %vm4815, %v5296
  %5313 = vst.msk [vmem:[#allocation5 + $0x38] sm:$0xff] %vm4815, %v5297
  %5314 = vst.msk [vmem:[#allocation5 + $0x40] sm:$0xff] %vm4815, %v5298
  %5315 = vst.msk [vmem:[#allocation5 + $0x48] sm:$0xff] %vm4815, %v5299
  %5316 = vst.msk [vmem:[#allocation5 + $0x50] sm:$0xff] %vm4815, %v5300
  %5317 = vst.msk [vmem:[#allocation5 + $0x58] sm:$0xff] %vm4815, %v5301
  %5318 = vst.msk [vmem:[#allocation5 + $0x60] sm:$0xff] %vm4815, %v5302
  %5319 = vst.msk [vmem:[#allocation5 + $0x68] sm:$0xff] %vm4815, %v5303
  %5320 = vst.msk [vmem:[#allocation5 + $0x70] sm:$0xff] %vm4815, %v5304
  %5321 = vst.msk [vmem:[#allocation5 + $0x78] sm:$0xff] %vm4815, %v5305
  %v5322 = vld [vmem:[#allocation5] ss:$2 sm:$0xff]
  %s5323 = scalar_lea.vmem [#allocation5], 16
  %v5324 = vld [vmem:[%s5323] ss:$2 sm:$0xff]
  %s5325 = scalar_lea.vmem [#allocation5], 32
  %v5326 = vld [vmem:[%s5325] ss:$2 sm:$0xff]
  %s5327 = scalar_lea.vmem [#allocation5], 48
  %v5328 = vld [vmem:[%s5327] ss:$2 sm:$0xff]
  %s5329 = scalar_lea.vmem [#allocation5], 64
  %v5330 = vld [vmem:[%s5329] ss:$2 sm:$0xff]
  %s5331 = scalar_lea.vmem [#allocation5], 80
  %v5332 = vld [vmem:[%s5331] ss:$2 sm:$0xff]
  %s5333 = scalar_lea.vmem [#allocation5], 96
  %v5334 = vld [vmem:[%s5333] ss:$2 sm:$0xff]
  %s5335 = scalar_lea.vmem [#allocation5], 112
  %v5336 = vld [vmem:[%s5335] ss:$2 sm:$0xff]
  %s5337 = scalar_lea.vmem [#allocation5], 1
  %v5338 = vld [vmem:[%s5337] ss:$2 sm:$0xff]
  %s5339 = scalar_lea.vmem [#allocation5], 17
  %v5340 = vld [vmem:[%s5339] ss:$2 sm:$0xff]
  %s5341 = scalar_lea.vmem [#allocation5], 33
  %v5342 = vld [vmem:[%s5341] ss:$2 sm:$0xff]
  %s5343 = scalar_lea.vmem [#allocation5], 49
  %v5344 = vld [vmem:[%s5343] ss:$2 sm:$0xff]
  %s5345 = scalar_lea.vmem [#allocation5], 65
  %v5346 = vld [vmem:[%s5345] ss:$2 sm:$0xff]
  %s5347 = scalar_lea.vmem [#allocation5], 81
  %v5348 = vld [vmem:[%s5347] ss:$2 sm:$0xff]
  %s5349 = scalar_lea.vmem [#allocation5], 97
  %v5350 = vld [vmem:[%s5349] ss:$2 sm:$0xff]
  %s5351 = scalar_lea.vmem [#allocation5], 113
  %v5352 = vld [vmem:[%s5351] ss:$2 sm:$0xff]
  %v5353 = vmax.f32 %v5322, %v5338
  %v5354 = vmax.f32 %v5324, %v5340
  %v5355 = vmax.f32 %v5326, %v5342
  %v5356 = vmax.f32 %v5328, %v5344
  %v5357 = vmax.f32 %v5330, %v5346
  %v5358 = vmax.f32 %v5332, %v5348
  %v5359 = vmax.f32 %v5334, %v5350
  %v5360 = vmax.f32 %v5336, %v5352
  %v5369 = vcombine.high %v5353, %v5353
  %v5370 = vcombine.high %v5354, %v5354
  %v5371 = vcombine.high %v5355, %v5355
  %v5372 = vcombine.high %v5356, %v5356
  %v5373 = vcombine.high %v5357, %v5357
  %v5374 = vcombine.high %v5358, %v5358
  %v5375 = vcombine.high %v5359, %v5359
  %v5376 = vcombine.high %v5360, %v5360
  %vm5385 = vcmask 519168
  %v5386 = vsel %vm5385, %v5353, -inf
  %v5387 = vsel %vm5385, %v5369, -inf
  %v5388 = vmax.f32 %v5386, %v5387
  %v5389 = vsel %vm5385, %v5354, -inf
  %v5390 = vsel %vm5385, %v5370, -inf
  %v5391 = vmax.f32 %v5389, %v5390
  %v5392 = vsel %vm5385, %v5355, -inf
  %v5393 = vsel %vm5385, %v5371, -inf
  %v5394 = vmax.f32 %v5392, %v5393
  %v5395 = vsel %vm5385, %v5356, -inf
  %v5396 = vsel %vm5385, %v5372, -inf
  %v5397 = vmax.f32 %v5395, %v5396
  %v5398 = vsel %vm5385, %v5357, -inf
  %v5399 = vsel %vm5385, %v5373, -inf
  %v5400 = vmax.f32 %v5398, %v5399
  %v5401 = vsel %vm5385, %v5358, -inf
  %v5402 = vsel %vm5385, %v5374, -inf
  %v5403 = vmax.f32 %v5401, %v5402
  %v5404 = vsel %vm5385, %v5359, -inf
  %v5405 = vsel %vm5385, %v5375, -inf
  %v5406 = vmax.f32 %v5404, %v5405
  %v5407 = vsel %vm5385, %v5360, -inf
  %v5408 = vsel %vm5385, %v5376, -inf
  %v5409 = vmax.f32 %v5407, %v5408
  %s5410 = scalar_lea.vmem [#allocation6], 8
  %5411 = vst.msk [vmem:[%s5410 + $0x1] sm:$0xf] %vm5385, %v5388
  %5412 = vst.msk [vmem:[%s5410 + $0x9] sm:$0xf] %vm5385, %v5391
  %5413 = vst.msk [vmem:[%s5410 + $0x11] sm:$0xf] %vm5385, %v5394
  %5414 = vst.msk [vmem:[%s5410 + $0x19] sm:$0xf] %vm5385, %v5397
  %5415 = vst.msk [vmem:[%s5410 + $0x31] sm:$0xf] %vm5385, %v5400
  %5416 = vst.msk [vmem:[%s5410 + $0x39] sm:$0xf] %vm5385, %v5403
  %5417 = vst.msk [vmem:[%s5410 + $0x41] sm:$0xf] %vm5385, %v5406
  %5418 = vst.msk [vmem:[%s5410 + $0x49] sm:$0xf] %vm5385, %v5409
  %v5419 = vld [vmem:[#allocation6] sm:$0xf]
  %v5420 = vld [vmem:[#allocation6 + $0x8] sm:$0xf]
  %v5421 = vld [vmem:[#allocation6 + $0x10] sm:$0xf]
  %v5422 = vld [vmem:[#allocation6 + $0x18] sm:$0xf]
  %v5423 = vld [vmem:[#allocation6 + $0x30] sm:$0xf]
  %v5424 = vld [vmem:[#allocation6 + $0x38] sm:$0xf]
  %v5425 = vld [vmem:[#allocation6 + $0x40] sm:$0xf]
  %v5426 = vld [vmem:[#allocation6 + $0x48] sm:$0xf]
  %v5427 = vld [vmem:[#allocation6 + $0x1] sm:$0xf]
  %v5428 = vld [vmem:[#allocation6 + $0x9] sm:$0xf]
  %v5429 = vld [vmem:[#allocation6 + $0x11] sm:$0xf]
  %v5430 = vld [vmem:[#allocation6 + $0x19] sm:$0xf]
  %v5431 = vld [vmem:[#allocation6 + $0x31] sm:$0xf]
  %v5432 = vld [vmem:[#allocation6 + $0x39] sm:$0xf]
  %v5433 = vld [vmem:[#allocation6 + $0x41] sm:$0xf]
  %v5434 = vld [vmem:[#allocation6 + $0x49] sm:$0xf]
  %v5435 = vld [vmem:[#allocation6 + $0x2] sm:$0xf]
  %v5436 = vld [vmem:[#allocation6 + $0xa] sm:$0xf]
  %v5437 = vld [vmem:[#allocation6 + $0x12] sm:$0xf]
  %v5438 = vld [vmem:[#allocation6 + $0x1a] sm:$0xf]
  %v5439 = vld [vmem:[#allocation6 + $0x32] sm:$0xf]
  %v5440 = vld [vmem:[#allocation6 + $0x3a] sm:$0xf]
  %v5441 = vld [vmem:[#allocation6 + $0x42] sm:$0xf]
  %v5442 = vld [vmem:[#allocation6 + $0x4a] sm:$0xf]
  %v5443 = vld [vmem:[%s5410] sm:$0xf]
  %v5444 = vld [vmem:[%s5410 + $0x8] sm:$0xf]
  %v5445 = vld [vmem:[%s5410 + $0x10] sm:$0xf]
  %v5446 = vld [vmem:[%s5410 + $0x18] sm:$0xf]
  %v5447 = vld [vmem:[%s5410 + $0x30] sm:$0xf]
  %v5448 = vld [vmem:[%s5410 + $0x38] sm:$0xf]
  %v5449 = vld [vmem:[%s5410 + $0x40] sm:$0xf]
  %v5450 = vld [vmem:[%s5410 + $0x48] sm:$0xf]
  %v5451 = vld [vmem:[%s5410 + $0x1] sm:$0xf]
  %v5452 = vld [vmem:[%s5410 + $0x9] sm:$0xf]
  %v5453 = vld [vmem:[%s5410 + $0x11] sm:$0xf]
  %v5454 = vld [vmem:[%s5410 + $0x19] sm:$0xf]
  %v5455 = vld [vmem:[%s5410 + $0x31] sm:$0xf]
  %v5456 = vld [vmem:[%s5410 + $0x39] sm:$0xf]
  %v5457 = vld [vmem:[%s5410 + $0x41] sm:$0xf]
  %v5458 = vld [vmem:[%s5410 + $0x49] sm:$0xf]
  %v5459 = vld [vmem:[%s5410 + $0x2] sm:$0xf]
  %v5460 = vld [vmem:[%s5410 + $0xa] sm:$0xf]
  %v5461 = vld [vmem:[%s5410 + $0x12] sm:$0xf]
  %v5462 = vld [vmem:[%s5410 + $0x1a] sm:$0xf]
  %v5463 = vld [vmem:[%s5410 + $0x32] sm:$0xf]
  %v5464 = vld [vmem:[%s5410 + $0x3a] sm:$0xf]
  %v5465 = vld [vmem:[%s5410 + $0x42] sm:$0xf]
  %v5466 = vld [vmem:[%s5410 + $0x4a] sm:$0xf]
  %s5467 = scalar_lea.vmem [#allocation6], 16
  %v5468 = vld [vmem:[%s5467] sm:$0xf]
  %v5469 = vld [vmem:[%s5467 + $0x8] sm:$0xf]
  %v5470 = vld [vmem:[%s5467 + $0x10] sm:$0xf]
  %v5471 = vld [vmem:[%s5467 + $0x18] sm:$0xf]
  %v5472 = vld [vmem:[%s5467 + $0x30] sm:$0xf]
  %v5473 = vld [vmem:[%s5467 + $0x38] sm:$0xf]
  %v5474 = vld [vmem:[%s5467 + $0x40] sm:$0xf]
  %v5475 = vld [vmem:[%s5467 + $0x48] sm:$0xf]
  %v5476 = vld [vmem:[%s5467 + $0x1] sm:$0xf]
  %v5477 = vld [vmem:[%s5467 + $0x9] sm:$0xf]
  %v5478 = vld [vmem:[%s5467 + $0x11] sm:$0xf]
  %v5479 = vld [vmem:[%s5467 + $0x19] sm:$0xf]
  %v5480 = vld [vmem:[%s5467 + $0x31] sm:$0xf]
  %v5481 = vld [vmem:[%s5467 + $0x39] sm:$0xf]
  %v5482 = vld [vmem:[%s5467 + $0x41] sm:$0xf]
  %v5483 = vld [vmem:[%s5467 + $0x49] sm:$0xf]
  %v5484 = vld [vmem:[%s5467 + $0x2] sm:$0xf]
  %v5485 = vld [vmem:[%s5467 + $0xa] sm:$0xf]
  %v5486 = vld [vmem:[%s5467 + $0x12] sm:$0xf]
  %v5487 = vld [vmem:[%s5467 + $0x1a] sm:$0xf]
  %v5488 = vld [vmem:[%s5467 + $0x32] sm:$0xf]
  %v5489 = vld [vmem:[%s5467 + $0x3a] sm:$0xf]
  %v5490 = vld [vmem:[%s5467 + $0x42] sm:$0xf]
  %v5491 = vld [vmem:[%s5467 + $0x4a] sm:$0xf]
  %v5500 = vcombine.low %v5419, %v5420
  %v5501 = vcombine.low %v5421, %v5422
  %v5502 = vcombine.low %v5423, %v5424
  %v5503 = vcombine.low %v5425, %v5426
  %v5516 = vcombine.low %v5427, %v5428
  %v5517 = vcombine.low %v5429, %v5430
  %v5518 = vcombine.low %v5431, %v5432
  %v5519 = vcombine.low %v5433, %v5434
  %5520 = vrot.lane.b32.xlu0 %v5516, 64
  %v5521 = vpop.permute.xlu0 %5520
  %5522 = vrot.lane.b32.xlu0 %v5517, 64
  %v5523 = vpop.permute.xlu0 %5522
  %5524 = vrot.lane.b32.xlu0 %v5518, 64
  %v5525 = vpop.permute.xlu0 %5524
  %5526 = vrot.lane.b32.xlu0 %v5519, 64
  %v5527 = vpop.permute.xlu0 %5526
  %v5540 = vcombine.low %v5435, %v5436
  %v5541 = vcombine.low %v5437, %v5438
  %v5542 = vcombine.low %v5439, %v5440
  %v5543 = vcombine.low %v5441, %v5442
  %v5556 = vcombine.low %v5443, %v5444
  %v5557 = vcombine.low %v5445, %v5446
  %v5558 = vcombine.low %v5447, %v5448
  %v5559 = vcombine.low %v5449, %v5450
  %5560 = vrot.lane.b32.xlu0 %v5556, 64
  %v5561 = vpop.permute.xlu0 %5560
  %5562 = vrot.lane.b32.xlu0 %v5557, 64
  %v5563 = vpop.permute.xlu0 %5562
  %5564 = vrot.lane.b32.xlu0 %v5558, 64
  %v5565 = vpop.permute.xlu0 %5564
  %5566 = vrot.lane.b32.xlu0 %v5559, 64
  %v5567 = vpop.permute.xlu0 %5566
  %v5580 = vcombine.low %v5451, %v5452
  %v5581 = vcombine.low %v5453, %v5454
  %v5582 = vcombine.low %v5455, %v5456
  %v5583 = vcombine.low %v5457, %v5458
  %v5596 = vcombine.low %v5459, %v5460
  %v5597 = vcombine.low %v5461, %v5462
  %v5598 = vcombine.low %v5463, %v5464
  %v5599 = vcombine.low %v5465, %v5466
  %5600 = vrot.lane.b32.xlu0 %v5596, 64
  %v5601 = vpop.permute.xlu0 %5600
  %5602 = vrot.lane.b32.xlu0 %v5597, 64
  %v5603 = vpop.permute.xlu0 %5602
  %5604 = vrot.lane.b32.xlu0 %v5598, 64
  %v5605 = vpop.permute.xlu0 %5604
  %5606 = vrot.lane.b32.xlu0 %v5599, 64
  %v5607 = vpop.permute.xlu0 %5606
  %v5620 = vcombine.low %v5468, %v5469
  %v5621 = vcombine.low %v5470, %v5471
  %v5622 = vcombine.low %v5472, %v5473
  %v5623 = vcombine.low %v5474, %v5475
  %v5636 = vcombine.low %v5476, %v5477
  %v5637 = vcombine.low %v5478, %v5479
  %v5638 = vcombine.low %v5480, %v5481
  %v5639 = vcombine.low %v5482, %v5483
  %5640 = vrot.lane.b32.xlu0 %v5636, 64
  %v5641 = vpop.permute.xlu0 %5640
  %5642 = vrot.lane.b32.xlu0 %v5637, 64
  %v5643 = vpop.permute.xlu0 %5642
  %5644 = vrot.lane.b32.xlu0 %v5638, 64
  %v5645 = vpop.permute.xlu0 %5644
  %5646 = vrot.lane.b32.xlu0 %v5639, 64
  %v5647 = vpop.permute.xlu0 %5646
  %v5660 = vcombine.low %v5484, %v5485
  %v5661 = vcombine.low %v5486, %v5487
  %v5662 = vcombine.low %v5488, %v5489
  %v5663 = vcombine.low %v5490, %v5491
  %v5668 = vsel %vm4815, %v5500, %v5521
  %v5669 = vsel %vm4815, %v5501, %v5523
  %v5670 = vsel %vm4815, %v5502, %v5525
  %v5671 = vsel %vm4815, %v5503, %v5527
  %v5672 = vsel %vm4815, %v5540, %v5561
  %v5673 = vsel %vm4815, %v5541, %v5563
  %v5674 = vsel %vm4815, %v5542, %v5565
  %v5675 = vsel %vm4815, %v5543, %v5567
  %v5676 = vsel %vm4815, %v5580, %v5601
  %v5677 = vsel %vm4815, %v5581, %v5603
  %v5678 = vsel %vm4815, %v5582, %v5605
  %v5679 = vsel %vm4815, %v5583, %v5607
  %v5680 = vsel %vm4815, %v5620, %v5641
  %v5681 = vsel %vm4815, %v5621, %v5643
  %v5682 = vsel %vm4815, %v5622, %v5645
  %v5683 = vsel %vm4815, %v5623, %v5647
  %v5684 = vpack.c.bf16 %v5669, %v5668
  %v5685 = vpack.c.bf16 %v5673, %v5672
  %v5686 = vpack.c.bf16 %v5677, %v5676
  %v5687 = vpack.c.bf16 %v5681, %v5680
  %v5688 = vpack.c.bf16 %v5661, %v5660
  %v5689 = vpack.c.bf16 %v5671, %v5670
  %v5690 = vpack.c.bf16 %v5675, %v5674
  %v5691 = vpack.c.bf16 %v5679, %v5678
  %v5692 = vpack.c.bf16 %v5683, %v5682
  %v5693 = vpack.c.bf16 %v5663, %v5662
  %v5694 = vld [vmem:[%s5] sm:$0xf]
  %v5695 = vld [vmem:[%s5 + $0x4] sm:$0xf]
  %v5696 = vld [vmem:[%s5 + $0x8] sm:$0xf]
  %v5697 = vld [vmem:[%s5 + $0xc] sm:$0xf]
  %v5698 = vld [vmem:[%s5 + $0x10] sm:$0xf]
  %v5699 = vld [vmem:[%s5 + $0x14] sm:$0xf]
  %v5700 = vld [vmem:[%s5 + $0x18] sm:$0xf]
  %v5701 = vld [vmem:[%s5 + $0x1c] sm:$0xf]
  %v5702 = vld [vmem:[%s5 + $0x20] sm:$0xf]
  %v5703 = vld [vmem:[%s5 + $0x24] sm:$0xf]
  %v5704 = vld [vmem:[%s5 + $0x28] sm:$0xf]
  %v5705 = vld [vmem:[%s5 + $0x2c] sm:$0xf]
  %v5706 = vld [vmem:[%s5 + $0x30] sm:$0xf]
  %v5707 = vld [vmem:[%s5 + $0x34] sm:$0xf]
  %v5708 = vld [vmem:[%s5 + $0x38] sm:$0xf]
  %v5709 = vld [vmem:[%s5 + $0x3c] sm:$0xf]
  %v5710 = vld [vmem:[%s5 + $0x40] sm:$0xf]
  %v5711 = vld [vmem:[%s5 + $0x44] sm:$0xf]
  %v5712 = vld [vmem:[%s5 + $0x48] sm:$0xf]
  %v5713 = vld [vmem:[%s5 + $0x4c] sm:$0xf]
  %v5714 = vld [vmem:[%s5 + $0x50] sm:$0xf]
  %v5715 = vld [vmem:[%s5 + $0x54] sm:$0xf]
  %v5716 = vld [vmem:[%s5 + $0x58] sm:$0xf]
  %v5717 = vld [vmem:[%s5 + $0x5c] sm:$0xf]
  %v5718 = vld [vmem:[%s5 + $0x60] sm:$0xf]
  %v5719 = vld [vmem:[%s5 + $0x64] sm:$0xf]
  %v5720 = vld [vmem:[%s5 + $0x68] sm:$0xf]
  %v5721 = vld [vmem:[%s5 + $0x6c] sm:$0xf]
  %v5722 = vld [vmem:[%s5 + $0x70] sm:$0xf]
  %v5723 = vld [vmem:[%s5 + $0x74] sm:$0xf]
  %v5724 = vld [vmem:[%s5 + $0x78] sm:$0xf]
  %v5725 = vld [vmem:[%s5 + $0x7c] sm:$0xf]
  %v5726 = vld [vmem:[%s5 + $0x80] sm:$0xf]
  %v5727 = vld [vmem:[%s5 + $0x84] sm:$0xf]
  %v5728 = vld [vmem:[%s5 + $0x88] sm:$0xf]
  %v5729 = vld [vmem:[%s5 + $0x8c] sm:$0xf]
  %v5730 = vld [vmem:[%s5 + $0x90] sm:$0xf]
  %v5731 = vld [vmem:[%s5 + $0x94] sm:$0xf]
  %v5732 = vld [vmem:[%s5 + $0x98] sm:$0xf]
  %v5733 = vld [vmem:[%s5 + $0x9c] sm:$0xf]
  %v5734 = vld [vmem:[%s5 + $0xa0] sm:$0xf]
  %v5735 = vld [vmem:[%s5 + $0xa4] sm:$0xf]
  %v5736 = vld [vmem:[%s5 + $0xa8] sm:$0xf]
  %v5737 = vld [vmem:[%s5 + $0xac] sm:$0xf]
  %v5738 = vld [vmem:[%s5 + $0xb0] sm:$0xf]
  %v5739 = vld [vmem:[%s5 + $0xb4] sm:$0xf]
  %v5740 = vld [vmem:[%s5 + $0xb8] sm:$0xf]
  %v5741 = vld [vmem:[%s5 + $0xbc] sm:$0xf]
  %v5742 = vld [vmem:[%s5 + $0xc0] sm:$0xf]
  %v5743 = vld [vmem:[%s5 + $0xc4] sm:$0xf]
  %v5744 = vld [vmem:[%s5 + $0xc8] sm:$0xf]
  %v5745 = vld [vmem:[%s5 + $0xcc] sm:$0xf]
  %v5746 = vld [vmem:[%s5 + $0xd0] sm:$0xf]
  %v5747 = vld [vmem:[%s5 + $0xd4] sm:$0xf]
  %v5748 = vld [vmem:[%s5 + $0xd8] sm:$0xf]
  %v5749 = vld [vmem:[%s5 + $0xdc] sm:$0xf]
  %v5750 = vld [vmem:[%s5 + $0xe0] sm:$0xf]
  %v5751 = vld [vmem:[%s5 + $0xe4] sm:$0xf]
  %v5752 = vld [vmem:[%s5 + $0xe8] sm:$0xf]
  %v5753 = vld [vmem:[%s5 + $0xec] sm:$0xf]
  %v5754 = vld [vmem:[%s5 + $0xf0] sm:$0xf]
  %v5755 = vld [vmem:[%s5 + $0xf4] sm:$0xf]
  %v5756 = vld [vmem:[%s5 + $0xf8] sm:$0xf]
  %v5757 = vld [vmem:[%s5 + $0xfc] sm:$0xf]
  %v5758 = vld [vmem:[%s5 + $0x100] sm:$0xf]
  %v5759 = vld [vmem:[%s5 + $0x104] sm:$0xf]
  %v5760 = vld [vmem:[%s5 + $0x108] sm:$0xf]
  %v5761 = vld [vmem:[%s5 + $0x10c] sm:$0xf]
  %v5762 = vld [vmem:[%s5 + $0x110] sm:$0xf]
  %v5763 = vld [vmem:[%s5 + $0x114] sm:$0xf]
  %v5764 = vld [vmem:[%s5 + $0x118] sm:$0xf]
  %v5765 = vld [vmem:[%s5 + $0x11c] sm:$0xf]
  %v5766 = vld [vmem:[%s6] sm:$0x1]
  %v5768 = vlaneseq
  %v5769 = vshrl.u32 %v5768, 7
  %v5770 = vsub.s32 0, %v5769
  %v5771 = vrot.slane %v5766, %v5770
  %v5845 = vunpack.c.l.b16 %v5694
  %v5846 = vunpack.c.l.b16 %v5695
  %v5847 = vunpack.c.l.b16 %v5696
  %v5848 = vunpack.c.l.b16 %v5697
  %v5849 = vunpack.c.l.b16 %v5698
  %v5850 = vunpack.c.l.b16 %v5699
  %v5851 = vunpack.c.l.b16 %v5700
  %v5852 = vunpack.c.l.b16 %v5701
  %v5853 = vunpack.c.l.b16 %v5702
  %v5854 = vunpack.c.l.b16 %v5703
  %v5855 = vunpack.c.l.b16 %v5704
  %v5856 = vunpack.c.l.b16 %v5705
  %v5857 = vunpack.c.l.b16 %v5706
  %v5858 = vunpack.c.l.b16 %v5707
  %v5859 = vunpack.c.l.b16 %v5708
  %v5860 = vunpack.c.l.b16 %v5709
  %v5861 = vunpack.c.l.b16 %v5710
  %v5862 = vunpack.c.l.b16 %v5711
  %v5863 = vunpack.c.l.b16 %v5712
  %v5864 = vunpack.c.l.b16 %v5713
  %v5865 = vunpack.c.l.b16 %v5714
  %v5866 = vunpack.c.l.b16 %v5715
  %v5867 = vunpack.c.l.b16 %v5716
  %v5868 = vunpack.c.l.b16 %v5717
  %v5869 = vunpack.c.l.b16 %v5718
  %v5870 = vunpack.c.l.b16 %v5719
  %v5871 = vunpack.c.l.b16 %v5720
  %v5872 = vunpack.c.l.b16 %v5721
  %v5873 = vunpack.c.l.b16 %v5722
  %v5874 = vunpack.c.l.b16 %v5723
  %v5875 = vunpack.c.l.b16 %v5724
  %v5876 = vunpack.c.l.b16 %v5725
  %v5877 = vunpack.c.l.b16 %v5726
  %v5878 = vunpack.c.l.b16 %v5727
  %v5879 = vunpack.c.l.b16 %v5728
  %v5880 = vunpack.c.l.b16 %v5729
  %v5881 = vunpack.c.l.b16 %v5730
  %v5882 = vunpack.c.l.b16 %v5731
  %v5883 = vunpack.c.l.b16 %v5732
  %v5884 = vunpack.c.l.b16 %v5733
  %v5885 = vunpack.c.l.b16 %v5734
  %v5886 = vunpack.c.l.b16 %v5735
  %v5887 = vunpack.c.l.b16 %v5736
  %v5888 = vunpack.c.l.b16 %v5737
  %v5889 = vunpack.c.l.b16 %v5738
  %v5890 = vunpack.c.l.b16 %v5739
  %v5891 = vunpack.c.l.b16 %v5740
  %v5892 = vunpack.c.l.b16 %v5741
  %v5893 = vunpack.c.l.b16 %v5742
  %v5894 = vunpack.c.l.b16 %v5743
  %v5895 = vunpack.c.l.b16 %v5744
  %v5896 = vunpack.c.l.b16 %v5745
  %v5897 = vunpack.c.l.b16 %v5746
  %v5898 = vunpack.c.l.b16 %v5747
  %v5899 = vunpack.c.l.b16 %v5748
  %v5900 = vunpack.c.l.b16 %v5749
  %v5901 = vunpack.c.l.b16 %v5750
  %v5902 = vunpack.c.l.b16 %v5751
  %v5903 = vunpack.c.l.b16 %v5752
  %v5904 = vunpack.c.l.b16 %v5753
  %v5905 = vunpack.c.l.b16 %v5754
  %v5906 = vunpack.c.l.b16 %v5755
  %v5907 = vunpack.c.l.b16 %v5756
  %v5908 = vunpack.c.l.b16 %v5757
  %v5909 = vunpack.c.l.b16 %v5758
  %v5910 = vunpack.c.l.b16 %v5759
  %v5911 = vunpack.c.l.b16 %v5760
  %v5912 = vunpack.c.l.b16 %v5761
  %v5913 = vunpack.c.l.b16 %v5762
  %v5914 = vunpack.c.l.b16 %v5763
  %v5915 = vunpack.c.l.b16 %v5764
  %v5916 = vunpack.c.l.b16 %v5765
  %v5917 = vpack.c.b16 %v5846, %v5845
  %v5918 = vpack.c.b16 %v5848, %v5847
  %v5919 = vpack.c.b16 %v5850, %v5849
  %v5920 = vpack.c.b16 %v5852, %v5851
  %v5921 = vpack.c.b16 %v5854, %v5853
  %v5922 = vpack.c.b16 %v5856, %v5855
  %v5923 = vpack.c.b16 %v5858, %v5857
  %v5924 = vpack.c.b16 %v5860, %v5859
  %v5925 = vpack.c.b16 %v5862, %v5861
  %v5926 = vpack.c.b16 %v5864, %v5863
  %v5927 = vpack.c.b16 %v5866, %v5865
  %v5928 = vpack.c.b16 %v5868, %v5867
  %v5929 = vpack.c.b16 %v5870, %v5869
  %v5930 = vpack.c.b16 %v5872, %v5871
  %v5931 = vpack.c.b16 %v5874, %v5873
  %v5932 = vpack.c.b16 %v5876, %v5875
  %v5933 = vpack.c.b16 %v5878, %v5877
  %v5934 = vpack.c.b16 %v5880, %v5879
  %v5935 = vpack.c.b16 %v5882, %v5881
  %v5936 = vpack.c.b16 %v5884, %v5883
  %v5937 = vpack.c.b16 %v5886, %v5885
  %v5938 = vpack.c.b16 %v5888, %v5887
  %v5939 = vpack.c.b16 %v5890, %v5889
  %v5940 = vpack.c.b16 %v5892, %v5891
  %v5941 = vpack.c.b16 %v5894, %v5893
  %v5942 = vpack.c.b16 %v5896, %v5895
  %v5943 = vpack.c.b16 %v5898, %v5897
  %v5944 = vpack.c.b16 %v5900, %v5899
  %v5945 = vpack.c.b16 %v5902, %v5901
  %v5946 = vpack.c.b16 %v5904, %v5903
  %v5947 = vpack.c.b16 %v5906, %v5905
  %v5948 = vpack.c.b16 %v5908, %v5907
  %v5949 = vpack.c.b16 %v5910, %v5909
  %v5950 = vpack.c.b16 %v5912, %v5911
  %v5951 = vpack.c.b16 %v5914, %v5913
  %v5952 = vpack.c.b16 %v5916, %v5915
  %v5990 = vsel %vm4815, %v5688, 0
  %v5993 = vsel %vm4815, %v5693, 0
  %5995 = vmatprep.subr.bf16.mxu0 0
  %5996 = vmatpush1.bf16.msra.mxu0 %v5917
  %5997 = vmatprep.subr.bf16.mxu0 0
  %5998 = vmatpush1.bf16.msra.mxu0 %v5918
  %5999 = vmatprep.subr.bf16.mxu0 0
  %6000 = vmatpush1.bf16.msra.mxu0 %v5919
  %6001 = vmatprep.subr.bf16.mxu0 0
  %6002 = vmatpush1.bf16.msra.mxu0 %v5920
  %6003 = vmatprep.subr.bf16.mxu0 0
  %6004 = vmatpush1.bf16.msra.mxu0 %v5921
  %6005 = vmatprep.subr.bf16.mxu0 0
  %6006 = vmatpush1.bf16.msra.mxu0 %v5922
  %6007 = vmatprep.subr.bf16.mxu0 0
  %6008 = vmatpush1.bf16.msra.mxu0 %v5923
  %6009 = vmatprep.subr.bf16.mxu0 0
  %6010 = vmatpush1.bf16.msra.mxu0 %v5924
  %6011 = vmatprep.subr.bf16.mxu0 0
  %6012 = vmatpush1.bf16.msra.mxu0 %v5925
  %6013 = vmatprep.subr.bf16.mxu0 0
  %6014 = vmatpush1.bf16.msra.mxu0 %v5926
  %6015 = vmatprep.subr.bf16.mxu0 0
  %6016 = vmatpush1.bf16.msra.mxu0 %v5927
  %6017 = vmatprep.subr.bf16.mxu0 0
  %6018 = vmatpush1.bf16.msra.mxu0 %v5928
  %6019 = vmatprep.subr.bf16.mxu0 0
  %6020 = vmatpush1.bf16.msra.mxu0 %v5929
  %6021 = vmatprep.subr.bf16.mxu0 0
  %6022 = vmatpush1.bf16.msra.mxu0 %v5930
  %6023 = vmatprep.subr.bf16.mxu0 0
  %6024 = vmatpush1.bf16.msra.mxu0 %v5931
  %6025 = vmatprep.subr.bf16.mxu0 0
  %6026 = vmatpush1.bf16.msra.mxu0 %v5932
  %6027 = vmatprep.mubr.bf16.mxu0 %v5685
  %6028 = vmatmul.mubr.bf16.gmra.mrb[0].mxu0 %v5684
  %v6029 = vpop.f32.mrb[0].mxu0
  %v6030 = vadd.f32 %v5771, %v6029
  %v6031 = vpop.f32.mrb[0].mxu0
  %v6032 = vpop.f32.mrb[0].mxu0
  %v6033 = vadd.f32 %v5771, %v6032
  %v6034 = vpop.f32.mrb[0].mxu0
  %6035 = vmatprep.mubr.bf16.mxu0 %v5690
  %6036 = vmatmul.mubr.bf16.gmra.mrb[0].mxu0 %v5689
  %v6037 = vpop.f32.mrb[0].mxu0
  %v6038 = vadd.f32 %v5771, %v6037
  %v6039 = vpop.f32.mrb[0].mxu0
  %v6040 = vpop.f32.mrb[0].mxu0
  %v6041 = vadd.f32 %v5771, %v6040
  %v6042 = vpop.f32.mrb[0].mxu0
  %6043 = vdwg.mxu0
  %6044 = vmatprep.subr.bf16.mxu0 0
  %6045 = vmatpush1.bf16.msra.mxu0 %v5933
  %6046 = vmatprep.subr.bf16.mxu0 0
  %6047 = vmatpush1.bf16.msra.mxu0 %v5934
  %6048 = vmatprep.subr.bf16.mxu0 0
  %6049 = vmatpush1.bf16.msra.mxu0 %v5935
  %6050 = vmatprep.subr.bf16.mxu0 0
  %6051 = vmatpush1.bf16.msra.mxu0 %v5936
  %6052 = vmatprep.subr.bf16.mxu0 0
  %6053 = vmatpush1.bf16.msra.mxu0 %v5937
  %6054 = vmatprep.subr.bf16.mxu0 0
  %6055 = vmatpush1.bf16.msra.mxu0 %v5938
  %6056 = vmatprep.subr.bf16.mxu0 0
  %6057 = vmatpush1.bf16.msra.mxu0 %v5939
  %6058 = vmatprep.subr.bf16.mxu0 0
  %6059 = vmatpush1.bf16.msra.mxu0 %v5940
  %6060 = vmatprep.subr.bf16.mxu0 0
  %6061 = vmatpush1.bf16.msra.mxu0 %v5941
  %6062 = vmatprep.subr.bf16.mxu0 0
  %6063 = vmatpush1.bf16.msra.mxu0 %v5942
  %6064 = vmatprep.subr.bf16.mxu0 0
  %6065 = vmatpush1.bf16.msra.mxu0 %v5943
  %6066 = vmatprep.subr.bf16.mxu0 0
  %6067 = vmatpush1.bf16.msra.mxu0 %v5944
  %6068 = vmatprep.subr.bf16.mxu0 0
  %6069 = vmatpush1.bf16.msra.mxu0 %v5945
  %6070 = vmatprep.subr.bf16.mxu0 0
  %6071 = vmatpush1.bf16.msra.mxu0 %v5946
  %6072 = vmatprep.subr.bf16.mxu0 0
  %6073 = vmatpush1.bf16.msra.mxu0 %v5947
  %6074 = vmatprep.subr.bf16.mxu0 0
  %6075 = vmatpush1.bf16.msra.mxu0 %v5948
  %6076 = vmatprep.mubr.bf16.mxu0 %v5687
  %6077 = vmatmul.mubr.bf16.gmra.mrb[0].mxu0 %v5686
  %v6078 = vpop.f32.mrb[0].mxu0
  %v6079 = vadd.f32 %v6030, %v6078
  %v6080 = vpop.f32.mrb[0].mxu0
  %v6081 = vpop.f32.mrb[0].mxu0
  %v6082 = vadd.f32 %v6033, %v6081
  %v6083 = vpop.f32.mrb[0].mxu0
  %6084 = vmatprep.mubr.bf16.mxu0 %v5692
  %6085 = vmatmul.mubr.bf16.gmra.mrb[0].mxu0 %v5691
  %v6086 = vpop.f32.mrb[0].mxu0
  %v6087 = vadd.f32 %v6038, %v6086
  %v6088 = vpop.f32.mrb[0].mxu0
  %v6089 = vpop.f32.mrb[0].mxu0
  %v6090 = vadd.f32 %v6041, %v6089
  %v6091 = vpop.f32.mrb[0].mxu0
  %6092 = vdwg.mxu0
  %6093 = vmatprep.subr.bf16.mxu0 0
  %6094 = vmatpush1.bf16.msra.mxu0 %v5949
  %6095 = vmatprep.subr.bf16.mxu0 0
  %6096 = vmatpush1.bf16.msra.mxu0 %v5950
  %6097 = vmatprep.subr.bf16.mxu0 0
  %6098 = vmatpush1.bf16.msra.mxu0 %v5951
  %6099 = vmatprep.subr.bf16.mxu0 0
  %6100 = vmatpush1.bf16.msra.mxu0 %v5952
  %6101 = vmatprep.subr.bf16.mxu0 0
  %6102 = vmatpush1.bf16.msra.mxu0 0
  %6103 = vmatprep.subr.bf16.mxu0 0
  %6104 = vmatpush1.bf16.msra.mxu0 0
  %6105 = vmatprep.subr.bf16.mxu0 0
  %6106 = vmatpush1.bf16.msra.mxu0 0
  %6107 = vmatprep.subr.bf16.mxu0 0
  %6108 = vmatpush1.bf16.msra.mxu0 0
  %6109 = vmatprep.subr.bf16.mxu0 0
  %6110 = vmatpush1.bf16.msra.mxu0 0
  %6111 = vmatprep.subr.bf16.mxu0 0
  %6112 = vmatpush1.bf16.msra.mxu0 0
  %6113 = vmatprep.subr.bf16.mxu0 0
  %6114 = vmatpush1.bf16.msra.mxu0 0
  %6115 = vmatprep.subr.bf16.mxu0 0
  %6116 = vmatpush1.bf16.msra.mxu0 0
  %6117 = vmatprep.subr.bf16.mxu0 0
  %6118 = vmatpush1.bf16.msra.mxu0 0
  %6119 = vmatprep.subr.bf16.mxu0 0
  %6120 = vmatpush1.bf16.msra.mxu0 0
  %6121 = vmatprep.subr.bf16.mxu0 0
  %6122 = vmatpush1.bf16.msra.mxu0 0
  %6123 = vmatprep.subr.bf16.mxu0 0
  %6124 = vmatpush1.bf16.msra.mxu0 0
  %6125 = vmatprep.mubr.bf16.mxu0 0
  %6126 = vmatmul.mubr.bf16.gmra.mrb[0].mxu0 %v5990
  %v6127 = vpop.f32.mrb[0].mxu0
  %v6128 = vadd.f32 %v6079, %v6127
  %v6129 = vpop.f32.mrb[0].mxu0
  %v6130 = vpop.f32.mrb[0].mxu0
  %v6131 = vadd.f32 %v6082, %v6130
  %v6132 = vpop.f32.mrb[0].mxu0
  %6133 = vmatprep.mubr.bf16.mxu0 0
  %6134 = vmatmul.mubr.bf16.gmra.mrb[0].mxu0 %v5993
  %v6135 = vpop.f32.mrb[0].mxu0
  %v6136 = vadd.f32 %v6087, %v6135
  %v6137 = vpop.f32.mrb[0].mxu0
  %v6138 = vpop.f32.mrb[0].mxu0
  %v6139 = vadd.f32 %v6090, %v6138
  %v6140 = vpop.f32.mrb[0].mxu0
  %6141 = vdwg.mxu0
  %v6142 = vmax.f32 %v6128, 0.0
  %v6143 = vmax.f32 %v6131, 0.0
  %v6144 = vmax.f32 %v6136, 0.0
  %v6145 = vmax.f32 %v6139, 0.0
  %6146 = vst [vmem:[#allocation7] sm:$0xff] %v6142
  %6147 = vst [vmem:[#allocation7 + $0x8] sm:$0xff] %v6143
  %6148 = vst [vmem:[#allocation7 + $0x10] sm:$0xff] %v6144
  %6149 = vst [vmem:[#allocation7 + $0x18] sm:$0xff] %v6145
  %v6150 = vld [vmem:[#allocation7] ss:$2 sm:$0xff]
  %s6151 = scalar_lea.vmem [#allocation7], 16
  %v6152 = vld [vmem:[%s6151] ss:$2 sm:$0xff]
  %s6153 = scalar_lea.vmem [#allocation7], 1
  %v6154 = vld [vmem:[%s6153] ss:$2 sm:$0xff]
  %s6155 = scalar_lea.vmem [#allocation7], 17
  %v6156 = vld [vmem:[%s6155] ss:$2 sm:$0xff]
  %v6157 = vmax.f32 %v6150, %v6154
  %v6158 = vmax.f32 %v6152, %v6156
  %v6161 = vcombine.high %v6157, %v6157
  %v6163 = vunpack.c.l.s4 1983009808
  %v6164 = vunpack.c.0.s8 %v6163
  %v6165 = vlaneseq
  %v6166 = vshrl.u32 %v6165, 7
  %v6167 = vsub.s32 %v6164, %v6166
  %v6168 = vrot.slane %v6157, %v6167
  %v6170 = vunpack.c.l.s4 1983009808
  %v6171 = vunpack.c.0.s8 %v6170
  %v6172 = vlaneseq
  %v6173 = vshrl.u32 %v6172, 7
  %v6174 = vsub.s32 %v6171, %v6173
  %v6175 = vrot.slane %v6161, %v6174
  %v6176 = vcombine.high %v6168, %v6168
  %v6177 = vcombine.high %v6175, %v6175
  %v6178 = vcombine.high %v6158, %v6158
  %v6180 = vunpack.c.l.s4 1983009808
  %v6181 = vunpack.c.0.s8 %v6180
  %v6182 = vlaneseq
  %v6183 = vshrl.u32 %v6182, 7
  %v6184 = vsub.s32 %v6181, %v6183
  %v6185 = vrot.slane %v6158, %v6184
  %v6187 = vunpack.c.l.s4 1983009808
  %v6188 = vunpack.c.0.s8 %v6187
  %v6189 = vlaneseq
  %v6190 = vshrl.u32 %v6189, 7
  %v6191 = vsub.s32 %v6188, %v6190
  %v6192 = vrot.slane %v6178, %v6191
  %v6193 = vcombine.high %v6185, %v6185
  %v6194 = vcombine.high %v6192, %v6192
  %vm6203 = vcmask 1041408
  %v6204 = vsel %vm6203, %v6168, -inf
  %v6205 = vsel %vm6203, %v6176, -inf
  %v6206 = vmax.f32 %v6204, %v6205
  %v6207 = vsel %vm6203, %v6175, -inf
  %v6208 = vsel %vm6203, %v6177, -inf
  %v6209 = vmax.f32 %v6207, %v6208
  %v6210 = vsel %vm6203, %v6185, -inf
  %v6211 = vsel %vm6203, %v6193, -inf
  %v6212 = vmax.f32 %v6210, %v6211
  %v6213 = vsel %vm6203, %v6192, -inf
  %v6214 = vsel %vm6203, %v6194, -inf
  %v6215 = vmax.f32 %v6213, %v6214
  %v6216 = vsel %vm3625, %v6206, 0.0
  %v6217 = vrot.slane %v6212, 7
  %vm6218 = vcmask 1041409
  %v6219 = vsel %vm6218, %v6217, %v6216
  %v6220 = vrot.slane %v6206, 1
  %v6221 = vsel %vm3625, %v6220, 0.0
  %v6222 = vsel %vm6218, %v6212, %v6221
  %v6223 = vsel %vm3625, %v6209, 0.0
  %v6224 = vrot.slane %v6215, 7
  %v6225 = vsel %vm6218, %v6224, %v6223
  %v6226 = vrot.slane %v6209, 1
  %v6227 = vsel %vm3625, %v6226, 0.0
  %v6228 = vsel %vm6218, %v6215, %v6227
  %v6229 = vpack.c.bf16 %v6219, %v6219
  %v6230 = vpack.c.bf16 %v6222, %v6222
  %v6231 = vpack.c.bf16 %v6225, %v6225
  %v6232 = vpack.c.bf16 %v6228, %v6228
  %v6233 = vld [vmem:[%s7] sm:$0xf]
  %v6234 = vld [vmem:[%s7 + $0x4] sm:$0xf]
  %v6235 = vld [vmem:[%s7 + $0x8] sm:$0xf]
  %v6236 = vld [vmem:[%s7 + $0xc] sm:$0xf]
  %v6237 = vld [vmem:[%s7 + $0x10] sm:$0xf]
  %v6238 = vld [vmem:[%s7 + $0x14] sm:$0xf]
  %v6239 = vld [vmem:[%s7 + $0x18] sm:$0xf]
  %v6240 = vld [vmem:[%s7 + $0x1c] sm:$0xf]
  %v6241 = vld [vmem:[%s7 + $0x20] sm:$0xf]
  %v6242 = vld [vmem:[%s7 + $0x24] sm:$0xf]
  %v6243 = vld [vmem:[%s7 + $0x28] sm:$0xf]
  %v6244 = vld [vmem:[%s7 + $0x2c] sm:$0xf]
  %v6245 = vld [vmem:[%s7 + $0x30] sm:$0xf]
  %v6246 = vld [vmem:[%s7 + $0x34] sm:$0xf]
  %v6247 = vld [vmem:[%s7 + $0x38] sm:$0xf]
  %v6248 = vld [vmem:[%s7 + $0x3c] sm:$0xf]
  %v6249 = vld [vmem:[%s7 + $0x40] sm:$0xf]
  %v6250 = vld [vmem:[%s7 + $0x44] sm:$0xf]
  %v6251 = vld [vmem:[%s7 + $0x48] sm:$0xf]
  %v6252 = vld [vmem:[%s7 + $0x4c] sm:$0xf]
  %v6253 = vld [vmem:[%s7 + $0x50] sm:$0xf]
  %v6254 = vld [vmem:[%s7 + $0x54] sm:$0xf]
  %v6255 = vld [vmem:[%s7 + $0x58] sm:$0xf]
  %v6256 = vld [vmem:[%s7 + $0x5c] sm:$0xf]
  %v6257 = vld [vmem:[%s7 + $0x60] sm:$0xf]
  %v6258 = vld [vmem:[%s7 + $0x64] sm:$0xf]
  %v6259 = vld [vmem:[%s7 + $0x68] sm:$0xf]
  %v6260 = vld [vmem:[%s7 + $0x6c] sm:$0xf]
  %v6261 = vld [vmem:[%s7 + $0x70] sm:$0xf]
  %v6262 = vld [vmem:[%s7 + $0x74] sm:$0xf]
  %v6263 = vld [vmem:[%s7 + $0x78] sm:$0xf]
  %v6264 = vld [vmem:[%s7 + $0x7c] sm:$0xf]
  %v6265 = vld [vmem:[%s7 + $0x80] sm:$0xf]
  %v6266 = vld [vmem:[%s7 + $0x84] sm:$0xf]
  %v6267 = vld [vmem:[%s7 + $0x88] sm:$0xf]
  %v6268 = vld [vmem:[%s7 + $0x8c] sm:$0xf]
  %v6269 = vld [vmem:[%s7 + $0x90] sm:$0xf]
  %v6270 = vld [vmem:[%s7 + $0x94] sm:$0xf]
  %v6271 = vld [vmem:[%s7 + $0x98] sm:$0xf]
  %v6272 = vld [vmem:[%s7 + $0x9c] sm:$0xf]
  %v6273 = vld [vmem:[%s7 + $0xa0] sm:$0xf]
  %v6274 = vld [vmem:[%s7 + $0xa4] sm:$0xf]
  %v6275 = vld [vmem:[%s7 + $0xa8] sm:$0xf]
  %v6276 = vld [vmem:[%s7 + $0xac] sm:$0xf]
  %v6277 = vld [vmem:[%s7 + $0xb0] sm:$0xf]
  %v6278 = vld [vmem:[%s7 + $0xb4] sm:$0xf]
  %v6279 = vld [vmem:[%s7 + $0xb8] sm:$0xf]
  %v6280 = vld [vmem:[%s7 + $0xbc] sm:$0xf]
  %v6281 = vld [vmem:[%s7 + $0xc0] sm:$0xf]
  %v6282 = vld [vmem:[%s7 + $0xc4] sm:$0xf]
  %v6283 = vld [vmem:[%s7 + $0xc8] sm:$0xf]
  %v6284 = vld [vmem:[%s7 + $0xcc] sm:$0xf]
  %v6285 = vld [vmem:[%s7 + $0xd0] sm:$0xf]
  %v6286 = vld [vmem:[%s7 + $0xd4] sm:$0xf]
  %v6287 = vld [vmem:[%s7 + $0xd8] sm:$0xf]
  %v6288 = vld [vmem:[%s7 + $0xdc] sm:$0xf]
  %v6289 = vld [vmem:[%s7 + $0xe0] sm:$0xf]
  %v6290 = vld [vmem:[%s7 + $0xe4] sm:$0xf]
  %v6291 = vld [vmem:[%s7 + $0xe8] sm:$0xf]
  %v6292 = vld [vmem:[%s7 + $0xec] sm:$0xf]
  %v6293 = vld [vmem:[%s7 + $0xf0] sm:$0xf]
  %v6294 = vld [vmem:[%s7 + $0xf4] sm:$0xf]
  %v6295 = vld [vmem:[%s7 + $0xf8] sm:$0xf]
  %v6296 = vld [vmem:[%s7 + $0xfc] sm:$0xf]
  %v6297 = vld [vmem:[%s8] sm:$0x1]
  %v6299 = vlaneseq
  %v6300 = vshrl.u32 %v6299, 7
  %v6301 = vsub.s32 0, %v6300
  %v6302 = vrot.slane %v6297, %v6301
  %v6368 = vunpack.c.l.b16 %v6233
  %v6369 = vunpack.c.l.b16 %v6234
  %v6370 = vunpack.c.l.b16 %v6235
  %v6371 = vunpack.c.l.b16 %v6236
  %v6372 = vunpack.c.l.b16 %v6237
  %v6373 = vunpack.c.l.b16 %v6238
  %v6374 = vunpack.c.l.b16 %v6239
  %v6375 = vunpack.c.l.b16 %v6240
  %v6376 = vunpack.c.l.b16 %v6241
  %v6377 = vunpack.c.l.b16 %v6242
  %v6378 = vunpack.c.l.b16 %v6243
  %v6379 = vunpack.c.l.b16 %v6244
  %v6380 = vunpack.c.l.b16 %v6245
  %v6381 = vunpack.c.l.b16 %v6246
  %v6382 = vunpack.c.l.b16 %v6247
  %v6383 = vunpack.c.l.b16 %v6248
  %v6384 = vunpack.c.l.b16 %v6249
  %v6385 = vunpack.c.l.b16 %v6250
  %v6386 = vunpack.c.l.b16 %v6251
  %v6387 = vunpack.c.l.b16 %v6252
  %v6388 = vunpack.c.l.b16 %v6253
  %v6389 = vunpack.c.l.b16 %v6254
  %v6390 = vunpack.c.l.b16 %v6255
  %v6391 = vunpack.c.l.b16 %v6256
  %v6392 = vunpack.c.l.b16 %v6257
  %v6393 = vunpack.c.l.b16 %v6258
  %v6394 = vunpack.c.l.b16 %v6259
  %v6395 = vunpack.c.l.b16 %v6260
  %v6396 = vunpack.c.l.b16 %v6261
  %v6397 = vunpack.c.l.b16 %v6262
  %v6398 = vunpack.c.l.b16 %v6263
  %v6399 = vunpack.c.l.b16 %v6264
  %v6400 = vunpack.c.l.b16 %v6265
  %v6401 = vunpack.c.l.b16 %v6266
  %v6402 = vunpack.c.l.b16 %v6267
  %v6403 = vunpack.c.l.b16 %v6268
  %v6404 = vunpack.c.l.b16 %v6269
  %v6405 = vunpack.c.l.b16 %v6270
  %v6406 = vunpack.c.l.b16 %v6271
  %v6407 = vunpack.c.l.b16 %v6272
  %v6408 = vunpack.c.l.b16 %v6273
  %v6409 = vunpack.c.l.b16 %v6274
  %v6410 = vunpack.c.l.b16 %v6275
  %v6411 = vunpack.c.l.b16 %v6276
  %v6412 = vunpack.c.l.b16 %v6277
  %v6413 = vunpack.c.l.b16 %v6278
  %v6414 = vunpack.c.l.b16 %v6279
  %v6415 = vunpack.c.l.b16 %v6280
  %v6416 = vunpack.c.l.b16 %v6281
  %v6417 = vunpack.c.l.b16 %v6282
  %v6418 = vunpack.c.l.b16 %v6283
  %v6419 = vunpack.c.l.b16 %v6284
  %v6420 = vunpack.c.l.b16 %v6285
  %v6421 = vunpack.c.l.b16 %v6286
  %v6422 = vunpack.c.l.b16 %v6287
  %v6423 = vunpack.c.l.b16 %v6288
  %v6424 = vunpack.c.l.b16 %v6289
  %v6425 = vunpack.c.l.b16 %v6290
  %v6426 = vunpack.c.l.b16 %v6291
  %v6427 = vunpack.c.l.b16 %v6292
  %v6428 = vunpack.c.l.b16 %v6293
  %v6429 = vunpack.c.l.b16 %v6294
  %v6430 = vunpack.c.l.b16 %v6295
  %v6431 = vunpack.c.l.b16 %v6296
  %v6432 = vpack.c.b16 %v6369, %v6368
  %v6433 = vpack.c.b16 %v6371, %v6370
  %v6434 = vpack.c.b16 %v6373, %v6372
  %v6435 = vpack.c.b16 %v6375, %v6374
  %v6436 = vpack.c.b16 %v6377, %v6376
  %v6437 = vpack.c.b16 %v6379, %v6378
  %v6438 = vpack.c.b16 %v6381, %v6380
  %v6439 = vpack.c.b16 %v6383, %v6382
  %v6440 = vpack.c.b16 %v6385, %v6384
  %v6441 = vpack.c.b16 %v6387, %v6386
  %v6442 = vpack.c.b16 %v6389, %v6388
  %v6443 = vpack.c.b16 %v6391, %v6390
  %v6444 = vpack.c.b16 %v6393, %v6392
  %v6445 = vpack.c.b16 %v6395, %v6394
  %v6446 = vpack.c.b16 %v6397, %v6396
  %v6447 = vpack.c.b16 %v6399, %v6398
  %v6448 = vpack.c.b16 %v6401, %v6400
  %v6449 = vpack.c.b16 %v6403, %v6402
  %v6450 = vpack.c.b16 %v6405, %v6404
  %v6451 = vpack.c.b16 %v6407, %v6406
  %v6452 = vpack.c.b16 %v6409, %v6408
  %v6453 = vpack.c.b16 %v6411, %v6410
  %v6454 = vpack.c.b16 %v6413, %v6412
  %v6455 = vpack.c.b16 %v6415, %v6414
  %v6456 = vpack.c.b16 %v6417, %v6416
  %v6457 = vpack.c.b16 %v6419, %v6418
  %v6458 = vpack.c.b16 %v6421, %v6420
  %v6459 = vpack.c.b16 %v6423, %v6422
  %v6460 = vpack.c.b16 %v6425, %v6424
  %v6461 = vpack.c.b16 %v6427, %v6426
  %v6462 = vpack.c.b16 %v6429, %v6428
  %v6463 = vpack.c.b16 %v6431, %v6430
  %6496 = vmatprep.subr.bf16.mxu0 0
  %6497 = vmatpush1.bf16.msra.mxu0 %v6432
  %6498 = vmatprep.subr.bf16.mxu0 0
  %6499 = vmatpush1.bf16.msra.mxu0 %v6433
  %6500 = vmatprep.subr.bf16.mxu0 0
  %6501 = vmatpush1.bf16.msra.mxu0 %v6434
  %6502 = vmatprep.subr.bf16.mxu0 0
  %6503 = vmatpush1.bf16.msra.mxu0 %v6435
  %6504 = vmatprep.subr.bf16.mxu0 0
  %6505 = vmatpush1.bf16.msra.mxu0 %v6436
  %6506 = vmatprep.subr.bf16.mxu0 0
  %6507 = vmatpush1.bf16.msra.mxu0 %v6437
  %6508 = vmatprep.subr.bf16.mxu0 0
  %6509 = vmatpush1.bf16.msra.mxu0 %v6438
  %6510 = vmatprep.subr.bf16.mxu0 0
  %6511 = vmatpush1.bf16.msra.mxu0 %v6439
  %6512 = vmatprep.subr.bf16.mxu0 0
  %6513 = vmatpush1.bf16.msra.mxu0 %v6440
  %6514 = vmatprep.subr.bf16.mxu0 0
  %6515 = vmatpush1.bf16.msra.mxu0 %v6441
  %6516 = vmatprep.subr.bf16.mxu0 0
  %6517 = vmatpush1.bf16.msra.mxu0 %v6442
  %6518 = vmatprep.subr.bf16.mxu0 0
  %6519 = vmatpush1.bf16.msra.mxu0 %v6443
  %6520 = vmatprep.subr.bf16.mxu0 0
  %6521 = vmatpush1.bf16.msra.mxu0 %v6444
  %6522 = vmatprep.subr.bf16.mxu0 0
  %6523 = vmatpush1.bf16.msra.mxu0 %v6445
  %6524 = vmatprep.subr.bf16.mxu0 0
  %6525 = vmatpush1.bf16.msra.mxu0 %v6446
  %6526 = vmatprep.subr.bf16.mxu0 0
  %6527 = vmatpush1.bf16.msra.mxu0 %v6447
  %6528 = vmatprep.mubr.bf16.mxu0 %v6230
  %6529 = vmatmul.mubr.bf16.gmra.mrb[0].mxu0 %v6229
  %v6530 = vpop.f32.mrb[0].mxu0
  %v6531 = vadd.f32 %v6302, %v6530
  %v6532 = vpop.f32.mrb[0].mxu0
  %v6533 = vpop.f32.mrb[0].mxu0
  %v6534 = vpop.f32.mrb[0].mxu0
  %6535 = vdwg.mxu0
  %6536 = vmatprep.subr.bf16.mxu0 0
  %6537 = vmatpush1.bf16.msra.mxu0 %v6448
  %6538 = vmatprep.subr.bf16.mxu0 0
  %6539 = vmatpush1.bf16.msra.mxu0 %v6449
  %6540 = vmatprep.subr.bf16.mxu0 0
  %6541 = vmatpush1.bf16.msra.mxu0 %v6450
  %6542 = vmatprep.subr.bf16.mxu0 0
  %6543 = vmatpush1.bf16.msra.mxu0 %v6451
  %6544 = vmatprep.subr.bf16.mxu0 0
  %6545 = vmatpush1.bf16.msra.mxu0 %v6452
  %6546 = vmatprep.subr.bf16.mxu0 0
  %6547 = vmatpush1.bf16.msra.mxu0 %v6453
  %6548 = vmatprep.subr.bf16.mxu0 0
  %6549 = vmatpush1.bf16.msra.mxu0 %v6454
  %6550 = vmatprep.subr.bf16.mxu0 0
  %6551 = vmatpush1.bf16.msra.mxu0 %v6455
  %6552 = vmatprep.subr.bf16.mxu0 0
  %6553 = vmatpush1.bf16.msra.mxu0 %v6456
  %6554 = vmatprep.subr.bf16.mxu0 0
  %6555 = vmatpush1.bf16.msra.mxu0 %v6457
  %6556 = vmatprep.subr.bf16.mxu0 0
  %6557 = vmatpush1.bf16.msra.mxu0 %v6458
  %6558 = vmatprep.subr.bf16.mxu0 0
  %6559 = vmatpush1.bf16.msra.mxu0 %v6459
  %6560 = vmatprep.subr.bf16.mxu0 0
  %6561 = vmatpush1.bf16.msra.mxu0 %v6460
  %6562 = vmatprep.subr.bf16.mxu0 0
  %6563 = vmatpush1.bf16.msra.mxu0 %v6461
  %6564 = vmatprep.subr.bf16.mxu0 0
  %6565 = vmatpush1.bf16.msra.mxu0 %v6462
  %6566 = vmatprep.subr.bf16.mxu0 0
  %6567 = vmatpush1.bf16.msra.mxu0 %v6463
  %6568 = vmatprep.mubr.bf16.mxu0 %v6232
  %6569 = vmatmul.mubr.bf16.gmra.mrb[0].mxu0 %v6231
  %v6570 = vpop.f32.mrb[0].mxu0
  %v6571 = vadd.f32 %v6531, %v6570
  %v6572 = vpop.f32.mrb[0].mxu0
  %v6573 = vpop.f32.mrb[0].mxu0
  %v6574 = vpop.f32.mrb[0].mxu0
  %6575 = vdwg.mxu0
  %v6576 = vmax.f32 %v6571, 0.0
  %v6577 = vpack.c.bf16 %v6576, %v6576
  %v6578 = vld [vmem:[%s9] sm:$0xf]
  %v6579 = vld [vmem:[%s9 + $0x4] sm:$0xf]
  %v6580 = vld [vmem:[%s9 + $0x8] sm:$0xf]
  %v6581 = vld [vmem:[%s9 + $0xc] sm:$0xf]
  %v6582 = vld [vmem:[%s9 + $0x10] sm:$0xf]
  %v6583 = vld [vmem:[%s9 + $0x14] sm:$0xf]
  %v6584 = vld [vmem:[%s9 + $0x18] sm:$0xf]
  %v6585 = vld [vmem:[%s9 + $0x1c] sm:$0xf]
  %v6586 = vld [vmem:[%s9 + $0x20] sm:$0xf]
  %v6587 = vld [vmem:[%s9 + $0x24] sm:$0xf]
  %v6588 = vld [vmem:[%s9 + $0x28] sm:$0xf]
  %v6589 = vld [vmem:[%s9 + $0x2c] sm:$0xf]
  %v6590 = vld [vmem:[%s9 + $0x30] sm:$0xf]
  %v6591 = vld [vmem:[%s9 + $0x34] sm:$0xf]
  %v6592 = vld [vmem:[%s9 + $0x38] sm:$0xf]
  %v6593 = vld [vmem:[%s9 + $0x3c] sm:$0xf]
  %v6594 = vld [vmem:[%s10] sm:$0x1]
  %v6596 = vlaneseq
  %v6597 = vshrl.u32 %v6596, 7
  %v6598 = vsub.s32 0, %v6597
  %v6599 = vrot.slane %v6594, %v6598
  %v6617 = vunpack.c.l.b16 %v6578
  %v6618 = vunpack.c.l.b16 %v6579
  %v6619 = vunpack.c.l.b16 %v6580
  %v6620 = vunpack.c.l.b16 %v6581
  %v6621 = vunpack.c.l.b16 %v6582
  %v6622 = vunpack.c.l.b16 %v6583
  %v6623 = vunpack.c.l.b16 %v6584
  %v6624 = vunpack.c.l.b16 %v6585
  %v6625 = vunpack.c.l.b16 %v6586
  %v6626 = vunpack.c.l.b16 %v6587
  %v6627 = vunpack.c.l.b16 %v6588
  %v6628 = vunpack.c.l.b16 %v6589
  %v6629 = vunpack.c.l.b16 %v6590
  %v6630 = vunpack.c.l.b16 %v6591
  %v6631 = vunpack.c.l.b16 %v6592
  %v6632 = vunpack.c.l.b16 %v6593
  %v6633 = vpack.c.b16 %v6618, %v6617
  %v6634 = vpack.c.b16 %v6620, %v6619
  %v6635 = vpack.c.b16 %v6622, %v6621
  %v6636 = vpack.c.b16 %v6624, %v6623
  %v6637 = vpack.c.b16 %v6626, %v6625
  %v6638 = vpack.c.b16 %v6628, %v6627
  %v6639 = vpack.c.b16 %v6630, %v6629
  %v6640 = vpack.c.b16 %v6632, %v6631
  %6649 = vmatprep.subr.bf16.mxu0 0
  %6650 = vmatpush1.bf16.msra.mxu0 %v6633
  %6651 = vmatprep.subr.bf16.mxu0 0
  %6652 = vmatpush1.bf16.msra.mxu0 %v6634
  %6653 = vmatprep.subr.bf16.mxu0 0
  %6654 = vmatpush1.bf16.msra.mxu0 %v6635
  %6655 = vmatprep.subr.bf16.mxu0 0
  %6656 = vmatpush1.bf16.msra.mxu0 %v6636
  %6657 = vmatprep.subr.bf16.mxu0 0
  %6658 = vmatpush1.bf16.msra.mxu0 %v6637
  %6659 = vmatprep.subr.bf16.mxu0 0
  %6660 = vmatpush1.bf16.msra.mxu0 %v6638
  %6661 = vmatprep.subr.bf16.mxu0 0
  %6662 = vmatpush1.bf16.msra.mxu0 %v6639
  %6663 = vmatprep.subr.bf16.mxu0 0
  %6664 = vmatpush1.bf16.msra.mxu0 %v6640
  %6665 = vmatprep.subr.bf16.mxu0 0
  %6666 = vmatpush1.bf16.msra.mxu0 0
  %6667 = vmatprep.subr.bf16.mxu0 0
  %6668 = vmatpush1.bf16.msra.mxu0 0
  %6669 = vmatprep.subr.bf16.mxu0 0
  %6670 = vmatpush1.bf16.msra.mxu0 0
  %6671 = vmatprep.subr.bf16.mxu0 0
  %6672 = vmatpush1.bf16.msra.mxu0 0
  %6673 = vmatprep.subr.bf16.mxu0 0
  %6674 = vmatpush1.bf16.msra.mxu0 0
  %6675 = vmatprep.subr.bf16.mxu0 0
  %6676 = vmatpush1.bf16.msra.mxu0 0
  %6677 = vmatprep.subr.bf16.mxu0 0
  %6678 = vmatpush1.bf16.msra.mxu0 0
  %6679 = vmatprep.subr.bf16.mxu0 0
  %6680 = vmatpush1.bf16.msra.mxu0 0
  %6681 = vmatprep.mubr.bf16.mxu0 0
  %6682 = vmatmul.mubr.bf16.gmra.mrb[0].mxu0 %v6577
  %v6683 = vpop.f32.mrb[0].mxu0
  %v6684 = vadd.f32 %v6599, %v6683
  %v6685 = vpop.f32.mrb[0].mxu0
  %v6686 = vpop.f32.mrb[0].mxu0
  %v6687 = vpop.f32.mrb[0].mxu0
  %6688 = vdwg.mxu0
  %6689 = vst.msk [vmem:[%s11] sm:$0x3] %vm42, %v6684
  // Predicated region
  $region46: #{cnn_backbone_forward.1} parent=0 // pred_check
    _
  $region47: #{cnn_backbone_forward.1} parent=0 // pred_check_branch
    %6691 = sbr.rel (0) target = $region49
  $region48: #{cnn_backbone_forward.1} parent=0 // pred_region
    _
  $region49: #{cnn_backbone_forward.1} parent=0 // pred_fallthru
    _
  // Predicated region
  $region50: #{cnn_backbone_forward.1} parent=0 // pred_check
    _
  $region51: #{cnn_backbone_forward.1} parent=0 // pred_check_branch
    %6693 = sbr.rel (0) target = $region53
  $region52: #{cnn_backbone_forward.1} parent=0 // pred_region
    _
  $region53: #{cnn_backbone_forward.1} parent=0 // pred_fallthru
    _

</llo_original>
